<compile_context>
chip_gen: v6e
topology: v6e:2x2x1
jax: 0.10.0
libtpu: 0.0.40
codegen_flags: <defaults>
</compile_context>

<pallas_src>
import math

import jax
import jax.numpy as jnp
from jax.experimental import pallas as pl
from jax.experimental.pallas import tpu as pltpu

PATCH = 8
CHANNELS = 3
NUM_LABELS = 15
HIDDEN = 256
NUM_LAYERS = 8
NUM_HEADS = 8
HEAD_DIM = HIDDEN // NUM_HEADS
INTERMEDIATE = 512
LN_EPS = 1e-12                       # HF ViTConfig default

K_RAW = CHANNELS * PATCH * PATCH     # 192 = im2col contraction dim
K_PAD = 256                          # padded to a multiple of 128 lanes
LOGITS_PAD = 128                     # lane-dense classifier output width


# ----------------------------- in-kernel math ------------------------------

def _erf(x):
    # Abramowitz & Stegun 7.1.26 polynomial erf (|err| < 1.5e-7); exp/abs/where
    # only, so it lowers to the VPU/EUP.  Matches torch's exact-erf GELU to
    # ~1e-7.
    a1, a2, a3, a4, a5 = 0.254829592, -0.284496736, 1.421413741, -1.453152027, 1.061405429
    p = 0.3275911
    s = jnp.where(x >= 0.0, 1.0, -1.0)
    ax = jnp.abs(x)
    t = 1.0 / (1.0 + p * ax)
    poly = ((((a5 * t + a4) * t + a3) * t + a2) * t + a1) * t
    return s * (1.0 - poly * jnp.exp(-ax * ax))


def _gelu(x):
    return 0.5 * x * (1.0 + _erf(x * 0.7071067811865476))


def _layernorm(x, g, b):
    mean = jnp.mean(x, axis=-1, keepdims=True)
    var = jnp.mean(jnp.square(x - mean), axis=-1, keepdims=True)
    return (x - mean) * jax.lax.rsqrt(var + LN_EPS) * g + b


def _bf16(x):
    return x.astype(jnp.bfloat16)


# ------------------------------ fused kernel --------------------------------

def _vit_kernel(patches_ref, patch_w_ref, pb_pos_ref,
                ln1g_ref, ln1b_ref, wqkv_ref, bqkv_ref, wo_ref, bo_ref,
                ln2g_ref, ln2b_ref, w1_ref, b1_ref, w2_ref, b2_ref,
                flng_ref, flnb_ref, clsw_ref, clsb_ref,
                logits_ref, x_sc, ctx_sc):
    layer = pl.program_id(1)

    # ---- layer 0: patch embedding + CLS token + position embeddings ----
    # patches row 0 is all-zero (CLS slot); pb_pos already contains
    # cls+pos[0] in row 0 and patch_bias+pos[i] in rows 1..  (prep time).
    @pl.when(layer == 0)
    def _():
        emb = jnp.dot(_bf16(patches_ref[...]), patch_w_ref[...],
                      preferred_element_type=jnp.float32)
        x_sc[...] = emb + pb_pos_ref[...]

    x = x_sc[...]                                                  # (S, D) f32

    # ---- multi-head self-attention (pre-LN, residual add) ----
    h = _layernorm(x, ln1g_ref[...], ln1b_ref[...])
    qkv = jnp.dot(_bf16(h), wqkv_ref[...],
                  preferred_element_type=jnp.float32) + bqkv_ref[...]
    q = qkv[:, 0 * HIDDEN:1 * HIDDEN]        # attention scale folded into Wq/bq
    k = qkv[:, 1 * HIDDEN:2 * HIDDEN]
    v = qkv[:, 2 * HIDDEN:3 * HIDDEN]

    for hd in range(NUM_HEADS):                                    # static unroll
        lo = hd * HEAD_DIM
        qh = q[:, lo:lo + HEAD_DIM]
        kh = k[:, lo:lo + HEAD_DIM]
        vh = v[:, lo:lo + HEAD_DIM]
        s = jnp.dot(qh, kh.T, preferred_element_type=jnp.float32)
        s = s - jnp.max(s, axis=-1, keepdims=True)
        p = jnp.exp(s)
        p = p / jnp.sum(p, axis=-1, keepdims=True)
        ctx_sc[:, lo:lo + HEAD_DIM] = jnp.dot(p, vh,
                                              preferred_element_type=jnp.float32)

    attn = jnp.dot(_bf16(ctx_sc[...]), wo_ref[...],
                   preferred_element_type=jnp.float32) + bo_ref[...]
    x = x + attn

    # ---- MLP (pre-LN, residual add) ----
    h2 = _layernorm(x, ln2g_ref[...], ln2b_ref[...])
    mid = _gelu(jnp.dot(_bf16(h2), w1_ref[...],
                        preferred_element_type=jnp.float32) + b1_ref[...])
    mlp = jnp.dot(_bf16(mid), w2_ref[...],
                  preferred_element_type=jnp.float32) + b2_ref[...]
    x = x + mlp
    x_sc[...] = x

    # ---- last layer: final LayerNorm + classifier on the CLS token ----
    @pl.when(layer == NUM_LAYERS - 1)
    def _():
        xf = _layernorm(x, flng_ref[...], flnb_ref[...])
        cls_tok = xf[0:1, :]                                       # (1, D)
        logits_ref[...] = jnp.dot(_bf16(cls_tok), clsw_ref[...],
                                  preferred_element_type=jnp.float32) + clsb_ref[...]


def vit_fused(patches, p):
    B, S, _ = patches.shape

    def const(shape):
        return pl.BlockSpec(shape, lambda b, l, n=len(shape): (0,) * n)

    def per_layer(shape):
        # stacked (L, *shape) weights; layer axis squeezed inside the kernel
        return pl.BlockSpec((None,) + shape,
                            lambda b, l, n=len(shape): (l,) + (0,) * n)

    in_specs = [
        pl.BlockSpec((None, S, K_PAD), lambda b, l: (b, 0, 0)),        # patches
        const((K_PAD, HIDDEN)),                                        # patch_w
        const((S, HIDDEN)),                                            # pb_pos
        per_layer((1, HIDDEN)), per_layer((1, HIDDEN)),                # ln1 g/b
        per_layer((HIDDEN, 3 * HIDDEN)), per_layer((1, 3 * HIDDEN)),   # Wqkv/bqkv
        per_layer((HIDDEN, HIDDEN)), per_layer((1, HIDDEN)),           # Wo/bo
        per_layer((1, HIDDEN)), per_layer((1, HIDDEN)),                # ln2 g/b
        per_layer((HIDDEN, INTERMEDIATE)), per_layer((1, INTERMEDIATE)),  # W1/b1
        per_layer((INTERMEDIATE, HIDDEN)), per_layer((1, HIDDEN)),        # W2/b2
        const((1, HIDDEN)), const((1, HIDDEN)),                        # final LN g/b
        const((HIDDEN, LOGITS_PAD)), const((1, LOGITS_PAD)),           # cls_w/cls_b
    ]
    out_spec = pl.BlockSpec((None, 1, LOGITS_PAD), lambda b, l: (b, 0, 0))

    return pl.pallas_call(
        _vit_kernel,
        out_shape=jax.ShapeDtypeStruct((B, 1, LOGITS_PAD), jnp.float32),
        grid=(B, NUM_LAYERS),
        in_specs=in_specs,
        out_specs=out_spec,
        scratch_shapes=[pltpu.VMEM((S, HIDDEN), jnp.float32),   # residual stream
                        pltpu.VMEM((S, HIDDEN), jnp.float32)],  # attention ctx
        compiler_params=pltpu.CompilerParams(
            dimension_semantics=("parallel", "arbitrary")),
    )(patches, p["patch_w"], p["pb_pos"],
      p["ln1_g"], p["ln1_b"], p["wqkv"], p["bqkv"], p["wo"], p["bo"],
      p["ln2_g"], p["ln2_b"], p["w1"], p["b1"], p["w2"], p["b2"],
      p["fln_g"], p["fln_b"], p["cls_w"], p["cls_b"])


# ------------------------------ parameters ----------------------------------

def init_params(key, num_patches):
    keys = iter(jax.random.split(key, 8 + 16 * NUM_LAYERS))
    std = 0.02

    def nrm(shape):
        return jax.random.normal(next(keys), shape, jnp.float32) * std

    def zeros(shape):
        return jnp.zeros(shape, jnp.float32)

    params = {
        # Conv2d(3, 256, k=8, s=8) weight flattened to (C*P*P, HIDDEN)
        "patch_w": nrm((K_RAW, HIDDEN)),
        "patch_b": zeros((HIDDEN,)),
        "cls": nrm((HIDDEN,)),
        "pos": nrm((num_patches + 1, HIDDEN)),
        "fln_g": jnp.ones((HIDDEN,), jnp.float32),
        "fln_b": zeros((HIDDEN,)),
        "cls_w": nrm((HIDDEN, NUM_LABELS)),
        "cls_b": zeros((NUM_LABELS,)),
        "layers": [],
    }
    for _ in range(NUM_LAYERS):
        params["layers"].append(dict(
            ln1_g=jnp.ones((HIDDEN,), jnp.float32), ln1_b=zeros((HIDDEN,)),
            wq=nrm((HIDDEN, HIDDEN)), bq=zeros((HIDDEN,)),
            wk=nrm((HIDDEN, HIDDEN)), bk=zeros((HIDDEN,)),
            wv=nrm((HIDDEN, HIDDEN)), bv=zeros((HIDDEN,)),
            wo=nrm((HIDDEN, HIDDEN)), bo=zeros((HIDDEN,)),
            ln2_g=jnp.ones((HIDDEN,), jnp.float32), ln2_b=zeros((HIDDEN,)),
            w1=nrm((HIDDEN, INTERMEDIATE)), b1=zeros((INTERMEDIATE,)),
            w2=nrm((INTERMEDIATE, HIDDEN)), b2=zeros((HIDDEN,)),
        ))
    return params


def prepare_params(params):
    """One-time transform: stack per-layer weights along a leading (L, ...) axis,
    fuse Q/K/V, fold the 1/sqrt(head_dim) scale into Wq/bq, cast matmul weights
    to bf16, and pad lane-unfriendly shapes (im2col K 192->256, classifier
    N 15->128)."""
    scale = 1.0 / math.sqrt(HEAD_DIM)
    L = params["layers"]

    def stack(name):
        return jnp.stack([lyr[name] for lyr in L])

    wqkv = jnp.concatenate([stack("wq") * scale, stack("wk"), stack("wv")],
                           axis=-1)                                  # (L, D, 3D)
    bqkv = jnp.concatenate([stack("bq") * scale, stack("bk"), stack("bv")],
                           axis=-1)                                  # (L, 3D)

    S = params["pos"].shape[0]
    # Row 0 of the patch matrix is all-zero (CLS slot), so fold CLS token +
    # position embeddings + patch-conv bias into a single additive (S, D) table.
    pb_pos = params["pos"] + jnp.concatenate(
        [params["cls"][None, :],
         jnp.broadcast_to(params["patch_b"][None, :], (S - 1, HIDDEN))], axis=0)

    patch_w = jnp.zeros((K_PAD, HIDDEN), jnp.float32).at[:K_RAW].set(params["patch_w"])
    cls_w = jnp.zeros((HIDDEN, LOGITS_PAD), jnp.float32).at[:, :NUM_LABELS].set(params["cls_w"])
    cls_b = jnp.zeros((LOGITS_PAD,), jnp.float32).at[:NUM_LABELS].set(params["cls_b"])

    bf = jnp.bfloat16
    return {
        "patch_w": patch_w.astype(bf),                       # (K_PAD, D)
        "pb_pos": pb_pos,                                    # (S, D) f32
        "ln1_g": stack("ln1_g")[:, None, :], "ln1_b": stack("ln1_b")[:, None, :],
        "wqkv": wqkv.astype(bf), "bqkv": bqkv[:, None, :],
        "wo": stack("wo").astype(bf), "bo": stack("bo")[:, None, :],
        "ln2_g": stack("ln2_g")[:, None, :], "ln2_b": stack("ln2_b")[:, None, :],
        "w1": stack("w1").astype(bf), "b1": stack("b1")[:, None, :],
        "w2": stack("w2").astype(bf), "b2": stack("b2")[:, None, :],
        "fln_g": params["fln_g"][None, :], "fln_b": params["fln_b"][None, :],
        "cls_w": cls_w.astype(bf), "cls_b": cls_b[None, :],
    }


# -------------------------------- forward -----------------------------------

def _make_patches(x_nchw):
    # Conv2d(k=8, s=8) == im2col (plain-JAX layout glue) + in-kernel matmul.
    B, C, H, W = x_nchw.shape
    nh, nw = H // PATCH, W // PATCH
    p = x_nchw.reshape(B, C, nh, PATCH, nw, PATCH)
    p = p.transpose(0, 2, 4, 1, 3, 5).reshape(B, nh * nw, K_RAW)
    # prepend an all-zero row for the CLS slot and zero-pad K 192 -> 256
    return jnp.pad(p, ((0, 0), (1, 0), (0, K_PAD - K_RAW)))


@jax.jit
def vit_forward(x_nchw, prep):
    patches = _make_patches(x_nchw)              # (B, S, K_PAD) f32
    logits = vit_fused(patches, prep)            # (B, 1, 128)
    return logits[:, 0, :NUM_LABELS]             # (B, 15)


if __name__ == "__main__":
    image_size = 16      # ViT(image_size=16): 2x2 grid of 8x8 patches -> seq len 5
    batch = 2

    key = jax.random.PRNGKey(0)
    k_x, k_p = jax.random.split(key)
    x = jax.random.normal(k_x, (batch, CHANNELS, image_size, image_size), jnp.float32)

    num_patches = (image_size // PATCH) ** 2
    params = init_params(k_p, num_patches)
    prep = prepare_params(params)                # one-time weight prep (stack/fuse/bf16/pad)

    logits = vit_forward(x, prep)
    jax.block_until_ready(logits)
    assert logits.shape == (batch, NUM_LABELS) and logits.dtype == jnp.float32
    print("KERNEL_OK")
</pallas_src>

<mosaic_0001>
module attributes {stable_mosaic.version = 11 : i64} {
  func.func @_vit_kernel(%arg0: i32, %arg1: i32, %arg2: memref<1x5x256xf32, #tpu.memory_space<vmem>>, %arg3: memref<256x256xbf16, #tpu.memory_space<vmem>>, %arg4: memref<5x256xf32, #tpu.memory_space<vmem>>, %arg5: memref<1x1x256xf32, #tpu.memory_space<vmem>>, %arg6: memref<1x1x256xf32, #tpu.memory_space<vmem>>, %arg7: memref<1x256x768xbf16, #tpu.memory_space<vmem>>, %arg8: memref<1x1x768xf32, #tpu.memory_space<vmem>>, %arg9: memref<1x256x256xbf16, #tpu.memory_space<vmem>>, %arg10: memref<1x1x256xf32, #tpu.memory_space<vmem>>, %arg11: memref<1x1x256xf32, #tpu.memory_space<vmem>>, %arg12: memref<1x1x256xf32, #tpu.memory_space<vmem>>, %arg13: memref<1x256x512xbf16, #tpu.memory_space<vmem>>, %arg14: memref<1x1x512xf32, #tpu.memory_space<vmem>>, %arg15: memref<1x512x256xbf16, #tpu.memory_space<vmem>>, %arg16: memref<1x1x256xf32, #tpu.memory_space<vmem>>, %arg17: memref<1x256xf32, #tpu.memory_space<vmem>>, %arg18: memref<1x256xf32, #tpu.memory_space<vmem>>, %arg19: memref<256x128xbf16, #tpu.memory_space<vmem>>, %arg20: memref<1x128xf32, #tpu.memory_space<vmem>>, %arg21: memref<1x1x128xf32, #tpu.memory_space<vmem>>, %arg22: memref<5x256xf32, #tpu.memory_space<vmem>>, %arg23: memref<5x256xf32, #tpu.memory_space<vmem>>) attributes {dimension_semantics = [#tpu.dimension_semantics<parallel>, #tpu.dimension_semantics<arbitrary>], iteration_bounds = array<i64: 2, 8>, scalar_prefetch = 0 : i64, scratch_operands = 2 : i64, tpu.core_type = #tpu.core_type<tc>, window_params = [{transform_indices = @transform_0, window_bounds = array<i64: 1, 5, 256>}, {pipeline_mode = #tpu.pipeline_mode<synchronous>, transform_indices = @transform_1, window_bounds = array<i64: 256, 256>}, {pipeline_mode = #tpu.pipeline_mode<synchronous>, transform_indices = @transform_2, window_bounds = array<i64: 5, 256>}, {transform_indices = @transform_3, window_bounds = array<i64: 1, 1, 256>}, {transform_indices = @transform_4, window_bounds = array<i64: 1, 1, 256>}, {transform_indices = @transform_5, window_bounds = array<i64: 1, 256, 768>}, {transform_indices = @transform_6, window_bounds = array<i64: 1, 1, 768>}, {transform_indices = @transform_7, window_bounds = array<i64: 1, 256, 256>}, {transform_indices = @transform_8, window_bounds = array<i64: 1, 1, 256>}, {transform_indices = @transform_9, window_bounds = array<i64: 1, 1, 256>}, {transform_indices = @transform_10, window_bounds = array<i64: 1, 1, 256>}, {transform_indices = @transform_11, window_bounds = array<i64: 1, 256, 512>}, {transform_indices = @transform_12, window_bounds = array<i64: 1, 1, 512>}, {transform_indices = @transform_13, window_bounds = array<i64: 1, 512, 256>}, {transform_indices = @transform_14, window_bounds = array<i64: 1, 1, 256>}, {pipeline_mode = #tpu.pipeline_mode<synchronous>, transform_indices = @transform_15, window_bounds = array<i64: 1, 256>}, {pipeline_mode = #tpu.pipeline_mode<synchronous>, transform_indices = @transform_16, window_bounds = array<i64: 1, 256>}, {pipeline_mode = #tpu.pipeline_mode<synchronous>, transform_indices = @transform_17, window_bounds = array<i64: 256, 128>}, {pipeline_mode = #tpu.pipeline_mode<synchronous>, transform_indices = @transform_18, window_bounds = array<i64: 1, 128>}, {transform_indices = @transform_19, window_bounds = array<i64: 1, 1, 128>}]} {
    %c0_i32 = arith.constant 0 : i32
    %0 = arith.cmpi eq, %arg1, %c0_i32 : i32
    %1 = arith.extui %0 : i1 to i32
    %c0_i32_0 = arith.constant 0 : i32
    %2 = arith.cmpi ne, %1, %c0_i32_0 : i32
    scf.if %2 {
      %c0_113 = arith.constant 0 : index
      %c0_114 = arith.constant 0 : index
      %c0_115 = arith.constant 0 : index
      %267 = vector.load %arg2[%c0_113, %c0_114, %c0_115] : memref<1x5x256xf32, #tpu.memory_space<vmem>>, vector<1x5x256xf32>
      %268 = vector.shape_cast %267 : vector<1x5x256xf32> to vector<5x256xf32>
      %269 = arith.truncf %268 : vector<5x256xf32> to vector<5x256xbf16>
      %c0_116 = arith.constant 0 : index
      %c0_117 = arith.constant 0 : index
      %270 = vector.load %arg3[%c0_116, %c0_117] : memref<256x256xbf16, #tpu.memory_space<vmem>>, vector<256x256xbf16>
      %cst_118 = arith.constant dense<0.000000e+00> : vector<5x256xf32>
      %271 = tpu.matmul %269, %270, %cst_118 {dimension_numbers = #tpu.dot_dimension_numbers<[1], [0], [0], [1], [0, 0, 1, 1], [], []>} : vector<5x256xbf16>, vector<256x256xbf16>, vector<5x256xf32> -> vector<5x256xf32>
      %c0_119 = arith.constant 0 : index
      %c0_120 = arith.constant 0 : index
      %272 = vector.load %arg4[%c0_119, %c0_120] : memref<5x256xf32, #tpu.memory_space<vmem>>, vector<5x256xf32>
      %273 = arith.addf %271, %272 : vector<5x256xf32>
      %c0_121 = arith.constant 0 : index
      %c0_122 = arith.constant 0 : index
      %274 = vector.load %arg22[%c0_121, %c0_122] : memref<5x256xf32, #tpu.memory_space<vmem>>, vector<5x256xf32>
      tpu.vector_store %arg22[%c0_121, %c0_122], %273 {strides = array<i32>} : memref<5x256xf32, #tpu.memory_space<vmem>>, vector<5x256xf32>,
    } else {
    }
    %c0 = arith.constant 0 : index
    %c0_1 = arith.constant 0 : index
    %3 = vector.load %arg22[%c0, %c0_1] : memref<5x256xf32, #tpu.memory_space<vmem>>, vector<5x256xf32>
    %c0_2 = arith.constant 0 : index
    %c0_3 = arith.constant 0 : index
    %c0_4 = arith.constant 0 : index
    %4 = vector.load %arg5[%c0_2, %c0_3, %c0_4] : memref<1x1x256xf32, #tpu.memory_space<vmem>>, vector<1x1x256xf32>
    %5 = vector.shape_cast %4 : vector<1x1x256xf32> to vector<1x256xf32>
    %c0_5 = arith.constant 0 : index
    %c0_6 = arith.constant 0 : index
    %c0_7 = arith.constant 0 : index
    %6 = vector.load %arg6[%c0_5, %c0_6, %c0_7] : memref<1x1x256xf32, #tpu.memory_space<vmem>>, vector<1x1x256xf32>
    %7 = vector.shape_cast %6 : vector<1x1x256xf32> to vector<1x256xf32>
    %cst = arith.constant dense<0.000000e+00> : vector<5xf32>
    %8 = vector.multi_reduction <add>, %3, %cst [1] : vector<5x256xf32> to vector<5xf32>
    %9 = vector.shape_cast %8 : vector<5xf32> to vector<5x1xf32>
    %cst_8 = arith.constant 2.560000e+02 : f32
    %10 = vector.broadcast %cst_8 : f32 to vector<5x1xf32>
    %11 = arith.divf %9, %10 : vector<5x1xf32>
    %12 = vector.broadcast %11 : vector<5x1xf32> to vector<5x256xf32>
    %13 = arith.subf %3, %12 : vector<5x256xf32>
    %14 = arith.mulf %13, %13 : vector<5x256xf32>
    %cst_9 = arith.constant dense<0.000000e+00> : vector<5xf32>
    %15 = vector.multi_reduction <add>, %14, %cst_9 [1] : vector<5x256xf32> to vector<5xf32>
    %16 = vector.shape_cast %15 : vector<5xf32> to vector<5x1xf32>
    %cst_10 = arith.constant 2.560000e+02 : f32
    %17 = vector.broadcast %cst_10 : f32 to vector<5x1xf32>
    %18 = arith.divf %16, %17 : vector<5x1xf32>
    %19 = vector.broadcast %11 : vector<5x1xf32> to vector<5x256xf32>
    %20 = arith.subf %3, %19 : vector<5x256xf32>
    %cst_11 = arith.constant 9.99999996E-13 : f32
    %21 = vector.broadcast %cst_11 : f32 to vector<5x1xf32>
    %22 = arith.addf %18, %21 : vector<5x1xf32>
    %23 = math.rsqrt %22 : vector<5x1xf32>
    %24 = vector.broadcast %23 : vector<5x1xf32> to vector<5x256xf32>
    %25 = arith.mulf %20, %24 : vector<5x256xf32>
    %26 = vector.broadcast %5 : vector<1x256xf32> to vector<5x256xf32>
    %27 = arith.mulf %25, %26 : vector<5x256xf32>
    %28 = vector.broadcast %7 : vector<1x256xf32> to vector<5x256xf32>
    %29 = arith.addf %27, %28 : vector<5x256xf32>
    %30 = arith.truncf %29 : vector<5x256xf32> to vector<5x256xbf16>
    %c0_12 = arith.constant 0 : index
    %c0_13 = arith.constant 0 : index
    %c0_14 = arith.constant 0 : index
    %31 = vector.load %arg7[%c0_12, %c0_13, %c0_14] : memref<1x256x768xbf16, #tpu.memory_space<vmem>>, vector<1x256x768xbf16>
    %32 = vector.shape_cast %31 : vector<1x256x768xbf16> to vector<256x768xbf16>
    %cst_15 = arith.constant dense<0.000000e+00> : vector<5x768xf32>
    %33 = tpu.matmul %30, %32, %cst_15 {dimension_numbers = #tpu.dot_dimension_numbers<[1], [0], [0], [1], [0, 0, 1, 1], [], []>} : vector<5x256xbf16>, vector<256x768xbf16>, vector<5x768xf32> -> vector<5x768xf32>
    %c0_16 = arith.constant 0 : index
    %c0_17 = arith.constant 0 : index
    %c0_18 = arith.constant 0 : index
    %34 = vector.load %arg8[%c0_16, %c0_17, %c0_18] : memref<1x1x768xf32, #tpu.memory_space<vmem>>, vector<1x1x768xf32>
    %35 = vector.shape_cast %34 : vector<1x1x768xf32> to vector<1x768xf32>
    %36 = vector.broadcast %35 : vector<1x768xf32> to vector<5x768xf32>
    %37 = arith.addf %33, %36 : vector<5x768xf32>
    %38 = vector.extract_strided_slice %37 {offsets = [0, 0], sizes = [5, 256], strides = [1, 1]} : vector<5x768xf32> to vector<5x256xf32>
    %39 = vector.extract_strided_slice %37 {offsets = [0, 256], sizes = [5, 256], strides = [1, 1]} : vector<5x768xf32> to vector<5x256xf32>
    %40 = vector.extract_strided_slice %37 {offsets = [0, 512], sizes = [5, 256], strides = [1, 1]} : vector<5x768xf32> to vector<5x256xf32>
    %41 = vector.extract_strided_slice %38 {offsets = [0, 0], sizes = [5, 32], strides = [1, 1]} : vector<5x256xf32> to vector<5x32xf32>
    %42 = vector.extract_strided_slice %39 {offsets = [0, 0], sizes = [5, 32], strides = [1, 1]} : vector<5x256xf32> to vector<5x32xf32>
    %43 = vector.extract_strided_slice %40 {offsets = [0, 0], sizes = [5, 32], strides = [1, 1]} : vector<5x256xf32> to vector<5x32xf32>
    %44 = tpu.transpose %42, [1, 0] : vector<5x32xf32> -> vector<32x5xf32>
    %cst_19 = arith.constant dense<0.000000e+00> : vector<5x5xf32>
    %45 = tpu.matmul %41, %44, %cst_19 {dimension_numbers = #tpu.dot_dimension_numbers<[1], [0], [0], [1], [0, 0, 1, 1], [], []>} : vector<5x32xf32>, vector<32x5xf32>, vector<5x5xf32> -> vector<5x5xf32>
    %cst_20 = arith.constant dense<0xFF800000> : vector<5xf32>
    %46 = vector.multi_reduction <maximumf>, %45, %cst_20 [1] : vector<5x5xf32> to vector<5xf32>
    %47 = vector.shape_cast %46 : vector<5xf32> to vector<5x1xf32>
    %48 = vector.broadcast %47 : vector<5x1xf32> to vector<5x5xf32>
    %49 = arith.subf %45, %48 : vector<5x5xf32>
    %50 = math.exp %49 : vector<5x5xf32>
    %cst_21 = arith.constant dense<0.000000e+00> : vector<5xf32>
    %51 = vector.multi_reduction <add>, %50, %cst_21 [1] : vector<5x5xf32> to vector<5xf32>
    %52 = vector.shape_cast %51 : vector<5xf32> to vector<5x1xf32>
    %53 = vector.broadcast %52 : vector<5x1xf32> to vector<5x5xf32>
    %54 = arith.divf %50, %53 : vector<5x5xf32>
    %cst_22 = arith.constant dense<0.000000e+00> : vector<5x32xf32>
    %55 = tpu.matmul %54, %43, %cst_22 {dimension_numbers = #tpu.dot_dimension_numbers<[1], [0], [0], [1], [0, 0, 1, 1], [], []>} : vector<5x5xf32>, vector<5x32xf32>, vector<5x32xf32> -> vector<5x32xf32>
    %c0_23 = arith.constant 0 : index
    %c0_24 = arith.constant 0 : index
    %56 = vector.load %arg23[%c0_23, %c0_24] : memref<5x256xf32, #tpu.memory_space<vmem>>, vector<5x32xf32>
    tpu.vector_store %arg23[%c0_23, %c0_24], %55 {strides = array<i32>} : memref<5x256xf32, #tpu.memory_space<vmem>>, vector<5x32xf32>,
    %57 = vector.extract_strided_slice %38 {offsets = [0, 32], sizes = [5, 32], strides = [1, 1]} : vector<5x256xf32> to vector<5x32xf32>
    %58 = vector.extract_strided_slice %39 {offsets = [0, 32], sizes = [5, 32], strides = [1, 1]} : vector<5x256xf32> to vector<5x32xf32>
    %59 = vector.extract_strided_slice %40 {offsets = [0, 32], sizes = [5, 32], strides = [1, 1]} : vector<5x256xf32> to vector<5x32xf32>
    %60 = tpu.transpose %58, [1, 0] : vector<5x32xf32> -> vector<32x5xf32>
    %cst_25 = arith.constant dense<0.000000e+00> : vector<5x5xf32>
    %61 = tpu.matmul %57, %60, %cst_25 {dimension_numbers = #tpu.dot_dimension_numbers<[1], [0], [0], [1], [0, 0, 1, 1], [], []>} : vector<5x32xf32>, vector<32x5xf32>, vector<5x5xf32> -> vector<5x5xf32>
    %cst_26 = arith.constant dense<0xFF800000> : vector<5xf32>
    %62 = vector.multi_reduction <maximumf>, %61, %cst_26 [1] : vector<5x5xf32> to vector<5xf32>
    %63 = vector.shape_cast %62 : vector<5xf32> to vector<5x1xf32>
    %64 = vector.broadcast %63 : vector<5x1xf32> to vector<5x5xf32>
    %65 = arith.subf %61, %64 : vector<5x5xf32>
    %66 = math.exp %65 : vector<5x5xf32>
    %cst_27 = arith.constant dense<0.000000e+00> : vector<5xf32>
    %67 = vector.multi_reduction <add>, %66, %cst_27 [1] : vector<5x5xf32> to vector<5xf32>
    %68 = vector.shape_cast %67 : vector<5xf32> to vector<5x1xf32>
    %69 = vector.broadcast %68 : vector<5x1xf32> to vector<5x5xf32>
    %70 = arith.divf %66, %69 : vector<5x5xf32>
    %cst_28 = arith.constant dense<0.000000e+00> : vector<5x32xf32>
    %71 = tpu.matmul %70, %59, %cst_28 {dimension_numbers = #tpu.dot_dimension_numbers<[1], [0], [0], [1], [0, 0, 1, 1], [], []>} : vector<5x5xf32>, vector<5x32xf32>, vector<5x32xf32> -> vector<5x32xf32>
    %c0_29 = arith.constant 0 : index
    %c32 = arith.constant 32 : index
    %72 = vector.load %arg23[%c0_29, %c32] : memref<5x256xf32, #tpu.memory_space<vmem>>, vector<5x32xf32>
    tpu.vector_store %arg23[%c0_29, %c32], %71 {strides = array<i32>} : memref<5x256xf32, #tpu.memory_space<vmem>>, vector<5x32xf32>,
    %73 = vector.extract_strided_slice %38 {offsets = [0, 64], sizes = [5, 32], strides = [1, 1]} : vector<5x256xf32> to vector<5x32xf32>
    %74 = vector.extract_strided_slice %39 {offsets = [0, 64], sizes = [5, 32], strides = [1, 1]} : vector<5x256xf32> to vector<5x32xf32>
    %75 = vector.extract_strided_slice %40 {offsets = [0, 64], sizes = [5, 32], strides = [1, 1]} : vector<5x256xf32> to vector<5x32xf32>
    %76 = tpu.transpose %74, [1, 0] : vector<5x32xf32> -> vector<32x5xf32>
    %cst_30 = arith.constant dense<0.000000e+00> : vector<5x5xf32>
    %77 = tpu.matmul %73, %76, %cst_30 {dimension_numbers = #tpu.dot_dimension_numbers<[1], [0], [0], [1], [0, 0, 1, 1], [], []>} : vector<5x32xf32>, vector<32x5xf32>, vector<5x5xf32> -> vector<5x5xf32>
    %cst_31 = arith.constant dense<0xFF800000> : vector<5xf32>
    %78 = vector.multi_reduction <maximumf>, %77, %cst_31 [1] : vector<5x5xf32> to vector<5xf32>
    %79 = vector.shape_cast %78 : vector<5xf32> to vector<5x1xf32>
    %80 = vector.broadcast %79 : vector<5x1xf32> to vector<5x5xf32>
    %81 = arith.subf %77, %80 : vector<5x5xf32>
    %82 = math.exp %81 : vector<5x5xf32>
    %cst_32 = arith.constant dense<0.000000e+00> : vector<5xf32>
    %83 = vector.multi_reduction <add>, %82, %cst_32 [1] : vector<5x5xf32> to vector<5xf32>
    %84 = vector.shape_cast %83 : vector<5xf32> to vector<5x1xf32>
    %85 = vector.broadcast %84 : vector<5x1xf32> to vector<5x5xf32>
    %86 = arith.divf %82, %85 : vector<5x5xf32>
    %cst_33 = arith.constant dense<0.000000e+00> : vector<5x32xf32>
    %87 = tpu.matmul %86, %75, %cst_33 {dimension_numbers = #tpu.dot_dimension_numbers<[1], [0], [0], [1], [0, 0, 1, 1], [], []>} : vector<5x5xf32>, vector<5x32xf32>, vector<5x32xf32> -> vector<5x32xf32>
    %c0_34 = arith.constant 0 : index
    %c64 = arith.constant 64 : index
    %88 = vector.load %arg23[%c0_34, %c64] : memref<5x256xf32, #tpu.memory_space<vmem>>, vector<5x32xf32>
    tpu.vector_store %arg23[%c0_34, %c64], %87 {strides = array<i32>} : memref<5x256xf32, #tpu.memory_space<vmem>>, vector<5x32xf32>,
    %89 = vector.extract_strided_slice %38 {offsets = [0, 96], sizes = [5, 32], strides = [1, 1]} : vector<5x256xf32> to vector<5x32xf32>
    %90 = vector.extract_strided_slice %39 {offsets = [0, 96], sizes = [5, 32], strides = [1, 1]} : vector<5x256xf32> to vector<5x32xf32>
    %91 = vector.extract_strided_slice %40 {offsets = [0, 96], sizes = [5, 32], strides = [1, 1]} : vector<5x256xf32> to vector<5x32xf32>
    %92 = tpu.transpose %90, [1, 0] : vector<5x32xf32> -> vector<32x5xf32>
    %cst_35 = arith.constant dense<0.000000e+00> : vector<5x5xf32>
    %93 = tpu.matmul %89, %92, %cst_35 {dimension_numbers = #tpu.dot_dimension_numbers<[1], [0], [0], [1], [0, 0, 1, 1], [], []>} : vector<5x32xf32>, vector<32x5xf32>, vector<5x5xf32> -> vector<5x5xf32>
    %cst_36 = arith.constant dense<0xFF800000> : vector<5xf32>
    %94 = vector.multi_reduction <maximumf>, %93, %cst_36 [1] : vector<5x5xf32> to vector<5xf32>
    %95 = vector.shape_cast %94 : vector<5xf32> to vector<5x1xf32>
    %96 = vector.broadcast %95 : vector<5x1xf32> to vector<5x5xf32>
    %97 = arith.subf %93, %96 : vector<5x5xf32>
    %98 = math.exp %97 : vector<5x5xf32>
    %cst_37 = arith.constant dense<0.000000e+00> : vector<5xf32>
    %99 = vector.multi_reduction <add>, %98, %cst_37 [1] : vector<5x5xf32> to vector<5xf32>
    %100 = vector.shape_cast %99 : vector<5xf32> to vector<5x1xf32>
    %101 = vector.broadcast %100 : vector<5x1xf32> to vector<5x5xf32>
    %102 = arith.divf %98, %101 : vector<5x5xf32>
    %cst_38 = arith.constant dense<0.000000e+00> : vector<5x32xf32>
    %103 = tpu.matmul %102, %91, %cst_38 {dimension_numbers = #tpu.dot_dimension_numbers<[1], [0], [0], [1], [0, 0, 1, 1], [], []>} : vector<5x5xf32>, vector<5x32xf32>, vector<5x32xf32> -> vector<5x32xf32>
    %c0_39 = arith.constant 0 : index
    %c96 = arith.constant 96 : index
    %104 = vector.load %arg23[%c0_39, %c96] : memref<5x256xf32, #tpu.memory_space<vmem>>, vector<5x32xf32>
    tpu.vector_store %arg23[%c0_39, %c96], %103 {strides = array<i32>} : memref<5x256xf32, #tpu.memory_space<vmem>>, vector<5x32xf32>,
    %105 = vector.extract_strided_slice %38 {offsets = [0, 128], sizes = [5, 32], strides = [1, 1]} : vector<5x256xf32> to vector<5x32xf32>
    %106 = vector.extract_strided_slice %39 {offsets = [0, 128], sizes = [5, 32], strides = [1, 1]} : vector<5x256xf32> to vector<5x32xf32>
    %107 = vector.extract_strided_slice %40 {offsets = [0, 128], sizes = [5, 32], strides = [1, 1]} : vector<5x256xf32> to vector<5x32xf32>
    %108 = tpu.transpose %106, [1, 0] : vector<5x32xf32> -> vector<32x5xf32>
    %cst_40 = arith.constant dense<0.000000e+00> : vector<5x5xf32>
    %109 = tpu.matmul %105, %108, %cst_40 {dimension_numbers = #tpu.dot_dimension_numbers<[1], [0], [0], [1], [0, 0, 1, 1], [], []>} : vector<5x32xf32>, vector<32x5xf32>, vector<5x5xf32> -> vector<5x5xf32>
    %cst_41 = arith.constant dense<0xFF800000> : vector<5xf32>
    %110 = vector.multi_reduction <maximumf>, %109, %cst_41 [1] : vector<5x5xf32> to vector<5xf32>
    %111 = vector.shape_cast %110 : vector<5xf32> to vector<5x1xf32>
    %112 = vector.broadcast %111 : vector<5x1xf32> to vector<5x5xf32>
    %113 = arith.subf %109, %112 : vector<5x5xf32>
    %114 = math.exp %113 : vector<5x5xf32>
    %cst_42 = arith.constant dense<0.000000e+00> : vector<5xf32>
    %115 = vector.multi_reduction <add>, %114, %cst_42 [1] : vector<5x5xf32> to vector<5xf32>
    %116 = vector.shape_cast %115 : vector<5xf32> to vector<5x1xf32>
    %117 = vector.broadcast %116 : vector<5x1xf32> to vector<5x5xf32>
    %118 = arith.divf %114, %117 : vector<5x5xf32>
    %cst_43 = arith.constant dense<0.000000e+00> : vector<5x32xf32>
    %119 = tpu.matmul %118, %107, %cst_43 {dimension_numbers = #tpu.dot_dimension_numbers<[1], [0], [0], [1], [0, 0, 1, 1], [], []>} : vector<5x5xf32>, vector<5x32xf32>, vector<5x32xf32> -> vector<5x32xf32>
    %c0_44 = arith.constant 0 : index
    %c128 = arith.constant 128 : index
    %120 = vector.load %arg23[%c0_44, %c128] : memref<5x256xf32, #tpu.memory_space<vmem>>, vector<5x32xf32>
    tpu.vector_store %arg23[%c0_44, %c128], %119 {strides = array<i32>} : memref<5x256xf32, #tpu.memory_space<vmem>>, vector<5x32xf32>,
    %121 = vector.extract_strided_slice %38 {offsets = [0, 160], sizes = [5, 32], strides = [1, 1]} : vector<5x256xf32> to vector<5x32xf32>
    %122 = vector.extract_strided_slice %39 {offsets = [0, 160], sizes = [5, 32], strides = [1, 1]} : vector<5x256xf32> to vector<5x32xf32>
    %123 = vector.extract_strided_slice %40 {offsets = [0, 160], sizes = [5, 32], strides = [1, 1]} : vector<5x256xf32> to vector<5x32xf32>
    %124 = tpu.transpose %122, [1, 0] : vector<5x32xf32> -> vector<32x5xf32>
    %cst_45 = arith.constant dense<0.000000e+00> : vector<5x5xf32>
    %125 = tpu.matmul %121, %124, %cst_45 {dimension_numbers = #tpu.dot_dimension_numbers<[1], [0], [0], [1], [0, 0, 1, 1], [], []>} : vector<5x32xf32>, vector<32x5xf32>, vector<5x5xf32> -> vector<5x5xf32>
    %cst_46 = arith.constant dense<0xFF800000> : vector<5xf32>
    %126 = vector.multi_reduction <maximumf>, %125, %cst_46 [1] : vector<5x5xf32> to vector<5xf32>
    %127 = vector.shape_cast %126 : vector<5xf32> to vector<5x1xf32>
    %128 = vector.broadcast %127 : vector<5x1xf32> to vector<5x5xf32>
    %129 = arith.subf %125, %128 : vector<5x5xf32>
    %130 = math.exp %129 : vector<5x5xf32>
    %cst_47 = arith.constant dense<0.000000e+00> : vector<5xf32>
    %131 = vector.multi_reduction <add>, %130, %cst_47 [1] : vector<5x5xf32> to vector<5xf32>
    %132 = vector.shape_cast %131 : vector<5xf32> to vector<5x1xf32>
    %133 = vector.broadcast %132 : vector<5x1xf32> to vector<5x5xf32>
    %134 = arith.divf %130, %133 : vector<5x5xf32>
    %cst_48 = arith.constant dense<0.000000e+00> : vector<5x32xf32>
    %135 = tpu.matmul %134, %123, %cst_48 {dimension_numbers = #tpu.dot_dimension_numbers<[1], [0], [0], [1], [0, 0, 1, 1], [], []>} : vector<5x5xf32>, vector<5x32xf32>, vector<5x32xf32> -> vector<5x32xf32>
    %c0_49 = arith.constant 0 : index
    %c160 = arith.constant 160 : index
    %136 = vector.load %arg23[%c0_49, %c160] : memref<5x256xf32, #tpu.memory_space<vmem>>, vector<5x32xf32>
    tpu.vector_store %arg23[%c0_49, %c160], %135 {strides = array<i32>} : memref<5x256xf32, #tpu.memory_space<vmem>>, vector<5x32xf32>,
    %137 = vector.extract_strided_slice %38 {offsets = [0, 192], sizes = [5, 32], strides = [1, 1]} : vector<5x256xf32> to vector<5x32xf32>
    %138 = vector.extract_strided_slice %39 {offsets = [0, 192], sizes = [5, 32], strides = [1, 1]} : vector<5x256xf32> to vector<5x32xf32>
    %139 = vector.extract_strided_slice %40 {offsets = [0, 192], sizes = [5, 32], strides = [1, 1]} : vector<5x256xf32> to vector<5x32xf32>
    %140 = tpu.transpose %138, [1, 0] : vector<5x32xf32> -> vector<32x5xf32>
    %cst_50 = arith.constant dense<0.000000e+00> : vector<5x5xf32>
    %141 = tpu.matmul %137, %140, %cst_50 {dimension_numbers = #tpu.dot_dimension_numbers<[1], [0], [0], [1], [0, 0, 1, 1], [], []>} : vector<5x32xf32>, vector<32x5xf32>, vector<5x5xf32> -> vector<5x5xf32>
    %cst_51 = arith.constant dense<0xFF800000> : vector<5xf32>
    %142 = vector.multi_reduction <maximumf>, %141, %cst_51 [1] : vector<5x5xf32> to vector<5xf32>
    %143 = vector.shape_cast %142 : vector<5xf32> to vector<5x1xf32>
    %144 = vector.broadcast %143 : vector<5x1xf32> to vector<5x5xf32>
    %145 = arith.subf %141, %144 : vector<5x5xf32>
    %146 = math.exp %145 : vector<5x5xf32>
    %cst_52 = arith.constant dense<0.000000e+00> : vector<5xf32>
    %147 = vector.multi_reduction <add>, %146, %cst_52 [1] : vector<5x5xf32> to vector<5xf32>
    %148 = vector.shape_cast %147 : vector<5xf32> to vector<5x1xf32>
    %149 = vector.broadcast %148 : vector<5x1xf32> to vector<5x5xf32>
    %150 = arith.divf %146, %149 : vector<5x5xf32>
    %cst_53 = arith.constant dense<0.000000e+00> : vector<5x32xf32>
    %151 = tpu.matmul %150, %139, %cst_53 {dimension_numbers = #tpu.dot_dimension_numbers<[1], [0], [0], [1], [0, 0, 1, 1], [], []>} : vector<5x5xf32>, vector<5x32xf32>, vector<5x32xf32> -> vector<5x32xf32>
    %c0_54 = arith.constant 0 : index
    %c192 = arith.constant 192 : index
    %152 = vector.load %arg23[%c0_54, %c192] : memref<5x256xf32, #tpu.memory_space<vmem>>, vector<5x32xf32>
    tpu.vector_store %arg23[%c0_54, %c192], %151 {strides = array<i32>} : memref<5x256xf32, #tpu.memory_space<vmem>>, vector<5x32xf32>,
    %153 = vector.extract_strided_slice %38 {offsets = [0, 224], sizes = [5, 32], strides = [1, 1]} : vector<5x256xf32> to vector<5x32xf32>
    %154 = vector.extract_strided_slice %39 {offsets = [0, 224], sizes = [5, 32], strides = [1, 1]} : vector<5x256xf32> to vector<5x32xf32>
    %155 = vector.extract_strided_slice %40 {offsets = [0, 224], sizes = [5, 32], strides = [1, 1]} : vector<5x256xf32> to vector<5x32xf32>
    %156 = tpu.transpose %154, [1, 0] : vector<5x32xf32> -> vector<32x5xf32>
    %cst_55 = arith.constant dense<0.000000e+00> : vector<5x5xf32>
    %157 = tpu.matmul %153, %156, %cst_55 {dimension_numbers = #tpu.dot_dimension_numbers<[1], [0], [0], [1], [0, 0, 1, 1], [], []>} : vector<5x32xf32>, vector<32x5xf32>, vector<5x5xf32> -> vector<5x5xf32>
    %cst_56 = arith.constant dense<0xFF800000> : vector<5xf32>
    %158 = vector.multi_reduction <maximumf>, %157, %cst_56 [1] : vector<5x5xf32> to vector<5xf32>
    %159 = vector.shape_cast %158 : vector<5xf32> to vector<5x1xf32>
    %160 = vector.broadcast %159 : vector<5x1xf32> to vector<5x5xf32>
    %161 = arith.subf %157, %160 : vector<5x5xf32>
    %162 = math.exp %161 : vector<5x5xf32>
    %cst_57 = arith.constant dense<0.000000e+00> : vector<5xf32>
    %163 = vector.multi_reduction <add>, %162, %cst_57 [1] : vector<5x5xf32> to vector<5xf32>
    %164 = vector.shape_cast %163 : vector<5xf32> to vector<5x1xf32>
    %165 = vector.broadcast %164 : vector<5x1xf32> to vector<5x5xf32>
    %166 = arith.divf %162, %165 : vector<5x5xf32>
    %cst_58 = arith.constant dense<0.000000e+00> : vector<5x32xf32>
    %167 = tpu.matmul %166, %155, %cst_58 {dimension_numbers = #tpu.dot_dimension_numbers<[1], [0], [0], [1], [0, 0, 1, 1], [], []>} : vector<5x5xf32>, vector<5x32xf32>, vector<5x32xf32> -> vector<5x32xf32>
    %c0_59 = arith.constant 0 : index
    %c224 = arith.constant 224 : index
    %168 = vector.load %arg23[%c0_59, %c224] : memref<5x256xf32, #tpu.memory_space<vmem>>, vector<5x32xf32>
    tpu.vector_store %arg23[%c0_59, %c224], %167 {strides = array<i32>} : memref<5x256xf32, #tpu.memory_space<vmem>>, vector<5x32xf32>,
    %c0_60 = arith.constant 0 : index
    %c0_61 = arith.constant 0 : index
    %169 = vector.load %arg23[%c0_60, %c0_61] : memref<5x256xf32, #tpu.memory_space<vmem>>, vector<5x256xf32>
    %170 = arith.truncf %169 : vector<5x256xf32> to vector<5x256xbf16>
    %c0_62 = arith.constant 0 : index
    %c0_63 = arith.constant 0 : index
    %c0_64 = arith.constant 0 : index
    %171 = vector.load %arg9[%c0_62, %c0_63, %c0_64] : memref<1x256x256xbf16, #tpu.memory_space<vmem>>, vector<1x256x256xbf16>
    %172 = vector.shape_cast %171 : vector<1x256x256xbf16> to vector<256x256xbf16>
    %cst_65 = arith.constant dense<0.000000e+00> : vector<5x256xf32>
    %173 = tpu.matmul %170, %172, %cst_65 {dimension_numbers = #tpu.dot_dimension_numbers<[1], [0], [0], [1], [0, 0, 1, 1], [], []>} : vector<5x256xbf16>, vector<256x256xbf16>, vector<5x256xf32> -> vector<5x256xf32>
    %c0_66 = arith.constant 0 : index
    %c0_67 = arith.constant 0 : index
    %c0_68 = arith.constant 0 : index
    %174 = vector.load %arg10[%c0_66, %c0_67, %c0_68] : memref<1x1x256xf32, #tpu.memory_space<vmem>>, vector<1x1x256xf32>
    %175 = vector.shape_cast %174 : vector<1x1x256xf32> to vector<1x256xf32>
    %176 = vector.broadcast %175 : vector<1x256xf32> to vector<5x256xf32>
    %177 = arith.addf %173, %176 : vector<5x256xf32>
    %178 = arith.addf %3, %177 : vector<5x256xf32>
    %c0_69 = arith.constant 0 : index
    %c0_70 = arith.constant 0 : index
    %c0_71 = arith.constant 0 : index
    %179 = vector.load %arg11[%c0_69, %c0_70, %c0_71] : memref<1x1x256xf32, #tpu.memory_space<vmem>>, vector<1x1x256xf32>
    %180 = vector.shape_cast %179 : vector<1x1x256xf32> to vector<1x256xf32>
    %c0_72 = arith.constant 0 : index
    %c0_73 = arith.constant 0 : index
    %c0_74 = arith.constant 0 : index
    %181 = vector.load %arg12[%c0_72, %c0_73, %c0_74] : memref<1x1x256xf32, #tpu.memory_space<vmem>>, vector<1x1x256xf32>
    %182 = vector.shape_cast %181 : vector<1x1x256xf32> to vector<1x256xf32>
    %cst_75 = arith.constant dense<0.000000e+00> : vector<5xf32>
    %183 = vector.multi_reduction <add>, %178, %cst_75 [1] : vector<5x256xf32> to vector<5xf32>
    %184 = vector.shape_cast %183 : vector<5xf32> to vector<5x1xf32>
    %cst_76 = arith.constant 2.560000e+02 : f32
    %185 = vector.broadcast %cst_76 : f32 to vector<5x1xf32>
    %186 = arith.divf %184, %185 : vector<5x1xf32>
    %187 = vector.broadcast %186 : vector<5x1xf32> to vector<5x256xf32>
    %188 = arith.subf %178, %187 : vector<5x256xf32>
    %189 = arith.mulf %188, %188 : vector<5x256xf32>
    %cst_77 = arith.constant dense<0.000000e+00> : vector<5xf32>
    %190 = vector.multi_reduction <add>, %189, %cst_77 [1] : vector<5x256xf32> to vector<5xf32>
    %191 = vector.shape_cast %190 : vector<5xf32> to vector<5x1xf32>
    %cst_78 = arith.constant 2.560000e+02 : f32
    %192 = vector.broadcast %cst_78 : f32 to vector<5x1xf32>
    %193 = arith.divf %191, %192 : vector<5x1xf32>
    %194 = vector.broadcast %186 : vector<5x1xf32> to vector<5x256xf32>
    %195 = arith.subf %178, %194 : vector<5x256xf32>
    %cst_79 = arith.constant 9.99999996E-13 : f32
    %196 = vector.broadcast %cst_79 : f32 to vector<5x1xf32>
    %197 = arith.addf %193, %196 : vector<5x1xf32>
    %198 = math.rsqrt %197 : vector<5x1xf32>
    %199 = vector.broadcast %198 : vector<5x1xf32> to vector<5x256xf32>
    %200 = arith.mulf %195, %199 : vector<5x256xf32>
    %201 = vector.broadcast %180 : vector<1x256xf32> to vector<5x256xf32>
    %202 = arith.mulf %200, %201 : vector<5x256xf32>
    %203 = vector.broadcast %182 : vector<1x256xf32> to vector<5x256xf32>
    %204 = arith.addf %202, %203 : vector<5x256xf32>
    %205 = arith.truncf %204 : vector<5x256xf32> to vector<5x256xbf16>
    %c0_80 = arith.constant 0 : index
    %c0_81 = arith.constant 0 : index
    %c0_82 = arith.constant 0 : index
    %206 = vector.load %arg13[%c0_80, %c0_81, %c0_82] : memref<1x256x512xbf16, #tpu.memory_space<vmem>>, vector<1x256x512xbf16>
    %207 = vector.shape_cast %206 : vector<1x256x512xbf16> to vector<256x512xbf16>
    %cst_83 = arith.constant dense<0.000000e+00> : vector<5x512xf32>
    %208 = tpu.matmul %205, %207, %cst_83 {dimension_numbers = #tpu.dot_dimension_numbers<[1], [0], [0], [1], [0, 0, 1, 1], [], []>} : vector<5x256xbf16>, vector<256x512xbf16>, vector<5x512xf32> -> vector<5x512xf32>
    %c0_84 = arith.constant 0 : index
    %c0_85 = arith.constant 0 : index
    %c0_86 = arith.constant 0 : index
    %209 = vector.load %arg14[%c0_84, %c0_85, %c0_86] : memref<1x1x512xf32, #tpu.memory_space<vmem>>, vector<1x1x512xf32>
    %210 = vector.shape_cast %209 : vector<1x1x512xf32> to vector<1x512xf32>
    %211 = vector.broadcast %210 : vector<1x512xf32> to vector<5x512xf32>
    %212 = arith.addf %208, %211 : vector<5x512xf32>
    %cst_87 = arith.constant 5.000000e-01 : f32
    %213 = vector.broadcast %cst_87 : f32 to vector<5x512xf32>
    %214 = arith.mulf %213, %212 : vector<5x512xf32>
    %cst_88 = arith.constant 0.707106769 : f32
    %215 = vector.broadcast %cst_88 : f32 to vector<5x512xf32>
    %216 = arith.mulf %212, %215 : vector<5x512xf32>
    %cst_89 = arith.constant 0.000000e+00 : f32
    %217 = vector.broadcast %cst_89 : f32 to vector<5x512xf32>
    %218 = arith.cmpf oge, %216, %217 : vector<5x512xf32>
    %cst_90 = arith.constant 1.000000e+00 : f32
    %cst_91 = arith.constant -1.000000e+00 : f32
    %219 = vector.broadcast %cst_90 : f32 to vector<5x512xf32>
    %220 = vector.broadcast %cst_91 : f32 to vector<5x512xf32>
    %221 = arith.select %218, %219, %220 : vector<5x512xi1>, vector<5x512xf32>
    %222 = math.absf %216 : vector<5x512xf32>
    %cst_92 = arith.constant 0.327591091 : f32
    %223 = vector.broadcast %cst_92 : f32 to vector<5x512xf32>
    %224 = arith.mulf %223, %222 : vector<5x512xf32>
    %cst_93 = arith.constant 1.000000e+00 : f32
    %225 = vector.broadcast %cst_93 : f32 to vector<5x512xf32>
    %226 = arith.addf %225, %224 : vector<5x512xf32>
    %cst_94 = arith.constant 1.000000e+00 : f32
    %227 = vector.broadcast %cst_94 : f32 to vector<5x512xf32>
    %228 = arith.divf %227, %226 : vector<5x512xf32>
    %cst_95 = arith.constant 1.06140542 : f32
    %229 = vector.broadcast %cst_95 : f32 to vector<5x512xf32>
    %230 = arith.mulf %229, %228 : vector<5x512xf32>
    %cst_96 = arith.constant -1.45315206 : f32
    %231 = vector.broadcast %cst_96 : f32 to vector<5x512xf32>
    %232 = arith.addf %230, %231 : vector<5x512xf32>
    %233 = arith.mulf %232, %228 : vector<5x512xf32>
    %cst_97 = arith.constant 1.42141378 : f32
    %234 = vector.broadcast %cst_97 : f32 to vector<5x512xf32>
    %235 = arith.addf %233, %234 : vector<5x512xf32>
    %236 = arith.mulf %235, %228 : vector<5x512xf32>
    %cst_98 = arith.constant -0.284496725 : f32
    %237 = vector.broadcast %cst_98 : f32 to vector<5x512xf32>
    %238 = arith.addf %236, %237 : vector<5x512xf32>
    %239 = arith.mulf %238, %228 : vector<5x512xf32>
    %cst_99 = arith.constant 0.254829586 : f32
    %240 = vector.broadcast %cst_99 : f32 to vector<5x512xf32>
    %241 = arith.addf %239, %240 : vector<5x512xf32>
    %242 = arith.mulf %241, %228 : vector<5x512xf32>
    %cst_100 = arith.constant 0.000000e+00 : f32
    %243 = vector.broadcast %cst_100 : f32 to vector<5x512xf32>
    %244 = arith.subf %243, %222 : vector<5x512xf32>
    %245 = arith.mulf %244, %222 : vector<5x512xf32>
    %246 = math.exp %245 : vector<5x512xf32>
    %247 = arith.mulf %242, %246 : vector<5x512xf32>
    %cst_101 = arith.constant 1.000000e+00 : f32
    %248 = vector.broadcast %cst_101 : f32 to vector<5x512xf32>
    %249 = arith.subf %248, %247 : vector<5x512xf32>
    %250 = arith.mulf %221, %249 : vector<5x512xf32>
    %cst_102 = arith.constant 1.000000e+00 : f32
    %251 = vector.broadcast %cst_102 : f32 to vector<5x512xf32>
    %252 = arith.addf %251, %250 : vector<5x512xf32>
    %253 = arith.mulf %214, %252 : vector<5x512xf32>
    %254 = arith.truncf %253 : vector<5x512xf32> to vector<5x512xbf16>
    %c0_103 = arith.constant 0 : index
    %c0_104 = arith.constant 0 : index
    %c0_105 = arith.constant 0 : index
    %255 = vector.load %arg15[%c0_103, %c0_104, %c0_105] : memref<1x512x256xbf16, #tpu.memory_space<vmem>>, vector<1x512x256xbf16>
    %256 = vector.shape_cast %255 : vector<1x512x256xbf16> to vector<512x256xbf16>
    %cst_106 = arith.constant dense<0.000000e+00> : vector<5x256xf32>
    %257 = tpu.matmul %254, %256, %cst_106 {dimension_numbers = #tpu.dot_dimension_numbers<[1], [0], [0], [1], [0, 0, 1, 1], [], []>} : vector<5x512xbf16>, vector<512x256xbf16>, vector<5x256xf32> -> vector<5x256xf32>
    %c0_107 = arith.constant 0 : index
    %c0_108 = arith.constant 0 : index
    %c0_109 = arith.constant 0 : index
    %258 = vector.load %arg16[%c0_107, %c0_108, %c0_109] : memref<1x1x256xf32, #tpu.memory_space<vmem>>, vector<1x1x256xf32>
    %259 = vector.shape_cast %258 : vector<1x1x256xf32> to vector<1x256xf32>
    %260 = vector.broadcast %259 : vector<1x256xf32> to vector<5x256xf32>
    %261 = arith.addf %257, %260 : vector<5x256xf32>
    %262 = arith.addf %178, %261 : vector<5x256xf32>
    %c0_110 = arith.constant 0 : index
    %c0_111 = arith.constant 0 : index
    %263 = vector.load %arg22[%c0_110, %c0_111] : memref<5x256xf32, #tpu.memory_space<vmem>>, vector<5x256xf32>
    tpu.vector_store %arg22[%c0_110, %c0_111], %262 {strides = array<i32>} : memref<5x256xf32, #tpu.memory_space<vmem>>, vector<5x256xf32>,
    %c7_i32 = arith.constant 7 : i32
    %264 = arith.cmpi eq, %arg1, %c7_i32 : i32
    %265 = arith.extui %264 : i1 to i32
    %c0_i32_112 = arith.constant 0 : i32
    %266 = arith.cmpi ne, %265, %c0_i32_112 : i32
    scf.if %266 {
      %c0_113 = arith.constant 0 : index
      %c0_114 = arith.constant 0 : index
      %267 = vector.load %arg17[%c0_113, %c0_114] : memref<1x256xf32, #tpu.memory_space<vmem>>, vector<1x256xf32>
      %c0_115 = arith.constant 0 : index
      %c0_116 = arith.constant 0 : index
      %268 = vector.load %arg18[%c0_115, %c0_116] : memref<1x256xf32, #tpu.memory_space<vmem>>, vector<1x256xf32>
      %cst_117 = arith.constant dense<0.000000e+00> : vector<5xf32>
      %269 = vector.multi_reduction <add>, %262, %cst_117 [1] : vector<5x256xf32> to vector<5xf32>
      %270 = vector.shape_cast %269 : vector<5xf32> to vector<5x1xf32>
      %cst_118 = arith.constant 2.560000e+02 : f32
      %271 = vector.broadcast %cst_118 : f32 to vector<5x1xf32>
      %272 = arith.divf %270, %271 : vector<5x1xf32>
      %273 = vector.broadcast %272 : vector<5x1xf32> to vector<5x256xf32>
      %274 = arith.subf %262, %273 : vector<5x256xf32>
      %275 = arith.mulf %274, %274 : vector<5x256xf32>
      %cst_119 = arith.constant dense<0.000000e+00> : vector<5xf32>
      %276 = vector.multi_reduction <add>, %275, %cst_119 [1] : vector<5x256xf32> to vector<5xf32>
      %277 = vector.shape_cast %276 : vector<5xf32> to vector<5x1xf32>
      %cst_120 = arith.constant 2.560000e+02 : f32
      %278 = vector.broadcast %cst_120 : f32 to vector<5x1xf32>
      %279 = arith.divf %277, %278 : vector<5x1xf32>
      %280 = vector.broadcast %272 : vector<5x1xf32> to vector<5x256xf32>
      %281 = arith.subf %262, %280 : vector<5x256xf32>
      %cst_121 = arith.constant 9.99999996E-13 : f32
      %282 = vector.broadcast %cst_121 : f32 to vector<5x1xf32>
      %283 = arith.addf %279, %282 : vector<5x1xf32>
      %284 = math.rsqrt %283 : vector<5x1xf32>
      %285 = vector.broadcast %284 : vector<5x1xf32> to vector<5x256xf32>
      %286 = arith.mulf %281, %285 : vector<5x256xf32>
      %287 = vector.broadcast %267 : vector<1x256xf32> to vector<5x256xf32>
      %288 = arith.mulf %286, %287 : vector<5x256xf32>
      %289 = vector.broadcast %268 : vector<1x256xf32> to vector<5x256xf32>
      %290 = arith.addf %288, %289 : vector<5x256xf32>
      %291 = vector.extract_strided_slice %290 {offsets = [0, 0], sizes = [1, 256], strides = [1, 1]} : vector<5x256xf32> to vector<1x256xf32>
      %292 = arith.truncf %291 : vector<1x256xf32> to vector<1x256xbf16>
      %c0_122 = arith.constant 0 : index
      %c0_123 = arith.constant 0 : index
      %293 = vector.load %arg19[%c0_122, %c0_123] : memref<256x128xbf16, #tpu.memory_space<vmem>>, vector<256x128xbf16>
      %cst_124 = arith.constant dense<0.000000e+00> : vector<1x128xf32>
      %294 = tpu.matmul %292, %293, %cst_124 {dimension_numbers = #tpu.dot_dimension_numbers<[1], [0], [0], [1], [0, 0, 1, 1], [], []>} : vector<1x256xbf16>, vector<256x128xbf16>, vector<1x128xf32> -> vector<1x128xf32>
      %c0_125 = arith.constant 0 : index
      %c0_126 = arith.constant 0 : index
      %295 = vector.load %arg20[%c0_125, %c0_126] : memref<1x128xf32, #tpu.memory_space<vmem>>, vector<1x128xf32>
      %296 = arith.addf %294, %295 : vector<1x128xf32>
      %c0_127 = arith.constant 0 : index
      %c0_128 = arith.constant 0 : index
      %c0_129 = arith.constant 0 : index
      %297 = vector.load %arg21[%c0_127, %c0_128, %c0_129] : memref<1x1x128xf32, #tpu.memory_space<vmem>>, vector<1x1x128xf32>
      %298 = vector.shape_cast %297 : vector<1x1x128xf32> to vector<1x128xf32>
      %299 = vector.shape_cast %296 : vector<1x128xf32> to vector<1x1x128xf32>
      tpu.vector_store %arg21[%c0_127, %c0_128, %c0_129], %299 {strides = array<i32>} : memref<1x1x128xf32, #tpu.memory_space<vmem>>, vector<1x1x128xf32>,
    } else {
    }
    return
  }
  func.func @transform_0(%arg0: i32, %arg1: i32) -> (i32, i32, i32) {
    %c0_i32 = arith.constant 0 : i32
    %c0_i32_0 = arith.constant 0 : i32
    %c0_i32_1 = arith.constant 0 : i32
    return %arg0, %c0_i32, %c0_i32_0 : i32, i32, i32
  }
  func.func @transform_1(%arg0: i32, %arg1: i32) -> (i32, i32) {
    %c0_i32 = arith.constant 0 : i32
    %c0_i32_0 = arith.constant 0 : i32
    %c0_i32_1 = arith.constant 0 : i32
    return %c0_i32, %c0_i32_0 : i32, i32
  }
  func.func @transform_2(%arg0: i32, %arg1: i32) -> (i32, i32) {
    %c0_i32 = arith.constant 0 : i32
    %c0_i32_0 = arith.constant 0 : i32
    %c0_i32_1 = arith.constant 0 : i32
    return %c0_i32, %c0_i32_0 : i32, i32
  }
  func.func @transform_3(%arg0: i32, %arg1: i32) -> (i32, i32, i32) {
    %c0_i32 = arith.constant 0 : i32
    %c0_i32_0 = arith.constant 0 : i32
    %c0_i32_1 = arith.constant 0 : i32
    return %arg1, %c0_i32, %c0_i32_0 : i32, i32, i32
  }
  func.func @transform_4(%arg0: i32, %arg1: i32) -> (i32, i32, i32) {
    %c0_i32 = arith.constant 0 : i32
    %c0_i32_0 = arith.constant 0 : i32
    %c0_i32_1 = arith.constant 0 : i32
    return %arg1, %c0_i32, %c0_i32_0 : i32, i32, i32
  }
  func.func @transform_5(%arg0: i32, %arg1: i32) -> (i32, i32, i32) {
    %c0_i32 = arith.constant 0 : i32
    %c0_i32_0 = arith.constant 0 : i32
    %c0_i32_1 = arith.constant 0 : i32
    return %arg1, %c0_i32, %c0_i32_0 : i32, i32, i32
  }
  func.func @transform_6(%arg0: i32, %arg1: i32) -> (i32, i32, i32) {
    %c0_i32 = arith.constant 0 : i32
    %c0_i32_0 = arith.constant 0 : i32
    %c0_i32_1 = arith.constant 0 : i32
    return %arg1, %c0_i32, %c0_i32_0 : i32, i32, i32
  }
  func.func @transform_7(%arg0: i32, %arg1: i32) -> (i32, i32, i32) {
    %c0_i32 = arith.constant 0 : i32
    %c0_i32_0 = arith.constant 0 : i32
    %c0_i32_1 = arith.constant 0 : i32
    return %arg1, %c0_i32, %c0_i32_0 : i32, i32, i32
  }
  func.func @transform_8(%arg0: i32, %arg1: i32) -> (i32, i32, i32) {
    %c0_i32 = arith.constant 0 : i32
    %c0_i32_0 = arith.constant 0 : i32
    %c0_i32_1 = arith.constant 0 : i32
    return %arg1, %c0_i32, %c0_i32_0 : i32, i32, i32
  }
  func.func @transform_9(%arg0: i32, %arg1: i32) -> (i32, i32, i32) {
    %c0_i32 = arith.constant 0 : i32
    %c0_i32_0 = arith.constant 0 : i32
    %c0_i32_1 = arith.constant 0 : i32
    return %arg1, %c0_i32, %c0_i32_0 : i32, i32, i32
  }
  func.func @transform_10(%arg0: i32, %arg1: i32) -> (i32, i32, i32) {
    %c0_i32 = arith.constant 0 : i32
    %c0_i32_0 = arith.constant 0 : i32
    %c0_i32_1 = arith.constant 0 : i32
    return %arg1, %c0_i32, %c0_i32_0 : i32, i32, i32
  }
  func.func @transform_11(%arg0: i32, %arg1: i32) -> (i32, i32, i32) {
    %c0_i32 = arith.constant 0 : i32
    %c0_i32_0 = arith.constant 0 : i32
    %c0_i32_1 = arith.constant 0 : i32
    return %arg1, %c0_i32, %c0_i32_0 : i32, i32, i32
  }
  func.func @transform_12(%arg0: i32, %arg1: i32) -> (i32, i32, i32) {
    %c0_i32 = arith.constant 0 : i32
    %c0_i32_0 = arith.constant 0 : i32
    %c0_i32_1 = arith.constant 0 : i32
    return %arg1, %c0_i32, %c0_i32_0 : i32, i32, i32
  }
  func.func @transform_13(%arg0: i32, %arg1: i32) -> (i32, i32, i32) {
    %c0_i32 = arith.constant 0 : i32
    %c0_i32_0 = arith.constant 0 : i32
    %c0_i32_1 = arith.constant 0 : i32
    return %arg1, %c0_i32, %c0_i32_0 : i32, i32, i32
  }
  func.func @transform_14(%arg0: i32, %arg1: i32) -> (i32, i32, i32) {
    %c0_i32 = arith.constant 0 : i32
    %c0_i32_0 = arith.constant 0 : i32
    %c0_i32_1 = arith.constant 0 : i32
    return %arg1, %c0_i32, %c0_i32_0 : i32, i32, i32
  }
  func.func @transform_15(%arg0: i32, %arg1: i32) -> (i32, i32) {
    %c0_i32 = arith.constant 0 : i32
    %c0_i32_0 = arith.constant 0 : i32
    %c0_i32_1 = arith.constant 0 : i32
    return %c0_i32, %c0_i32_0 : i32, i32
  }
  func.func @transform_16(%arg0: i32, %arg1: i32) -> (i32, i32) {
    %c0_i32 = arith.constant 0 : i32
    %c0_i32_0 = arith.constant 0 : i32
    %c0_i32_1 = arith.constant 0 : i32
    return %c0_i32, %c0_i32_0 : i32, i32
  }
  func.func @transform_17(%arg0: i32, %arg1: i32) -> (i32, i32) {
    %c0_i32 = arith.constant 0 : i32
    %c0_i32_0 = arith.constant 0 : i32
    %c0_i32_1 = arith.constant 0 : i32
    return %c0_i32, %c0_i32_0 : i32, i32
  }
  func.func @transform_18(%arg0: i32, %arg1: i32) -> (i32, i32) {
    %c0_i32 = arith.constant 0 : i32
    %c0_i32_0 = arith.constant 0 : i32
    %c0_i32_1 = arith.constant 0 : i32
    return %c0_i32, %c0_i32_0 : i32, i32
  }
  func.func @transform_19(%arg0: i32, %arg1: i32) -> (i32, i32, i32) {
    %c0_i32 = arith.constant 0 : i32
    %c0_i32_0 = arith.constant 0 : i32
    %c0_i32_1 = arith.constant 0 : i32
    return %arg0, %c0_i32, %c0_i32_0 : i32, i32, i32
  }
}

</mosaic_0001>

<llo_original>
// kernel: vit_forward.1
$region0: #{vit_forward.1}
  #allocation0 [shape = 'u32[]', space=smem, size = 0x4, offset = 0x4, fixed_abs, tag = 'smem constant byte address 0x4 - core index']
  #allocation1 [shape = 'u32[144,128]{1,0:T(1,128)}', space=vmem, size = 0x12000, scoped, tag = 'internal scratch']
  #allocation2 [shape = 'f32[5,256]{1,0:T(8,128)}', space=vmem, size = 0x2000, scoped, tag = 'scratch operand']
  #allocation3 [shape = 'f32[5,256]{1,0:T(8,128)}', space=vmem, size = 0x2000, scoped, tag = 'scratch operand']
  %s0 = inlined_call_operand.vmem [shape: f32[2,5,256], index: 0, kind: input, shape index: {}]
  %s1 = inlined_call_operand.hbm [shape: bf16[256,256], index: 1, kind: input, shape index: {}]
  %s2 = inlined_call_operand.hbm [shape: f32[5,256], index: 2, kind: input, shape index: {}]
  %s3 = inlined_call_operand.hbm [shape: f32[8,1,256], index: 3, kind: input, shape index: {}]
  %s4 = inlined_call_operand.hbm [shape: f32[8,1,256], index: 4, kind: input, shape index: {}]
  %s5 = inlined_call_operand.hbm [shape: bf16[8,256,768], index: 5, kind: input, shape index: {}]
  %s6 = inlined_call_operand.hbm [shape: f32[8,1,768], index: 6, kind: input, shape index: {}]
  %s7 = inlined_call_operand.hbm [shape: bf16[8,256,256], index: 7, kind: input, shape index: {}]
  %s8 = inlined_call_operand.hbm [shape: f32[8,1,256], index: 8, kind: input, shape index: {}]
  %s9 = inlined_call_operand.hbm [shape: f32[8,1,256], index: 9, kind: input, shape index: {}]
  %s10 = inlined_call_operand.hbm [shape: f32[8,1,256], index: 10, kind: input, shape index: {}]
  %s11 = inlined_call_operand.hbm [shape: bf16[8,256,512], index: 11, kind: input, shape index: {}]
  %s12 = inlined_call_operand.hbm [shape: f32[8,1,512], index: 12, kind: input, shape index: {}]
  %s13 = inlined_call_operand.hbm [shape: bf16[8,512,256], index: 13, kind: input, shape index: {}]
  %s14 = inlined_call_operand.hbm [shape: f32[8,1,256], index: 14, kind: input, shape index: {}]
  %s15 = inlined_call_operand.hbm [shape: f32[1,256], index: 15, kind: input, shape index: {}]
  %s16 = inlined_call_operand.hbm [shape: f32[1,256], index: 16, kind: input, shape index: {}]
  %s17 = inlined_call_operand.hbm [shape: bf16[256,128], index: 17, kind: input, shape index: {}]
  %s18 = inlined_call_operand.hbm [shape: f32[1,128], index: 18, kind: input, shape index: {}]
  %s19 = inlined_call_operand.hbm [shape: f32[2,1,128], index: 19, kind: output, shape index: {}]
  %s20 = sld [smem:[#allocation0]]
  $region189: #{vit_forward.1} parent=0
    _
  %s22 = ssub.s32 1, %s20
  %s23 = scalar_select 0, %s22, %s20
  $region1: #{vit_forward.1} parent=0
    #allocation4 [shape = 'u8[131072]{0}', space=vmem, size = 0x20000, scoped, tag = 'input window, operand 1, single buffered']
    #allocation5 [shape = 's32[2]{0}', space=sflag, size = 0x8, scoped, tag = 'scoped memory for vit_forward.1']
    #allocation6 [shape = 's32[2]{0}', space=sflag, size = 0x8, scoped, tag = 'scoped memory for vit_forward.1']
    #allocation7 [shape = 'u8[8192]{0}', space=vmem, size = 0x2000, scoped, tag = 'input window, operand 2, single buffered']
    #allocation8 [shape = 's32[1]{0}', space=sflag, size = 0x4, scoped, tag = 'scoped memory for vit_forward.1']
    #allocation9 [shape = 'u8[2048]{0}', space=vmem, size = 0x800, scoped, tag = 'input window, operand 3']
    #allocation10 [shape = 'u8[2048]{0}', space=vmem, size = 0x800, scoped, tag = 'input window, operand 4']
    #allocation11 [shape = 'u8[786432]{0}', space=vmem, size = 0xc0000, scoped, tag = 'input window, operand 5']
    #allocation12 [shape = 'u8[6144]{0}', space=vmem, size = 0x1800, scoped, tag = 'input window, operand 6']
    #allocation13 [shape = 'u8[262144]{0}', space=vmem, size = 0x40000, scoped, tag = 'input window, operand 7']
    #allocation14 [shape = 'u8[2048]{0}', space=vmem, size = 0x800, scoped, tag = 'input window, operand 8']
    #allocation15 [shape = 'u8[2048]{0}', space=vmem, size = 0x800, scoped, tag = 'input window, operand 9']
    #allocation16 [shape = 'u8[2048]{0}', space=vmem, size = 0x800, scoped, tag = 'input window, operand 10']
    #allocation17 [shape = 'u8[524288]{0}', space=vmem, size = 0x80000, scoped, tag = 'input window, operand 11']
    #allocation18 [shape = 'u8[4096]{0}', space=vmem, size = 0x1000, scoped, tag = 'input window, operand 12']
    #allocation19 [shape = 'u8[524288]{0}', space=vmem, size = 0x80000, scoped, tag = 'input window, operand 13']
    #allocation20 [shape = 'u8[2048]{0}', space=vmem, size = 0x800, scoped, tag = 'input window, operand 14']
    #allocation21 [shape = 'u8[1024]{0}', space=vmem, size = 0x400, scoped, tag = 'input window, operand 15, single buffered']
    #allocation22 [shape = 'u8[1024]{0}', space=vmem, size = 0x400, scoped, tag = 'input window, operand 16, single buffered']
    #allocation23 [shape = 's32[1]{0}', space=sflag, size = 0x4, scoped, tag = 'scoped memory for vit_forward.1']
    #allocation24 [shape = 'u8[65536]{0}', space=vmem, size = 0x10000, scoped, tag = 'input window, operand 17, single buffered']
    #allocation25 [shape = 'u8[512]{0}', space=vmem, size = 0x400, scoped, tag = 'input window, operand 18, single buffered']
    #allocation26 [shape = 's32[1]{0}', space=sflag, size = 0x4, scoped, tag = 'scoped memory for vit_forward.1']
    #allocation27 [shape = 'u8[1024]{0}', space=vmem, size = 0x400, scoped, tag = 'output window, operand 0']
    %24 = vsyncpa [#allocation5], 0
    %25 = vsyncpa [#allocation8], 0
    %26 = vsyncpa [#allocation23], 0
    %27 = vsyncpa [#allocation26], 0
    %28 = vsyncpa [#allocation6], 0
    %s29 = scalar_lea.sflag [#allocation6], 1
    %30 = vsyncpa %s29, 0
    loop: start=0, step=1, limit=18
    $region2: #{vit_forward.1} parent=1 // loop_pre_header
      _
    $region3: #{vit_forward.1} parent=1 // loop_header
      %s32 = sphi 0, %s36
      %p33 = scmp.ge.s32.totalorder %s32, 18
      %s39 = sphi 0, %s51
      %s40 = sphi 0, %s47
      %s41 = sphi 0, %s39
      %s42 = sphi 0, %s40
      %s43 = sphi 0, %s41
      %s44 = sphi 0, %s42
      %s54 = sphi 0, %s56
      %s57 = sphi 0, %s54
      %s58 = sphi 0, %s57
      %s74 = sphi 0, %s58
      %s78 = sphi 0, %s78
      %s80 = sphi 0, %s78
      %s81 = sphi 0, %s80
      %s95 = sphi 0, %s81
      %s99 = sphi 0, %s99
      %s101 = sphi 0, %s99
      %s102 = sphi 0, %s101
      %s116 = sphi 0, %s102
      %s122 = sphi 0, %s124
      %s125 = sphi 0, %s122
      %s126 = sphi 0, %s125
      %s142 = sphi 0, %s126
      %s148 = sphi 0, %s150
      %s151 = sphi 0, %s148
      %s152 = sphi 0, %s151
      %s168 = sphi 0, %s152
      %s174 = sphi 0, %s176
      %s177 = sphi 0, %s174
      %s178 = sphi 0, %s177
      %s194 = sphi 0, %s178
      %s200 = sphi 0, %s202
      %s203 = sphi 0, %s200
      %s204 = sphi 0, %s203
      %s220 = sphi 0, %s204
      %s226 = sphi 0, %s228
      %s229 = sphi 0, %s226
      %s230 = sphi 0, %s229
      %s246 = sphi 0, %s230
      %s252 = sphi 0, %s254
      %s255 = sphi 0, %s252
      %s256 = sphi 0, %s255
      %s272 = sphi 0, %s256
      %s278 = sphi 0, %s280
      %s281 = sphi 0, %s278
      %s282 = sphi 0, %s281
      %s298 = sphi 0, %s282
      %s304 = sphi 0, %s306
      %s307 = sphi 0, %s304
      %s308 = sphi 0, %s307
      %s324 = sphi 0, %s308
      %s330 = sphi 0, %s332
      %s333 = sphi 0, %s330
      %s334 = sphi 0, %s333
      %s350 = sphi 0, %s334
      %s356 = sphi 0, %s358
      %s359 = sphi 0, %s356
      %s360 = sphi 0, %s359
      %s376 = sphi 0, %s360
      %s382 = sphi 0, %s384
      %s385 = sphi 0, %s382
      %s386 = sphi 0, %s385
      %s402 = sphi 0, %s386
      %s408 = sphi 0, %s410
      %s411 = sphi 0, %s408
      %s412 = sphi 0, %s411
      %s428 = sphi 0, %s412
      %s432 = sphi 0, %s432
      %s434 = sphi 0, %s432
      %s435 = sphi 0, %s434
      %s449 = sphi 0, %s435
      %s453 = sphi 0, %s453
      %s455 = sphi 0, %s453
      %s456 = sphi 0, %s455
      %s470 = sphi 0, %s456
      %s474 = sphi 0, %s474
      %s476 = sphi 0, %s474
      %s477 = sphi 0, %s476
      %s491 = sphi 0, %s477
      %s495 = sphi 0, %s495
      %s497 = sphi 0, %s495
      %s498 = sphi 0, %s497
      %s512 = sphi 0, %s498
      %s518 = sphi 0, %s520
      %s521 = sphi 0, %s518
      %s522 = sphi 0, %s521
      %s538 = sphi 0, %s522
    $region4: #{vit_forward.1} parent=1 // loop_header_branch
      %35 = sbr.rel (%p33) target = $region8
    $region5: #{vit_forward.1} parent=1 // loop_body
      %s37 = ssub.s32 %s32, 1
      %s38 = ssub.s32 %s32, 2
      %s45 = sadd.s32 1, %s40
      %p46 = scmp.ge.s32.totalorder %s45, 8
      %s47 = scalar_select %p46, 0, %s45
      %s48 = sadd.s32 1, %s39
      %s49 = scalar_select %p46, %s48, %s39
      %p50 = scmp.ge.s32.totalorder %s49, 2
      %s51 = scalar_select %p50, 0, %s49
      %s52 = ssub.s32 %s39, %s51
      %p53 = scmp.eq.s32.totalorder %s52, 0
      %s55 = sadd.s32 %s54, 1
      %s56 = scalar_select %p53, %s54, %s55
      %p59 = pneg %p53
      %p60 = scmp.eq.s32.totalorder %s32, 15
      %p61 = por %p59, %p60
      %p62 = scmp.ne.s32.totalorder %s54, %s57
      %p63 = scmp.eq.s32.totalorder %s32, 0
      %p64 = por %p62, %p63
      %p65 = scmp.ne.s32.totalorder %s54, %s57
      %p66 = scmp.eq.s32.totalorder %s37, 15
      %p67 = por %p65, %p66
      %p68 = scmp.ne.s32.totalorder %s57, %s58
      %p69 = scmp.eq.s32.totalorder %s37, 0
      %p70 = por %p68, %p69
      %p71 = scmp.ne.s32.totalorder %s57, %s58
      %p72 = scmp.eq.s32.totalorder %s38, 15
      %p73 = por %p71, %p72
      %p75 = scmp.ne.s32.totalorder %s58, %s74
      %p76 = scmp.eq.s32.totalorder %s38, 0
      %p77 = por %p75, %p76
      %s79 = sadd.s32 %s78, 1
      %p82 = scmp.eq.s32.totalorder %s32, 15
      %p83 = scmp.ne.s32.totalorder %s78, %s80
      %p84 = scmp.eq.s32.totalorder %s32, 0
      %p85 = por %p83, %p84
      %p86 = scmp.ne.s32.totalorder %s78, %s80
      %p87 = scmp.eq.s32.totalorder %s37, 15
      %p88 = por %p86, %p87
      %p89 = scmp.ne.s32.totalorder %s80, %s81
      %p90 = scmp.eq.s32.totalorder %s37, 0
      %p91 = por %p89, %p90
      %p92 = scmp.ne.s32.totalorder %s80, %s81
      %p93 = scmp.eq.s32.totalorder %s38, 15
      %p94 = por %p92, %p93
      %p96 = scmp.ne.s32.totalorder %s81, %s95
      %p97 = scmp.eq.s32.totalorder %s38, 0
      %p98 = por %p96, %p97
      %s100 = sadd.s32 %s99, 1
      %p103 = scmp.eq.s32.totalorder %s32, 15
      %p104 = scmp.ne.s32.totalorder %s99, %s101
      %p105 = scmp.eq.s32.totalorder %s32, 0
      %p106 = por %p104, %p105
      %p107 = scmp.ne.s32.totalorder %s99, %s101
      %p108 = scmp.eq.s32.totalorder %s37, 15
      %p109 = por %p107, %p108
      %p110 = scmp.ne.s32.totalorder %s101, %s102
      %p111 = scmp.eq.s32.totalorder %s37, 0
      %p112 = por %p110, %p111
      %p113 = scmp.ne.s32.totalorder %s101, %s102
      %p114 = scmp.eq.s32.totalorder %s38, 15
      %p115 = por %p113, %p114
      %p117 = scmp.ne.s32.totalorder %s102, %s116
      %p118 = scmp.eq.s32.totalorder %s38, 0
      %p119 = por %p117, %p118
      %s120 = ssub.s32 %s40, %s47
      %p121 = scmp.eq.s32.totalorder %s120, 0
      %s123 = sadd.s32 %s122, 1
      %s124 = scalar_select %p121, %s122, %s123
      %p127 = pneg %p121
      %p128 = scmp.eq.s32.totalorder %s32, 15
      %p129 = por %p127, %p128
      %p130 = scmp.ne.s32.totalorder %s122, %s125
      %p131 = scmp.eq.s32.totalorder %s32, 0
      %p132 = por %p130, %p131
      %p133 = scmp.ne.s32.totalorder %s122, %s125
      %p134 = scmp.eq.s32.totalorder %s37, 15
      %p135 = por %p133, %p134
      %p136 = scmp.ne.s32.totalorder %s125, %s126
      %p137 = scmp.eq.s32.totalorder %s37, 0
      %p138 = por %p136, %p137
      %p139 = scmp.ne.s32.totalorder %s125, %s126
      %p140 = scmp.eq.s32.totalorder %s38, 15
      %p141 = por %p139, %p140
      %p143 = scmp.ne.s32.totalorder %s126, %s142
      %p144 = scmp.eq.s32.totalorder %s38, 0
      %p145 = por %p143, %p144
      %s146 = ssub.s32 %s40, %s47
      %p147 = scmp.eq.s32.totalorder %s146, 0
      %s149 = sadd.s32 %s148, 1
      %s150 = scalar_select %p147, %s148, %s149
      %p153 = pneg %p147
      %p154 = scmp.eq.s32.totalorder %s32, 15
      %p155 = por %p153, %p154
      %p156 = scmp.ne.s32.totalorder %s148, %s151
      %p157 = scmp.eq.s32.totalorder %s32, 0
      %p158 = por %p156, %p157
      %p159 = scmp.ne.s32.totalorder %s148, %s151
      %p160 = scmp.eq.s32.totalorder %s37, 15
      %p161 = por %p159, %p160
      %p162 = scmp.ne.s32.totalorder %s151, %s152
      %p163 = scmp.eq.s32.totalorder %s37, 0
      %p164 = por %p162, %p163
      %p165 = scmp.ne.s32.totalorder %s151, %s152
      %p166 = scmp.eq.s32.totalorder %s38, 15
      %p167 = por %p165, %p166
      %p169 = scmp.ne.s32.totalorder %s152, %s168
      %p170 = scmp.eq.s32.totalorder %s38, 0
      %p171 = por %p169, %p170
      %s172 = ssub.s32 %s40, %s47
      %p173 = scmp.eq.s32.totalorder %s172, 0
      %s175 = sadd.s32 %s174, 1
      %s176 = scalar_select %p173, %s174, %s175
      %p179 = pneg %p173
      %p180 = scmp.eq.s32.totalorder %s32, 15
      %p181 = por %p179, %p180
      %p182 = scmp.ne.s32.totalorder %s174, %s177
      %p183 = scmp.eq.s32.totalorder %s32, 0
      %p184 = por %p182, %p183
      %p185 = scmp.ne.s32.totalorder %s174, %s177
      %p186 = scmp.eq.s32.totalorder %s37, 15
      %p187 = por %p185, %p186
      %p188 = scmp.ne.s32.totalorder %s177, %s178
      %p189 = scmp.eq.s32.totalorder %s37, 0
      %p190 = por %p188, %p189
      %p191 = scmp.ne.s32.totalorder %s177, %s178
      %p192 = scmp.eq.s32.totalorder %s38, 15
      %p193 = por %p191, %p192
      %p195 = scmp.ne.s32.totalorder %s178, %s194
      %p196 = scmp.eq.s32.totalorder %s38, 0
      %p197 = por %p195, %p196
      %s198 = ssub.s32 %s40, %s47
      %p199 = scmp.eq.s32.totalorder %s198, 0
      %s201 = sadd.s32 %s200, 1
      %s202 = scalar_select %p199, %s200, %s201
      %p205 = pneg %p199
      %p206 = scmp.eq.s32.totalorder %s32, 15
      %p207 = por %p205, %p206
      %p208 = scmp.ne.s32.totalorder %s200, %s203
      %p209 = scmp.eq.s32.totalorder %s32, 0
      %p210 = por %p208, %p209
      %p211 = scmp.ne.s32.totalorder %s200, %s203
      %p212 = scmp.eq.s32.totalorder %s37, 15
      %p213 = por %p211, %p212
      %p214 = scmp.ne.s32.totalorder %s203, %s204
      %p215 = scmp.eq.s32.totalorder %s37, 0
      %p216 = por %p214, %p215
      %p217 = scmp.ne.s32.totalorder %s203, %s204
      %p218 = scmp.eq.s32.totalorder %s38, 15
      %p219 = por %p217, %p218
      %p221 = scmp.ne.s32.totalorder %s204, %s220
      %p222 = scmp.eq.s32.totalorder %s38, 0
      %p223 = por %p221, %p222
      %s224 = ssub.s32 %s40, %s47
      %p225 = scmp.eq.s32.totalorder %s224, 0
      %s227 = sadd.s32 %s226, 1
      %s228 = scalar_select %p225, %s226, %s227
      %p231 = pneg %p225
      %p232 = scmp.eq.s32.totalorder %s32, 15
      %p233 = por %p231, %p232
      %p234 = scmp.ne.s32.totalorder %s226, %s229
      %p235 = scmp.eq.s32.totalorder %s32, 0
      %p236 = por %p234, %p235
      %p237 = scmp.ne.s32.totalorder %s226, %s229
      %p238 = scmp.eq.s32.totalorder %s37, 15
      %p239 = por %p237, %p238
      %p240 = scmp.ne.s32.totalorder %s229, %s230
      %p241 = scmp.eq.s32.totalorder %s37, 0
      %p242 = por %p240, %p241
      %p243 = scmp.ne.s32.totalorder %s229, %s230
      %p244 = scmp.eq.s32.totalorder %s38, 15
      %p245 = por %p243, %p244
      %p247 = scmp.ne.s32.totalorder %s230, %s246
      %p248 = scmp.eq.s32.totalorder %s38, 0
      %p249 = por %p247, %p248
      %s250 = ssub.s32 %s40, %s47
      %p251 = scmp.eq.s32.totalorder %s250, 0
      %s253 = sadd.s32 %s252, 1
      %s254 = scalar_select %p251, %s252, %s253
      %p257 = pneg %p251
      %p258 = scmp.eq.s32.totalorder %s32, 15
      %p259 = por %p257, %p258
      %p260 = scmp.ne.s32.totalorder %s252, %s255
      %p261 = scmp.eq.s32.totalorder %s32, 0
      %p262 = por %p260, %p261
      %p263 = scmp.ne.s32.totalorder %s252, %s255
      %p264 = scmp.eq.s32.totalorder %s37, 15
      %p265 = por %p263, %p264
      %p266 = scmp.ne.s32.totalorder %s255, %s256
      %p267 = scmp.eq.s32.totalorder %s37, 0
      %p268 = por %p266, %p267
      %p269 = scmp.ne.s32.totalorder %s255, %s256
      %p270 = scmp.eq.s32.totalorder %s38, 15
      %p271 = por %p269, %p270
      %p273 = scmp.ne.s32.totalorder %s256, %s272
      %p274 = scmp.eq.s32.totalorder %s38, 0
      %p275 = por %p273, %p274
      %s276 = ssub.s32 %s40, %s47
      %p277 = scmp.eq.s32.totalorder %s276, 0
      %s279 = sadd.s32 %s278, 1
      %s280 = scalar_select %p277, %s278, %s279
      %p283 = pneg %p277
      %p284 = scmp.eq.s32.totalorder %s32, 15
      %p285 = por %p283, %p284
      %p286 = scmp.ne.s32.totalorder %s278, %s281
      %p287 = scmp.eq.s32.totalorder %s32, 0
      %p288 = por %p286, %p287
      %p289 = scmp.ne.s32.totalorder %s278, %s281
      %p290 = scmp.eq.s32.totalorder %s37, 15
      %p291 = por %p289, %p290
      %p292 = scmp.ne.s32.totalorder %s281, %s282
      %p293 = scmp.eq.s32.totalorder %s37, 0
      %p294 = por %p292, %p293
      %p295 = scmp.ne.s32.totalorder %s281, %s282
      %p296 = scmp.eq.s32.totalorder %s38, 15
      %p297 = por %p295, %p296
      %p299 = scmp.ne.s32.totalorder %s282, %s298
      %p300 = scmp.eq.s32.totalorder %s38, 0
      %p301 = por %p299, %p300
      %s302 = ssub.s32 %s40, %s47
      %p303 = scmp.eq.s32.totalorder %s302, 0
      %s305 = sadd.s32 %s304, 1
      %s306 = scalar_select %p303, %s304, %s305
      %p309 = pneg %p303
      %p310 = scmp.eq.s32.totalorder %s32, 15
      %p311 = por %p309, %p310
      %p312 = scmp.ne.s32.totalorder %s304, %s307
      %p313 = scmp.eq.s32.totalorder %s32, 0
      %p314 = por %p312, %p313
      %p315 = scmp.ne.s32.totalorder %s304, %s307
      %p316 = scmp.eq.s32.totalorder %s37, 15
      %p317 = por %p315, %p316
      %p318 = scmp.ne.s32.totalorder %s307, %s308
      %p319 = scmp.eq.s32.totalorder %s37, 0
      %p320 = por %p318, %p319
      %p321 = scmp.ne.s32.totalorder %s307, %s308
      %p322 = scmp.eq.s32.totalorder %s38, 15
      %p323 = por %p321, %p322
      %p325 = scmp.ne.s32.totalorder %s308, %s324
      %p326 = scmp.eq.s32.totalorder %s38, 0
      %p327 = por %p325, %p326
      %s328 = ssub.s32 %s40, %s47
      %p329 = scmp.eq.s32.totalorder %s328, 0
      %s331 = sadd.s32 %s330, 1
      %s332 = scalar_select %p329, %s330, %s331
      %p335 = pneg %p329
      %p336 = scmp.eq.s32.totalorder %s32, 15
      %p337 = por %p335, %p336
      %p338 = scmp.ne.s32.totalorder %s330, %s333
      %p339 = scmp.eq.s32.totalorder %s32, 0
      %p340 = por %p338, %p339
      %p341 = scmp.ne.s32.totalorder %s330, %s333
      %p342 = scmp.eq.s32.totalorder %s37, 15
      %p343 = por %p341, %p342
      %p344 = scmp.ne.s32.totalorder %s333, %s334
      %p345 = scmp.eq.s32.totalorder %s37, 0
      %p346 = por %p344, %p345
      %p347 = scmp.ne.s32.totalorder %s333, %s334
      %p348 = scmp.eq.s32.totalorder %s38, 15
      %p349 = por %p347, %p348
      %p351 = scmp.ne.s32.totalorder %s334, %s350
      %p352 = scmp.eq.s32.totalorder %s38, 0
      %p353 = por %p351, %p352
      %s354 = ssub.s32 %s40, %s47
      %p355 = scmp.eq.s32.totalorder %s354, 0
      %s357 = sadd.s32 %s356, 1
      %s358 = scalar_select %p355, %s356, %s357
      %p361 = pneg %p355
      %p362 = scmp.eq.s32.totalorder %s32, 15
      %p363 = por %p361, %p362
      %p364 = scmp.ne.s32.totalorder %s356, %s359
      %p365 = scmp.eq.s32.totalorder %s32, 0
      %p366 = por %p364, %p365
      %p367 = scmp.ne.s32.totalorder %s356, %s359
      %p368 = scmp.eq.s32.totalorder %s37, 15
      %p369 = por %p367, %p368
      %p370 = scmp.ne.s32.totalorder %s359, %s360
      %p371 = scmp.eq.s32.totalorder %s37, 0
      %p372 = por %p370, %p371
      %p373 = scmp.ne.s32.totalorder %s359, %s360
      %p374 = scmp.eq.s32.totalorder %s38, 15
      %p375 = por %p373, %p374
      %p377 = scmp.ne.s32.totalorder %s360, %s376
      %p378 = scmp.eq.s32.totalorder %s38, 0
      %p379 = por %p377, %p378
      %s380 = ssub.s32 %s40, %s47
      %p381 = scmp.eq.s32.totalorder %s380, 0
      %s383 = sadd.s32 %s382, 1
      %s384 = scalar_select %p381, %s382, %s383
      %p387 = pneg %p381
      %p388 = scmp.eq.s32.totalorder %s32, 15
      %p389 = por %p387, %p388
      %p390 = scmp.ne.s32.totalorder %s382, %s385
      %p391 = scmp.eq.s32.totalorder %s32, 0
      %p392 = por %p390, %p391
      %p393 = scmp.ne.s32.totalorder %s382, %s385
      %p394 = scmp.eq.s32.totalorder %s37, 15
      %p395 = por %p393, %p394
      %p396 = scmp.ne.s32.totalorder %s385, %s386
      %p397 = scmp.eq.s32.totalorder %s37, 0
      %p398 = por %p396, %p397
      %p399 = scmp.ne.s32.totalorder %s385, %s386
      %p400 = scmp.eq.s32.totalorder %s38, 15
      %p401 = por %p399, %p400
      %p403 = scmp.ne.s32.totalorder %s386, %s402
      %p404 = scmp.eq.s32.totalorder %s38, 0
      %p405 = por %p403, %p404
      %s406 = ssub.s32 %s40, %s47
      %p407 = scmp.eq.s32.totalorder %s406, 0
      %s409 = sadd.s32 %s408, 1
      %s410 = scalar_select %p407, %s408, %s409
      %p413 = pneg %p407
      %p414 = scmp.eq.s32.totalorder %s32, 15
      %p415 = por %p413, %p414
      %p416 = scmp.ne.s32.totalorder %s408, %s411
      %p417 = scmp.eq.s32.totalorder %s32, 0
      %p418 = por %p416, %p417
      %p419 = scmp.ne.s32.totalorder %s408, %s411
      %p420 = scmp.eq.s32.totalorder %s37, 15
      %p421 = por %p419, %p420
      %p422 = scmp.ne.s32.totalorder %s411, %s412
      %p423 = scmp.eq.s32.totalorder %s37, 0
      %p424 = por %p422, %p423
      %p425 = scmp.ne.s32.totalorder %s411, %s412
      %p426 = scmp.eq.s32.totalorder %s38, 15
      %p427 = por %p425, %p426
      %p429 = scmp.ne.s32.totalorder %s412, %s428
      %p430 = scmp.eq.s32.totalorder %s38, 0
      %p431 = por %p429, %p430
      %s433 = sadd.s32 %s432, 1
      %p436 = scmp.eq.s32.totalorder %s32, 15
      %p437 = scmp.ne.s32.totalorder %s432, %s434
      %p438 = scmp.eq.s32.totalorder %s32, 0
      %p439 = por %p437, %p438
      %p440 = scmp.ne.s32.totalorder %s432, %s434
      %p441 = scmp.eq.s32.totalorder %s37, 15
      %p442 = por %p440, %p441
      %p443 = scmp.ne.s32.totalorder %s434, %s435
      %p444 = scmp.eq.s32.totalorder %s37, 0
      %p445 = por %p443, %p444
      %p446 = scmp.ne.s32.totalorder %s434, %s435
      %p447 = scmp.eq.s32.totalorder %s38, 15
      %p448 = por %p446, %p447
      %p450 = scmp.ne.s32.totalorder %s435, %s449
      %p451 = scmp.eq.s32.totalorder %s38, 0
      %p452 = por %p450, %p451
      %s454 = sadd.s32 %s453, 1
      %p457 = scmp.eq.s32.totalorder %s32, 15
      %p458 = scmp.ne.s32.totalorder %s453, %s455
      %p459 = scmp.eq.s32.totalorder %s32, 0
      %p460 = por %p458, %p459
      %p461 = scmp.ne.s32.totalorder %s453, %s455
      %p462 = scmp.eq.s32.totalorder %s37, 15
      %p463 = por %p461, %p462
      %p464 = scmp.ne.s32.totalorder %s455, %s456
      %p465 = scmp.eq.s32.totalorder %s37, 0
      %p466 = por %p464, %p465
      %p467 = scmp.ne.s32.totalorder %s455, %s456
      %p468 = scmp.eq.s32.totalorder %s38, 15
      %p469 = por %p467, %p468
      %p471 = scmp.ne.s32.totalorder %s456, %s470
      %p472 = scmp.eq.s32.totalorder %s38, 0
      %p473 = por %p471, %p472
      %s475 = sadd.s32 %s474, 1
      %p478 = scmp.eq.s32.totalorder %s32, 15
      %p479 = scmp.ne.s32.totalorder %s474, %s476
      %p480 = scmp.eq.s32.totalorder %s32, 0
      %p481 = por %p479, %p480
      %p482 = scmp.ne.s32.totalorder %s474, %s476
      %p483 = scmp.eq.s32.totalorder %s37, 15
      %p484 = por %p482, %p483
      %p485 = scmp.ne.s32.totalorder %s476, %s477
      %p486 = scmp.eq.s32.totalorder %s37, 0
      %p487 = por %p485, %p486
      %p488 = scmp.ne.s32.totalorder %s476, %s477
      %p489 = scmp.eq.s32.totalorder %s38, 15
      %p490 = por %p488, %p489
      %p492 = scmp.ne.s32.totalorder %s477, %s491
      %p493 = scmp.eq.s32.totalorder %s38, 0
      %p494 = por %p492, %p493
      %s496 = sadd.s32 %s495, 1
      %p499 = scmp.eq.s32.totalorder %s32, 15
      %p500 = scmp.ne.s32.totalorder %s495, %s497
      %p501 = scmp.eq.s32.totalorder %s32, 0
      %p502 = por %p500, %p501
      %p503 = scmp.ne.s32.totalorder %s495, %s497
      %p504 = scmp.eq.s32.totalorder %s37, 15
      %p505 = por %p503, %p504
      %p506 = scmp.ne.s32.totalorder %s497, %s498
      %p507 = scmp.eq.s32.totalorder %s37, 0
      %p508 = por %p506, %p507
      %p509 = scmp.ne.s32.totalorder %s497, %s498
      %p510 = scmp.eq.s32.totalorder %s38, 15
      %p511 = por %p509, %p510
      %p513 = scmp.ne.s32.totalorder %s498, %s512
      %p514 = scmp.eq.s32.totalorder %s38, 0
      %p515 = por %p513, %p514
      %s516 = ssub.s32 %s39, %s51
      %p517 = scmp.eq.s32.totalorder %s516, 0
      %s519 = sadd.s32 %s518, 1
      %s520 = scalar_select %p517, %s518, %s519
      %p523 = pneg %p517
      %p524 = scmp.eq.s32.totalorder %s32, 15
      %p525 = por %p523, %p524
      %p526 = scmp.ne.s32.totalorder %s518, %s521
      %p527 = scmp.eq.s32.totalorder %s32, 0
      %p528 = por %p526, %p527
      %p529 = scmp.ne.s32.totalorder %s518, %s521
      %p530 = scmp.eq.s32.totalorder %s37, 15
      %p531 = por %p529, %p530
      %p532 = scmp.ne.s32.totalorder %s521, %s522
      %p533 = scmp.eq.s32.totalorder %s37, 0
      %p534 = por %p532, %p533
      %p535 = scmp.ne.s32.totalorder %s521, %s522
      %p536 = scmp.eq.s32.totalorder %s38, 15
      %p537 = por %p535, %p536
      %p539 = scmp.ne.s32.totalorder %s522, %s538
      %p540 = scmp.eq.s32.totalorder %s38, 0
      %p541 = por %p539, %p540
      %p542 = scmp.le.s32.totalorder 1, %s32
      %p543 = scmp.lt.s32.totalorder %s32, 17
      %p544 = pnand %p542, %p543
      %p545 = pneg %p544
      // Predicated region
      $region9: #{vit_forward.1} parent=5 // pred_check
        _
      $region10: #{vit_forward.1} parent=5 // pred_check_branch
        %547 = sbr.rel (%p544) target = $region12
      $region11: #{vit_forward.1} parent=5 // pred_region
        %s548 = ssub.s32 %s32, 1
        // Predicated region
        $region13: #{vit_forward.1} parent=11 // pred_check
          %p549 = pneg %p91
        $region14: #{vit_forward.1} parent=11 // pred_check_branch
          %551 = sbr.rel (%p549) target = $region16
        $region15: #{vit_forward.1} parent=11 // pred_region
          %s553 = ssub.s32 4096, 4096
          %554 = vsyncadd [#allocation5], %s553
          %s555 = sshll.u32 [#allocation4], 4
          %s556 = int_to_ptr.vmem [resolvable:$true] %s555
          %561 = dma.hbm_to_vmem [thread:$0]  %s1, 4096, %s556, [#allocation5], 128, 128, 8
        $region16: #{vit_forward.1} parent=11 // pred_fallthru
          _
        // Predicated region
        $region17: #{vit_forward.1} parent=11 // pred_check
          %p562 = pneg %p112
        $region18: #{vit_forward.1} parent=11 // pred_check_branch
          %564 = sbr.rel (%p562) target = $region20
        $region19: #{vit_forward.1} parent=11 // pred_region
          %s566 = ssub.s32 256, 256
          %567 = vsyncadd [#allocation8], %s566
          %s569 = sshll.u32 [#allocation7], 4
          %s570 = int_to_ptr.vmem [resolvable:$true] %s569
          %572 = dma.hbm_to_vmem [thread:$0]  %s2, 256, %s570, [#allocation8]
        $region20: #{vit_forward.1} parent=11 // pred_fallthru
          _
        // Predicated region
        $region21: #{vit_forward.1} parent=11 // pred_check
          %p573 = pneg %p445
        $region22: #{vit_forward.1} parent=11 // pred_check_branch
          %575 = sbr.rel (%p573) target = $region24
        $region23: #{vit_forward.1} parent=11 // pred_region
          %s577 = ssub.s32 32, 32
          %578 = vsyncadd [#allocation8], %s577
          %s580 = sshll.u32 [#allocation21], 4
          %s581 = int_to_ptr.vmem [resolvable:$true] %s580
          %583 = dma.hbm_to_vmem [thread:$0]  %s15, 32, %s581, [#allocation8]
        $region24: #{vit_forward.1} parent=11 // pred_fallthru
          _
        // Predicated region
        $region25: #{vit_forward.1} parent=11 // pred_check
          %p584 = pneg %p466
        $region26: #{vit_forward.1} parent=11 // pred_check_branch
          %586 = sbr.rel (%p584) target = $region28
        $region27: #{vit_forward.1} parent=11 // pred_region
          %s588 = ssub.s32 32, 32
          %589 = vsyncadd [#allocation23], %s588
          %s591 = sshll.u32 [#allocation22], 4
          %s592 = int_to_ptr.vmem [resolvable:$true] %s591
          %594 = dma.hbm_to_vmem [thread:$0]  %s16, 32, %s592, [#allocation23]
        $region28: #{vit_forward.1} parent=11 // pred_fallthru
          _
        // Predicated region
        $region29: #{vit_forward.1} parent=11 // pred_check
          %p595 = pneg %p487
        $region30: #{vit_forward.1} parent=11 // pred_check_branch
          %597 = sbr.rel (%p595) target = $region32
        $region31: #{vit_forward.1} parent=11 // pred_region
          %s599 = ssub.s32 2048, 2048
          %600 = vsyncadd [#allocation23], %s599
          %s601 = sshll.u32 [#allocation24], 4
          %s602 = int_to_ptr.vmem [resolvable:$true] %s601
          %607 = dma.hbm_to_vmem [thread:$0]  %s17, 2048, %s602, [#allocation23], 64, 64, 4
        $region32: #{vit_forward.1} parent=11 // pred_fallthru
          _
        // Predicated region
        $region33: #{vit_forward.1} parent=11 // pred_check
          %p608 = pneg %p508
        $region34: #{vit_forward.1} parent=11 // pred_check_branch
          %610 = sbr.rel (%p608) target = $region36
        $region35: #{vit_forward.1} parent=11 // pred_region
          %s612 = ssub.s32 16, 16
          %613 = vsyncadd [#allocation26], %s612
          %s615 = sshll.u32 [#allocation25], 4
          %s616 = int_to_ptr.vmem [resolvable:$true] %s615
          %618 = dma.hbm_to_vmem [thread:$0]  %s18, 16, %s616, [#allocation26]
        $region36: #{vit_forward.1} parent=11 // pred_fallthru
          _
      $region12: #{vit_forward.1} parent=5 // pred_fallthru
        _
      %p619 = scmp.lt.s32.totalorder %s32, 16
      // Predicated region
      $region37: #{vit_forward.1} parent=5 // pred_check
        %p620 = pneg %p619
      $region38: #{vit_forward.1} parent=5 // pred_check_branch
        %622 = sbr.rel (%p620) target = $region40
      $region39: #{vit_forward.1} parent=5 // pred_region
        // Predicated region
        $region41: #{vit_forward.1} parent=39 // pred_check
          %p623 = pneg %p64
        $region42: #{vit_forward.1} parent=39 // pred_check_branch
          %625 = sbr.rel (%p623) target = $region44
        $region43: #{vit_forward.1} parent=39 // pred_region
          %p626 = scmp.lt.s32.totalorder %s39, 1
          %s627 = scalar_select %p626, %s39, 1
          %s628 = smul.addr %s627, 2
          %s629 = smul.addr %s628, 8
          %s630 = scalar_lea.vmem %s0, %s629
        $region44: #{vit_forward.1} parent=39 // pred_fallthru
          _
        // Predicated region
        $region45: #{vit_forward.1} parent=39 // pred_check
          %p631 = pneg %p132
        $region46: #{vit_forward.1} parent=39 // pred_check_branch
          %633 = sbr.rel (%p631) target = $region48
        $region47: #{vit_forward.1} parent=39 // pred_region
          %s634 = sand.u32 %s32, 1
          %s635 = scalar_lea.sflag [#allocation5], %s634
          %s636 = sand.u32 %s122, 1
          %s637 = smul.addr %s636, 2
          %s638 = scalar_lea.vmem [#allocation9], %s637
          %s640 = ssub.s32 32, 32
          %641 = vsyncadd %s635, %s640
          %s642 = smul.addr %s40, 2
          %s643 = smul.addr %s642, 16
          %s644 = scalar_lea.hbm %s3, %s643
          %s646 = sshll.u32 %s638, 4
          %s647 = int_to_ptr.vmem [resolvable:$true] %s646
          %649 = dma.hbm_to_vmem [thread:$0]  %s644, 32, %s647, %s635
        $region48: #{vit_forward.1} parent=39 // pred_fallthru
          _
        // Predicated region
        $region49: #{vit_forward.1} parent=39 // pred_check
          %p650 = pneg %p158
        $region50: #{vit_forward.1} parent=39 // pred_check_branch
          %652 = sbr.rel (%p650) target = $region52
        $region51: #{vit_forward.1} parent=39 // pred_region
          %s653 = sand.u32 %s32, 1
          %s654 = scalar_lea.sflag [#allocation5], %s653
          %s655 = sand.u32 %s148, 1
          %s656 = smul.addr %s655, 2
          %s657 = scalar_lea.vmem [#allocation10], %s656
          %s659 = ssub.s32 32, 32
          %660 = vsyncadd %s654, %s659
          %s661 = smul.addr %s40, 2
          %s662 = smul.addr %s661, 16
          %s663 = scalar_lea.hbm %s4, %s662
          %s665 = sshll.u32 %s657, 4
          %s666 = int_to_ptr.vmem [resolvable:$true] %s665
          %668 = dma.hbm_to_vmem [thread:$0]  %s663, 32, %s666, %s654
        $region52: #{vit_forward.1} parent=39 // pred_fallthru
          _
        // Predicated region
        $region53: #{vit_forward.1} parent=39 // pred_check
          %p669 = pneg %p184
        $region54: #{vit_forward.1} parent=39 // pred_check_branch
          %671 = sbr.rel (%p669) target = $region56
        $region55: #{vit_forward.1} parent=39 // pred_region
          %s672 = sand.u32 %s32, 1
          %s673 = scalar_lea.sflag [#allocation5], %s672
          %s674 = sand.u32 %s174, 1
          %s675 = smul.addr %s674, 768
          %s676 = scalar_lea.vmem [#allocation11], %s675
          %s678 = ssub.s32 12288, 12288
          %679 = vsyncadd %s673, %s678
          %s680 = smul.addr %s40, 192
          %s681 = smul.addr %s680, 64
          %s682 = scalar_lea.hbm %s5, %s681
          %s683 = sshll.u32 %s676, 4
          %s684 = int_to_ptr.vmem [resolvable:$true] %s683
          %689 = dma.hbm_to_vmem [thread:$0]  %s682, 12288, %s684, %s673, 384, 384, 24
        $region56: #{vit_forward.1} parent=39 // pred_fallthru
          _
        // Predicated region
        $region57: #{vit_forward.1} parent=39 // pred_check
          %p690 = pneg %p210
        $region58: #{vit_forward.1} parent=39 // pred_check_branch
          %692 = sbr.rel (%p690) target = $region60
        $region59: #{vit_forward.1} parent=39 // pred_region
          %s693 = sand.u32 %s32, 1
          %s694 = scalar_lea.sflag [#allocation5], %s693
          %s695 = sand.u32 %s200, 1
          %s696 = smul.addr %s695, 6
          %s697 = scalar_lea.vmem [#allocation12], %s696
          %s699 = ssub.s32 96, 96
          %700 = vsyncadd %s694, %s699
          %s701 = smul.addr %s40, 6
          %s702 = smul.addr %s701, 16
          %s703 = scalar_lea.hbm %s6, %s702
          %s705 = sshll.u32 %s697, 4
          %s706 = int_to_ptr.vmem [resolvable:$true] %s705
          %708 = dma.hbm_to_vmem [thread:$0]  %s703, 96, %s706, %s694
        $region60: #{vit_forward.1} parent=39 // pred_fallthru
          _
        // Predicated region
        $region61: #{vit_forward.1} parent=39 // pred_check
          %p709 = pneg %p236
        $region62: #{vit_forward.1} parent=39 // pred_check_branch
          %711 = sbr.rel (%p709) target = $region64
        $region63: #{vit_forward.1} parent=39 // pred_region
          %s712 = sand.u32 %s32, 1
          %s713 = scalar_lea.sflag [#allocation5], %s712
          %s714 = sand.u32 %s226, 1
          %s715 = smul.addr %s714, 256
          %s716 = scalar_lea.vmem [#allocation13], %s715
          %s718 = ssub.s32 4096, 4096
          %719 = vsyncadd %s713, %s718
          %s720 = smul.addr %s40, 64
          %s721 = smul.addr %s720, 64
          %s722 = scalar_lea.hbm %s7, %s721
          %s723 = sshll.u32 %s716, 4
          %s724 = int_to_ptr.vmem [resolvable:$true] %s723
          %729 = dma.hbm_to_vmem [thread:$0]  %s722, 4096, %s724, %s713, 128, 128, 8
        $region64: #{vit_forward.1} parent=39 // pred_fallthru
          _
        // Predicated region
        $region65: #{vit_forward.1} parent=39 // pred_check
          %p730 = pneg %p262
        $region66: #{vit_forward.1} parent=39 // pred_check_branch
          %732 = sbr.rel (%p730) target = $region68
        $region67: #{vit_forward.1} parent=39 // pred_region
          %s733 = sand.u32 %s32, 1
          %s734 = scalar_lea.sflag [#allocation5], %s733
          %s735 = sand.u32 %s252, 1
          %s736 = smul.addr %s735, 2
          %s737 = scalar_lea.vmem [#allocation14], %s736
          %s739 = ssub.s32 32, 32
          %740 = vsyncadd %s734, %s739
          %s741 = smul.addr %s40, 2
          %s742 = smul.addr %s741, 16
          %s743 = scalar_lea.hbm %s8, %s742
          %s745 = sshll.u32 %s737, 4
          %s746 = int_to_ptr.vmem [resolvable:$true] %s745
          %748 = dma.hbm_to_vmem [thread:$0]  %s743, 32, %s746, %s734
        $region68: #{vit_forward.1} parent=39 // pred_fallthru
          _
        // Predicated region
        $region69: #{vit_forward.1} parent=39 // pred_check
          %p749 = pneg %p288
        $region70: #{vit_forward.1} parent=39 // pred_check_branch
          %751 = sbr.rel (%p749) target = $region72
        $region71: #{vit_forward.1} parent=39 // pred_region
          %s752 = sand.u32 %s32, 1
          %s753 = scalar_lea.sflag [#allocation5], %s752
          %s754 = sand.u32 %s278, 1
          %s755 = smul.addr %s754, 2
          %s756 = scalar_lea.vmem [#allocation15], %s755
          %s758 = ssub.s32 32, 32
          %759 = vsyncadd %s753, %s758
          %s760 = smul.addr %s40, 2
          %s761 = smul.addr %s760, 16
          %s762 = scalar_lea.hbm %s9, %s761
          %s764 = sshll.u32 %s756, 4
          %s765 = int_to_ptr.vmem [resolvable:$true] %s764
          %767 = dma.hbm_to_vmem [thread:$0]  %s762, 32, %s765, %s753
        $region72: #{vit_forward.1} parent=39 // pred_fallthru
          _
        // Predicated region
        $region73: #{vit_forward.1} parent=39 // pred_check
          %p768 = pneg %p314
        $region74: #{vit_forward.1} parent=39 // pred_check_branch
          %770 = sbr.rel (%p768) target = $region76
        $region75: #{vit_forward.1} parent=39 // pred_region
          %s771 = sand.u32 %s32, 1
          %s772 = scalar_lea.sflag [#allocation5], %s771
          %s773 = sand.u32 %s304, 1
          %s774 = smul.addr %s773, 2
          %s775 = scalar_lea.vmem [#allocation16], %s774
          %s777 = ssub.s32 32, 32
          %778 = vsyncadd %s772, %s777
          %s779 = smul.addr %s40, 2
          %s780 = smul.addr %s779, 16
          %s781 = scalar_lea.hbm %s10, %s780
          %s783 = sshll.u32 %s775, 4
          %s784 = int_to_ptr.vmem [resolvable:$true] %s783
          %786 = dma.hbm_to_vmem [thread:$0]  %s781, 32, %s784, %s772
        $region76: #{vit_forward.1} parent=39 // pred_fallthru
          _
        // Predicated region
        $region77: #{vit_forward.1} parent=39 // pred_check
          %p787 = pneg %p340
        $region78: #{vit_forward.1} parent=39 // pred_check_branch
          %789 = sbr.rel (%p787) target = $region80
        $region79: #{vit_forward.1} parent=39 // pred_region
          %s790 = sand.u32 %s32, 1
          %s791 = scalar_lea.sflag [#allocation5], %s790
          %s792 = sand.u32 %s330, 1
          %s793 = smul.addr %s792, 512
          %s794 = scalar_lea.vmem [#allocation17], %s793
          %s796 = ssub.s32 8192, 8192
          %797 = vsyncadd %s791, %s796
          %s798 = smul.addr %s40, 128
          %s799 = smul.addr %s798, 64
          %s800 = scalar_lea.hbm %s11, %s799
          %s801 = sshll.u32 %s794, 4
          %s802 = int_to_ptr.vmem [resolvable:$true] %s801
          %807 = dma.hbm_to_vmem [thread:$0]  %s800, 8192, %s802, %s791, 256, 256, 16
        $region80: #{vit_forward.1} parent=39 // pred_fallthru
          _
        // Predicated region
        $region81: #{vit_forward.1} parent=39 // pred_check
          %p808 = pneg %p366
        $region82: #{vit_forward.1} parent=39 // pred_check_branch
          %810 = sbr.rel (%p808) target = $region84
        $region83: #{vit_forward.1} parent=39 // pred_region
          %s811 = sand.u32 %s32, 1
          %s812 = scalar_lea.sflag [#allocation5], %s811
          %s813 = sand.u32 %s356, 1
          %s814 = smul.addr %s813, 4
          %s815 = scalar_lea.vmem [#allocation18], %s814
          %s817 = ssub.s32 64, 64
          %818 = vsyncadd %s812, %s817
          %s819 = smul.addr %s40, 4
          %s820 = smul.addr %s819, 16
          %s821 = scalar_lea.hbm %s12, %s820
          %s823 = sshll.u32 %s815, 4
          %s824 = int_to_ptr.vmem [resolvable:$true] %s823
          %826 = dma.hbm_to_vmem [thread:$0]  %s821, 64, %s824, %s812
        $region84: #{vit_forward.1} parent=39 // pred_fallthru
          _
        // Predicated region
        $region85: #{vit_forward.1} parent=39 // pred_check
          %p827 = pneg %p392
        $region86: #{vit_forward.1} parent=39 // pred_check_branch
          %829 = sbr.rel (%p827) target = $region88
        $region87: #{vit_forward.1} parent=39 // pred_region
          %s830 = sand.u32 %s32, 1
          %s831 = scalar_lea.sflag [#allocation5], %s830
          %s832 = sand.u32 %s382, 1
          %s833 = smul.addr %s832, 512
          %s834 = scalar_lea.vmem [#allocation19], %s833
          %s836 = ssub.s32 8192, 8192
          %837 = vsyncadd %s831, %s836
          %s838 = smul.addr %s40, 128
          %s839 = smul.addr %s838, 64
          %s840 = scalar_lea.hbm %s13, %s839
          %s841 = sshll.u32 %s834, 4
          %s842 = int_to_ptr.vmem [resolvable:$true] %s841
          %847 = dma.hbm_to_vmem [thread:$0]  %s840, 8192, %s842, %s831, 128, 128, 8
        $region88: #{vit_forward.1} parent=39 // pred_fallthru
          _
        // Predicated region
        $region89: #{vit_forward.1} parent=39 // pred_check
          %p848 = pneg %p418
        $region90: #{vit_forward.1} parent=39 // pred_check_branch
          %850 = sbr.rel (%p848) target = $region92
        $region91: #{vit_forward.1} parent=39 // pred_region
          %s851 = sand.u32 %s32, 1
          %s852 = scalar_lea.sflag [#allocation5], %s851
          %s853 = sand.u32 %s408, 1
          %s854 = smul.addr %s853, 2
          %s855 = scalar_lea.vmem [#allocation20], %s854
          %s857 = ssub.s32 32, 32
          %858 = vsyncadd %s852, %s857
          %s859 = smul.addr %s40, 2
          %s860 = smul.addr %s859, 16
          %s861 = scalar_lea.hbm %s14, %s860
          %s863 = sshll.u32 %s855, 4
          %s864 = int_to_ptr.vmem [resolvable:$true] %s863
          %866 = dma.hbm_to_vmem [thread:$0]  %s861, 32, %s864, %s852
        $region92: #{vit_forward.1} parent=39 // pred_fallthru
          _
      $region40: #{vit_forward.1} parent=5 // pred_fallthru
        _
      %p867 = scmp.le.s32.totalorder 1, %s32
      %p868 = scmp.lt.s32.totalorder %s32, 17
      %p869 = pnand %p867, %p868
      %p870 = pneg %p869
      // Predicated region
      $region93: #{vit_forward.1} parent=5 // pred_check
        _
      $region94: #{vit_forward.1} parent=5 // pred_check_branch
        %872 = sbr.rel (%p869) target = $region96
      $region95: #{vit_forward.1} parent=5 // pred_region
        %s873 = ssub.s32 %s32, 1
        // Predicated region
        $region97: #{vit_forward.1} parent=95 // pred_check
          %p874 = pneg %p91
        $region98: #{vit_forward.1} parent=95 // pred_check_branch
          %876 = sbr.rel (%p874) target = $region100
        $region99: #{vit_forward.1} parent=95 // pred_region
          %877 = dma.done [#allocation5], 4096
        $region100: #{vit_forward.1} parent=95 // pred_fallthru
          _
        // Predicated region
        $region101: #{vit_forward.1} parent=95 // pred_check
          %p878 = pneg %p112
        $region102: #{vit_forward.1} parent=95 // pred_check_branch
          %880 = sbr.rel (%p878) target = $region104
        $region103: #{vit_forward.1} parent=95 // pred_region
          %881 = dma.done [#allocation8], 256
        $region104: #{vit_forward.1} parent=95 // pred_fallthru
          _
        %s882 = sand.u32 %s37, 1
        %s883 = scalar_lea.sflag [#allocation5], %s882
        %s884 = sand.u32 %s125, 1
        %s885 = smul.addr %s884, 2
        %s886 = scalar_lea.vmem [#allocation9], %s885
        // Predicated region
        $region105: #{vit_forward.1} parent=95 // pred_check
          %p887 = pneg %p138
        $region106: #{vit_forward.1} parent=95 // pred_check_branch
          %889 = sbr.rel (%p887) target = $region108
        $region107: #{vit_forward.1} parent=95 // pred_region
          %890 = dma.done %s883, 32
        $region108: #{vit_forward.1} parent=95 // pred_fallthru
          _
        %s891 = sand.u32 %s37, 1
        %s892 = scalar_lea.sflag [#allocation5], %s891
        %s893 = sand.u32 %s151, 1
        %s894 = smul.addr %s893, 2
        %s895 = scalar_lea.vmem [#allocation10], %s894
        // Predicated region
        $region109: #{vit_forward.1} parent=95 // pred_check
          %p896 = pneg %p164
        $region110: #{vit_forward.1} parent=95 // pred_check_branch
          %898 = sbr.rel (%p896) target = $region112
        $region111: #{vit_forward.1} parent=95 // pred_region
          %899 = dma.done %s892, 32
        $region112: #{vit_forward.1} parent=95 // pred_fallthru
          _
        %s900 = sand.u32 %s37, 1
        %s901 = scalar_lea.sflag [#allocation5], %s900
        %s902 = sand.u32 %s177, 1
        %s903 = smul.addr %s902, 768
        %s904 = scalar_lea.vmem [#allocation11], %s903
        // Predicated region
        $region113: #{vit_forward.1} parent=95 // pred_check
          %p905 = pneg %p190
        $region114: #{vit_forward.1} parent=95 // pred_check_branch
          %907 = sbr.rel (%p905) target = $region116
        $region115: #{vit_forward.1} parent=95 // pred_region
          %908 = dma.done %s901, 12288
        $region116: #{vit_forward.1} parent=95 // pred_fallthru
          _
        %s909 = sand.u32 %s37, 1
        %s910 = scalar_lea.sflag [#allocation5], %s909
        %s911 = sand.u32 %s203, 1
        %s912 = smul.addr %s911, 6
        %s913 = scalar_lea.vmem [#allocation12], %s912
        // Predicated region
        $region117: #{vit_forward.1} parent=95 // pred_check
          %p914 = pneg %p216
        $region118: #{vit_forward.1} parent=95 // pred_check_branch
          %916 = sbr.rel (%p914) target = $region120
        $region119: #{vit_forward.1} parent=95 // pred_region
          %917 = dma.done %s910, 96
        $region120: #{vit_forward.1} parent=95 // pred_fallthru
          _
        %s918 = sand.u32 %s37, 1
        %s919 = scalar_lea.sflag [#allocation5], %s918
        %s920 = sand.u32 %s229, 1
        %s921 = smul.addr %s920, 256
        %s922 = scalar_lea.vmem [#allocation13], %s921
        // Predicated region
        $region121: #{vit_forward.1} parent=95 // pred_check
          %p923 = pneg %p242
        $region122: #{vit_forward.1} parent=95 // pred_check_branch
          %925 = sbr.rel (%p923) target = $region124
        $region123: #{vit_forward.1} parent=95 // pred_region
          %926 = dma.done %s919, 4096
        $region124: #{vit_forward.1} parent=95 // pred_fallthru
          _
        %s927 = sand.u32 %s37, 1
        %s928 = scalar_lea.sflag [#allocation5], %s927
        %s929 = sand.u32 %s255, 1
        %s930 = smul.addr %s929, 2
        %s931 = scalar_lea.vmem [#allocation14], %s930
        // Predicated region
        $region125: #{vit_forward.1} parent=95 // pred_check
          %p932 = pneg %p268
        $region126: #{vit_forward.1} parent=95 // pred_check_branch
          %934 = sbr.rel (%p932) target = $region128
        $region127: #{vit_forward.1} parent=95 // pred_region
          %935 = dma.done %s928, 32
        $region128: #{vit_forward.1} parent=95 // pred_fallthru
          _
        %s936 = sand.u32 %s37, 1
        %s937 = scalar_lea.sflag [#allocation5], %s936
        %s938 = sand.u32 %s281, 1
        %s939 = smul.addr %s938, 2
        %s940 = scalar_lea.vmem [#allocation15], %s939
        // Predicated region
        $region129: #{vit_forward.1} parent=95 // pred_check
          %p941 = pneg %p294
        $region130: #{vit_forward.1} parent=95 // pred_check_branch
          %943 = sbr.rel (%p941) target = $region132
        $region131: #{vit_forward.1} parent=95 // pred_region
          %944 = dma.done %s937, 32
        $region132: #{vit_forward.1} parent=95 // pred_fallthru
          _
        %s945 = sand.u32 %s37, 1
        %s946 = scalar_lea.sflag [#allocation5], %s945
        %s947 = sand.u32 %s307, 1
        %s948 = smul.addr %s947, 2
        %s949 = scalar_lea.vmem [#allocation16], %s948
        // Predicated region
        $region133: #{vit_forward.1} parent=95 // pred_check
          %p950 = pneg %p320
        $region134: #{vit_forward.1} parent=95 // pred_check_branch
          %952 = sbr.rel (%p950) target = $region136
        $region135: #{vit_forward.1} parent=95 // pred_region
          %953 = dma.done %s946, 32
        $region136: #{vit_forward.1} parent=95 // pred_fallthru
          _
        %s954 = sand.u32 %s37, 1
        %s955 = scalar_lea.sflag [#allocation5], %s954
        %s956 = sand.u32 %s333, 1
        %s957 = smul.addr %s956, 512
        %s958 = scalar_lea.vmem [#allocation17], %s957
        // Predicated region
        $region137: #{vit_forward.1} parent=95 // pred_check
          %p959 = pneg %p346
        $region138: #{vit_forward.1} parent=95 // pred_check_branch
          %961 = sbr.rel (%p959) target = $region140
        $region139: #{vit_forward.1} parent=95 // pred_region
          %962 = dma.done %s955, 8192
        $region140: #{vit_forward.1} parent=95 // pred_fallthru
          _
        %s963 = sand.u32 %s37, 1
        %s964 = scalar_lea.sflag [#allocation5], %s963
        %s965 = sand.u32 %s359, 1
        %s966 = smul.addr %s965, 4
        %s967 = scalar_lea.vmem [#allocation18], %s966
        // Predicated region
        $region141: #{vit_forward.1} parent=95 // pred_check
          %p968 = pneg %p372
        $region142: #{vit_forward.1} parent=95 // pred_check_branch
          %970 = sbr.rel (%p968) target = $region144
        $region143: #{vit_forward.1} parent=95 // pred_region
          %971 = dma.done %s964, 64
        $region144: #{vit_forward.1} parent=95 // pred_fallthru
          _
        %s972 = sand.u32 %s37, 1
        %s973 = scalar_lea.sflag [#allocation5], %s972
        %s974 = sand.u32 %s385, 1
        %s975 = smul.addr %s974, 512
        %s976 = scalar_lea.vmem [#allocation19], %s975
        // Predicated region
        $region145: #{vit_forward.1} parent=95 // pred_check
          %p977 = pneg %p398
        $region146: #{vit_forward.1} parent=95 // pred_check_branch
          %979 = sbr.rel (%p977) target = $region148
        $region147: #{vit_forward.1} parent=95 // pred_region
          %980 = dma.done %s973, 8192
        $region148: #{vit_forward.1} parent=95 // pred_fallthru
          _
        %s981 = sand.u32 %s37, 1
        %s982 = scalar_lea.sflag [#allocation5], %s981
        %s983 = sand.u32 %s411, 1
        %s984 = smul.addr %s983, 2
        %s985 = scalar_lea.vmem [#allocation20], %s984
        // Predicated region
        $region149: #{vit_forward.1} parent=95 // pred_check
          %p986 = pneg %p424
        $region150: #{vit_forward.1} parent=95 // pred_check_branch
          %988 = sbr.rel (%p986) target = $region152
        $region151: #{vit_forward.1} parent=95 // pred_region
          %989 = dma.done %s982, 32
        $region152: #{vit_forward.1} parent=95 // pred_fallthru
          _
        // Predicated region
        $region153: #{vit_forward.1} parent=95 // pred_check
          %p990 = pneg %p445
        $region154: #{vit_forward.1} parent=95 // pred_check_branch
          %992 = sbr.rel (%p990) target = $region156
        $region155: #{vit_forward.1} parent=95 // pred_region
          %993 = dma.done [#allocation8], 32
        $region156: #{vit_forward.1} parent=95 // pred_fallthru
          _
        // Predicated region
        $region157: #{vit_forward.1} parent=95 // pred_check
          %p994 = pneg %p466
        $region158: #{vit_forward.1} parent=95 // pred_check_branch
          %996 = sbr.rel (%p994) target = $region160
        $region159: #{vit_forward.1} parent=95 // pred_region
          %997 = dma.done [#allocation23], 32
        $region160: #{vit_forward.1} parent=95 // pred_fallthru
          _
        // Predicated region
        $region161: #{vit_forward.1} parent=95 // pred_check
          %p998 = pneg %p487
        $region162: #{vit_forward.1} parent=95 // pred_check_branch
          %1000 = sbr.rel (%p998) target = $region164
        $region163: #{vit_forward.1} parent=95 // pred_region
          %1001 = dma.done [#allocation23], 2048
        $region164: #{vit_forward.1} parent=95 // pred_fallthru
          _
        // Predicated region
        $region165: #{vit_forward.1} parent=95 // pred_check
          %p1002 = pneg %p508
        $region166: #{vit_forward.1} parent=95 // pred_check_branch
          %1004 = sbr.rel (%p1002) target = $region168
        $region167: #{vit_forward.1} parent=95 // pred_region
          %1005 = dma.done [#allocation26], 16
        $region168: #{vit_forward.1} parent=95 // pred_fallthru
          _
        %p1006 = scmp.lt.s32.totalorder %s41, 1
        %s1007 = scalar_select %p1006, %s41, 1
        %s1008 = smul.addr %s1007, 2
        %s1009 = smul.addr %s1008, 8
        %s1010 = scalar_lea.vmem %s0, %s1009
        %p1011 = pneg %p70
        %p1012 = pneg %p67
        %p1013 = pneg %p91
        %p1014 = pneg %p88
        %p1015 = pneg %p112
        %p1016 = pneg %p109
        %s1017 = sand.u32 %s37, 1
        %s1018 = scalar_lea.sflag [#allocation5], %s1017
        %s1019 = sand.u32 %s125, 1
        %s1020 = smul.addr %s1019, 2
        %s1021 = scalar_lea.vmem [#allocation9], %s1020
        %p1022 = pneg %p138
        %p1023 = pneg %p135
        %s1024 = sand.u32 %s37, 1
        %s1025 = scalar_lea.sflag [#allocation5], %s1024
        %s1026 = sand.u32 %s151, 1
        %s1027 = smul.addr %s1026, 2
        %s1028 = scalar_lea.vmem [#allocation10], %s1027
        %p1029 = pneg %p164
        %p1030 = pneg %p161
        %s1031 = sand.u32 %s37, 1
        %s1032 = scalar_lea.sflag [#allocation5], %s1031
        %s1033 = sand.u32 %s177, 1
        %s1034 = smul.addr %s1033, 768
        %s1035 = scalar_lea.vmem [#allocation11], %s1034
        %p1036 = pneg %p190
        %p1037 = pneg %p187
        %s1038 = sand.u32 %s37, 1
        %s1039 = scalar_lea.sflag [#allocation5], %s1038
        %s1040 = sand.u32 %s203, 1
        %s1041 = smul.addr %s1040, 6
        %s1042 = scalar_lea.vmem [#allocation12], %s1041
        %p1043 = pneg %p216
        %p1044 = pneg %p213
        %s1045 = sand.u32 %s37, 1
        %s1046 = scalar_lea.sflag [#allocation5], %s1045
        %s1047 = sand.u32 %s229, 1
        %s1048 = smul.addr %s1047, 256
        %s1049 = scalar_lea.vmem [#allocation13], %s1048
        %p1050 = pneg %p242
        %p1051 = pneg %p239
        %s1052 = sand.u32 %s37, 1
        %s1053 = scalar_lea.sflag [#allocation5], %s1052
        %s1054 = sand.u32 %s255, 1
        %s1055 = smul.addr %s1054, 2
        %s1056 = scalar_lea.vmem [#allocation14], %s1055
        %p1057 = pneg %p268
        %p1058 = pneg %p265
        %s1059 = sand.u32 %s37, 1
        %s1060 = scalar_lea.sflag [#allocation5], %s1059
        %s1061 = sand.u32 %s281, 1
        %s1062 = smul.addr %s1061, 2
        %s1063 = scalar_lea.vmem [#allocation15], %s1062
        %p1064 = pneg %p294
        %p1065 = pneg %p291
        %s1066 = sand.u32 %s37, 1
        %s1067 = scalar_lea.sflag [#allocation5], %s1066
        %s1068 = sand.u32 %s307, 1
        %s1069 = smul.addr %s1068, 2
        %s1070 = scalar_lea.vmem [#allocation16], %s1069
        %p1071 = pneg %p320
        %p1072 = pneg %p317
        %s1073 = sand.u32 %s37, 1
        %s1074 = scalar_lea.sflag [#allocation5], %s1073
        %s1075 = sand.u32 %s333, 1
        %s1076 = smul.addr %s1075, 512
        %s1077 = scalar_lea.vmem [#allocation17], %s1076
        %p1078 = pneg %p346
        %p1079 = pneg %p343
        %s1080 = sand.u32 %s37, 1
        %s1081 = scalar_lea.sflag [#allocation5], %s1080
        %s1082 = sand.u32 %s359, 1
        %s1083 = smul.addr %s1082, 4
        %s1084 = scalar_lea.vmem [#allocation18], %s1083
        %p1085 = pneg %p372
        %p1086 = pneg %p369
        %s1087 = sand.u32 %s37, 1
        %s1088 = scalar_lea.sflag [#allocation5], %s1087
        %s1089 = sand.u32 %s385, 1
        %s1090 = smul.addr %s1089, 512
        %s1091 = scalar_lea.vmem [#allocation19], %s1090
        %p1092 = pneg %p398
        %p1093 = pneg %p395
        %s1094 = sand.u32 %s37, 1
        %s1095 = scalar_lea.sflag [#allocation5], %s1094
        %s1096 = sand.u32 %s411, 1
        %s1097 = smul.addr %s1096, 2
        %s1098 = scalar_lea.vmem [#allocation20], %s1097
        %p1099 = pneg %p424
        %p1100 = pneg %p421
        %p1101 = pneg %p445
        %p1102 = pneg %p442
        %p1103 = pneg %p466
        %p1104 = pneg %p463
        %p1105 = pneg %p487
        %p1106 = pneg %p484
        %p1107 = pneg %p508
        %p1108 = pneg %p505
        %p1109 = pneg %p534
        %p1110 = pneg %p531
        %s1111 = sand.u32 %s521, 1
        %s1112 = scalar_lea.sflag [#allocation6], %s1111
        %s1113 = sand.u32 %s521, 1
        %s1114 = scalar_lea.vmem [#allocation27], %s1113
        %p1115 = scmp.lt.s32.totalorder %s41, 1
        %s1116 = scalar_select %p1115, %s41, 1
        %s1117 = smul.addr %s1116, 2
        %s1118 = smul.addr %s1117, 8
        %s1119 = scalar_lea.vmem %s0, %s1118
        %p1121 = scmp.eq.s32.totalorder %s42, 0
        // Predicated region
        $region169: #{vit_forward.1} parent=95 // pred_check
          %p1122 = pneg %p1121
        $region170: #{vit_forward.1} parent=95 // pred_check_branch
          %1124 = sbr.rel (%p1122) target = $region172
        $region171: #{vit_forward.1} parent=95 // pred_region
          %v1125 = vld [vmem:[%s1119] sm:$0x1f]
          %v1126 = vld [vmem:[%s1119 + $0x8] sm:$0x1f]
          %v1127 = vpack.c.bf16 %v1125, %v1125
          %v1128 = vpack.c.bf16 %v1126, %v1126
          %v1129 = vld [vmem:[#allocation4] sm:$0xff]
          %v1130 = vld [vmem:[#allocation4 + $0x8] sm:$0xff]
          %v1131 = vld [vmem:[#allocation4 + $0x10] sm:$0xff]
          %v1132 = vld [vmem:[#allocation4 + $0x18] sm:$0xff]
          %v1133 = vld [vmem:[#allocation4 + $0x20] sm:$0xff]
          %v1134 = vld [vmem:[#allocation4 + $0x28] sm:$0xff]
          %v1135 = vld [vmem:[#allocation4 + $0x30] sm:$0xff]
          %v1136 = vld [vmem:[#allocation4 + $0x38] sm:$0xff]
          %v1137 = vld [vmem:[#allocation4 + $0x40] sm:$0xff]
          %v1138 = vld [vmem:[#allocation4 + $0x48] sm:$0xff]
          %v1139 = vld [vmem:[#allocation4 + $0x50] sm:$0xff]
          %v1140 = vld [vmem:[#allocation4 + $0x58] sm:$0xff]
          %v1141 = vld [vmem:[#allocation4 + $0x60] sm:$0xff]
          %v1142 = vld [vmem:[#allocation4 + $0x68] sm:$0xff]
          %v1143 = vld [vmem:[#allocation4 + $0x70] sm:$0xff]
          %v1144 = vld [vmem:[#allocation4 + $0x78] sm:$0xff]
          %v1145 = vld [vmem:[#allocation4 + $0x80] sm:$0xff]
          %v1146 = vld [vmem:[#allocation4 + $0x88] sm:$0xff]
          %v1147 = vld [vmem:[#allocation4 + $0x90] sm:$0xff]
          %v1148 = vld [vmem:[#allocation4 + $0x98] sm:$0xff]
          %v1149 = vld [vmem:[#allocation4 + $0xa0] sm:$0xff]
          %v1150 = vld [vmem:[#allocation4 + $0xa8] sm:$0xff]
          %v1151 = vld [vmem:[#allocation4 + $0xb0] sm:$0xff]
          %v1152 = vld [vmem:[#allocation4 + $0xb8] sm:$0xff]
          %v1153 = vld [vmem:[#allocation4 + $0xc0] sm:$0xff]
          %v1154 = vld [vmem:[#allocation4 + $0xc8] sm:$0xff]
          %v1155 = vld [vmem:[#allocation4 + $0xd0] sm:$0xff]
          %v1156 = vld [vmem:[#allocation4 + $0xd8] sm:$0xff]
          %v1157 = vld [vmem:[#allocation4 + $0xe0] sm:$0xff]
          %v1158 = vld [vmem:[#allocation4 + $0xe8] sm:$0xff]
          %v1159 = vld [vmem:[#allocation4 + $0xf0] sm:$0xff]
          %v1160 = vld [vmem:[#allocation4 + $0xf8] sm:$0xff]
          %v1161 = vld [vmem:[#allocation7] sm:$0x1f]
          %v1162 = vld [vmem:[#allocation7 + $0x8] sm:$0x1f]
          %v1195 = vunpack.c.l.b16 %v1129
          %v1196 = vunpack.c.h.b16 %v1129
          %v1197 = vunpack.c.l.b16 %v1130
          %v1198 = vunpack.c.h.b16 %v1130
          %v1199 = vunpack.c.l.b16 %v1131
          %v1200 = vunpack.c.h.b16 %v1131
          %v1201 = vunpack.c.l.b16 %v1132
          %v1202 = vunpack.c.h.b16 %v1132
          %v1203 = vunpack.c.l.b16 %v1133
          %v1204 = vunpack.c.h.b16 %v1133
          %v1205 = vunpack.c.l.b16 %v1134
          %v1206 = vunpack.c.h.b16 %v1134
          %v1207 = vunpack.c.l.b16 %v1135
          %v1208 = vunpack.c.h.b16 %v1135
          %v1209 = vunpack.c.l.b16 %v1136
          %v1210 = vunpack.c.h.b16 %v1136
          %v1211 = vunpack.c.l.b16 %v1137
          %v1212 = vunpack.c.h.b16 %v1137
          %v1213 = vunpack.c.l.b16 %v1138
          %v1214 = vunpack.c.h.b16 %v1138
          %v1215 = vunpack.c.l.b16 %v1139
          %v1216 = vunpack.c.h.b16 %v1139
          %v1217 = vunpack.c.l.b16 %v1140
          %v1218 = vunpack.c.h.b16 %v1140
          %v1219 = vunpack.c.l.b16 %v1141
          %v1220 = vunpack.c.h.b16 %v1141
          %v1221 = vunpack.c.l.b16 %v1142
          %v1222 = vunpack.c.h.b16 %v1142
          %v1223 = vunpack.c.l.b16 %v1143
          %v1224 = vunpack.c.h.b16 %v1143
          %v1225 = vunpack.c.l.b16 %v1144
          %v1226 = vunpack.c.h.b16 %v1144
          %v1227 = vunpack.c.l.b16 %v1145
          %v1228 = vunpack.c.h.b16 %v1145
          %v1229 = vunpack.c.l.b16 %v1146
          %v1230 = vunpack.c.h.b16 %v1146
          %v1231 = vunpack.c.l.b16 %v1147
          %v1232 = vunpack.c.h.b16 %v1147
          %v1233 = vunpack.c.l.b16 %v1148
          %v1234 = vunpack.c.h.b16 %v1148
          %v1235 = vunpack.c.l.b16 %v1149
          %v1236 = vunpack.c.h.b16 %v1149
          %v1237 = vunpack.c.l.b16 %v1150
          %v1238 = vunpack.c.h.b16 %v1150
          %v1239 = vunpack.c.l.b16 %v1151
          %v1240 = vunpack.c.h.b16 %v1151
          %v1241 = vunpack.c.l.b16 %v1152
          %v1242 = vunpack.c.h.b16 %v1152
          %v1243 = vunpack.c.l.b16 %v1153
          %v1244 = vunpack.c.h.b16 %v1153
          %v1245 = vunpack.c.l.b16 %v1154
          %v1246 = vunpack.c.h.b16 %v1154
          %v1247 = vunpack.c.l.b16 %v1155
          %v1248 = vunpack.c.h.b16 %v1155
          %v1249 = vunpack.c.l.b16 %v1156
          %v1250 = vunpack.c.h.b16 %v1156
          %v1251 = vunpack.c.l.b16 %v1157
          %v1252 = vunpack.c.h.b16 %v1157
          %v1253 = vunpack.c.l.b16 %v1158
          %v1254 = vunpack.c.h.b16 %v1158
          %v1255 = vunpack.c.l.b16 %v1159
          %v1256 = vunpack.c.h.b16 %v1159
          %v1257 = vunpack.c.l.b16 %v1160
          %v1258 = vunpack.c.h.b16 %v1160
          %v1259 = vpack.c.b16 %v1197, %v1195
          %v1260 = vpack.c.b16 %v1198, %v1196
          %v1261 = vpack.c.b16 %v1201, %v1199
          %v1262 = vpack.c.b16 %v1202, %v1200
          %v1263 = vpack.c.b16 %v1205, %v1203
          %v1264 = vpack.c.b16 %v1206, %v1204
          %v1265 = vpack.c.b16 %v1209, %v1207
          %v1266 = vpack.c.b16 %v1210, %v1208
          %v1267 = vpack.c.b16 %v1213, %v1211
          %v1268 = vpack.c.b16 %v1214, %v1212
          %v1269 = vpack.c.b16 %v1217, %v1215
          %v1270 = vpack.c.b16 %v1218, %v1216
          %v1271 = vpack.c.b16 %v1221, %v1219
          %v1272 = vpack.c.b16 %v1222, %v1220
          %v1273 = vpack.c.b16 %v1225, %v1223
          %v1274 = vpack.c.b16 %v1226, %v1224
          %v1275 = vpack.c.b16 %v1229, %v1227
          %v1276 = vpack.c.b16 %v1230, %v1228
          %v1277 = vpack.c.b16 %v1233, %v1231
          %v1278 = vpack.c.b16 %v1234, %v1232
          %v1279 = vpack.c.b16 %v1237, %v1235
          %v1280 = vpack.c.b16 %v1238, %v1236
          %v1281 = vpack.c.b16 %v1241, %v1239
          %v1282 = vpack.c.b16 %v1242, %v1240
          %v1283 = vpack.c.b16 %v1245, %v1243
          %v1284 = vpack.c.b16 %v1246, %v1244
          %v1285 = vpack.c.b16 %v1249, %v1247
          %v1286 = vpack.c.b16 %v1250, %v1248
          %v1287 = vpack.c.b16 %v1253, %v1251
          %v1288 = vpack.c.b16 %v1254, %v1252
          %v1289 = vpack.c.b16 %v1257, %v1255
          %v1290 = vpack.c.b16 %v1258, %v1256
          %1323 = vmatprep.subr.bf16.mxu0 %v1274
          %1324 = vmatpush1.bf16.msra.mxu0 %v1273
          %1325 = vmatprep.subr.bf16.mxu0 %v1272
          %1326 = vmatpush1.bf16.msra.mxu0 %v1271
          %1327 = vmatprep.subr.bf16.mxu0 %v1270
          %1328 = vmatpush1.bf16.msra.mxu0 %v1269
          %1329 = vmatprep.subr.bf16.mxu0 %v1268
          %1330 = vmatpush1.bf16.msra.mxu0 %v1267
          %1331 = vmatprep.subr.bf16.mxu0 %v1266
          %1332 = vmatpush1.bf16.msra.mxu0 %v1265
          %1333 = vmatprep.subr.bf16.mxu0 %v1264
          %1334 = vmatpush1.bf16.msra.mxu0 %v1263
          %1335 = vmatprep.subr.bf16.mxu0 %v1262
          %1336 = vmatpush1.bf16.msra.mxu0 %v1261
          %1337 = vmatprep.subr.bf16.mxu0 %v1260
          %1338 = vmatpush1.bf16.msra.mxu0 %v1259
          %1339 = vmatprep.subr.bf16.mxu0 %v1290
          %1340 = vmatpush2.bf16.msra.mxu0 %v1289
          %1341 = vmatprep.subr.bf16.mxu0 %v1288
          %1342 = vmatpush2.bf16.msra.mxu0 %v1287
          %1343 = vmatprep.subr.bf16.mxu0 %v1286
          %1344 = vmatpush2.bf16.msra.mxu0 %v1285
          %1345 = vmatprep.subr.bf16.mxu0 %v1284
          %1346 = vmatpush2.bf16.msra.mxu0 %v1283
          %1347 = vmatprep.subr.bf16.mxu0 %v1282
          %1348 = vmatpush2.bf16.msra.mxu0 %v1281
          %1349 = vmatprep.subr.bf16.mxu0 %v1280
          %1350 = vmatpush2.bf16.msra.mxu0 %v1279
          %1351 = vmatprep.subr.bf16.mxu0 %v1278
          %1352 = vmatpush2.bf16.msra.mxu0 %v1277
          %1353 = vmatprep.subr.bf16.mxu0 %v1276
          %1354 = vmatpush2.bf16.msra.mxu0 %v1275
          %1355 = vmatprep.mubr.bf16.mxu0 %v1128
          %1356 = vmatmul.mubr.bf16.gmra.mxu0 %v1127
          %v1357 = vpop.f32.mrf.mxu0
          %v1358 = vadd.f32 %v1161, %v1357
          %v1359 = vpop.f32.mrf.mxu0
          %v1360 = vadd.f32 %v1162, %v1359
          %v1361 = vpop.f32.mrf.mxu0
          %v1362 = vpop.f32.mrf.mxu0
          %1363 = vdwg.mxu0
          %1364 = vst [vmem:[#allocation2] sm:$0x1f] %v1358
          %1365 = vst [vmem:[#allocation2 + $0x8] sm:$0x1f] %v1360
        $region172: #{vit_forward.1} parent=95 // pred_fallthru
          _
        %v1366 = vld [vmem:[#allocation2] sm:$0x1f]
        %v1367 = vld [vmem:[#allocation2 + $0x8] sm:$0x1f]
        %v1368 = vld [vmem:[%s886] sm:$0x3]
        %v1369 = vld [vmem:[%s895] sm:$0x3]
        %vm1370 = vcmask 1044480
        %v1371 = vsel %vm1370, %v1366, 0.0
        %v1372 = vsel %vm1370, %v1367, 0.0
        %v1373 = vadd.f32 %v1371, %v1372
        %1374 = vadd.xlane.f32.xlu0 %v1373
        %v1375 = vpop.xlane.xlu0 %1374
        %v1376 = vrcp.pop 256.0
        %v1377 = vmul.f32 %v1375, %v1376
        %v1378 = vsub.f32 %v1366, %v1377
        %v1379 = vsub.f32 %v1367, %v1377
        %v1380 = vmul.f32 %v1378, %v1378
        %v1381 = vmul.f32 %v1379, %v1379
        %v1382 = vsel %vm1370, %v1380, 0.0
        %v1383 = vsel %vm1370, %v1381, 0.0
        %v1384 = vadd.f32 %v1382, %v1383
        %1385 = vadd.xlane.f32.xlu0 %v1384
        %v1386 = vpop.xlane.xlu0 %1385
        %v1387 = vmul.f32 %v1386, %v1376
        %v1388 = vadd.f32 %v1387, 1e-12
        %v1389 = vrsqrt.pop %v1388
        %v1390 = vmul.f32 %v1378, %v1389
        %v1391 = vmul.f32 %v1379, %v1389
        %v1393 = vlaneseq
        %v1394 = vshrl.u32 %v1393, 7
        %v1395 = vsub.s32 0, %v1394
        %v1396 = vrot.slane %v1368, %v1395
        %v1397 = vlaneseq
        %v1398 = vshrl.u32 %v1397, 7
        %v1399 = vsub.s32 1, %v1398
        %v1400 = vrot.slane %v1368, %v1399
        %v1403 = vmul.f32 %v1390, %v1396
        %v1404 = vmul.f32 %v1391, %v1400
        %v1406 = vlaneseq
        %v1407 = vshrl.u32 %v1406, 7
        %v1408 = vsub.s32 0, %v1407
        %v1409 = vrot.slane %v1369, %v1408
        %v1410 = vlaneseq
        %v1411 = vshrl.u32 %v1410, 7
        %v1412 = vsub.s32 1, %v1411
        %v1413 = vrot.slane %v1369, %v1412
        %v1416 = vadd.f32 %v1403, %v1409
        %v1417 = vadd.f32 %v1404, %v1413
        %v1418 = vpack.c.bf16 %v1416, %v1416
        %v1419 = vpack.c.bf16 %v1417, %v1417
        %v1420 = vld [vmem:[%s904] sm:$0xff]
        %v1421 = vld [vmem:[%s904 + $0x8] sm:$0xff]
        %v1422 = vld [vmem:[%s904 + $0x10] sm:$0xff]
        %v1423 = vld [vmem:[%s904 + $0x18] sm:$0xff]
        %v1424 = vld [vmem:[%s904 + $0x20] sm:$0xff]
        %v1425 = vld [vmem:[%s904 + $0x28] sm:$0xff]
        %v1426 = vld [vmem:[%s904 + $0x30] sm:$0xff]
        %v1427 = vld [vmem:[%s904 + $0x38] sm:$0xff]
        %v1428 = vld [vmem:[%s904 + $0x40] sm:$0xff]
        %v1429 = vld [vmem:[%s904 + $0x48] sm:$0xff]
        %v1430 = vld [vmem:[%s904 + $0x50] sm:$0xff]
        %v1431 = vld [vmem:[%s904 + $0x58] sm:$0xff]
        %v1432 = vld [vmem:[%s904 + $0x60] sm:$0xff]
        %v1433 = vld [vmem:[%s904 + $0x68] sm:$0xff]
        %v1434 = vld [vmem:[%s904 + $0x70] sm:$0xff]
        %v1435 = vld [vmem:[%s904 + $0x78] sm:$0xff]
        %v1436 = vld [vmem:[%s904 + $0x80] sm:$0xff]
        %v1437 = vld [vmem:[%s904 + $0x88] sm:$0xff]
        %v1438 = vld [vmem:[%s904 + $0x90] sm:$0xff]
        %v1439 = vld [vmem:[%s904 + $0x98] sm:$0xff]
        %v1440 = vld [vmem:[%s904 + $0xa0] sm:$0xff]
        %v1441 = vld [vmem:[%s904 + $0xa8] sm:$0xff]
        %v1442 = vld [vmem:[%s904 + $0xb0] sm:$0xff]
        %v1443 = vld [vmem:[%s904 + $0xb8] sm:$0xff]
        %v1444 = vld [vmem:[%s904 + $0xc0] sm:$0xff]
        %v1445 = vld [vmem:[%s904 + $0xc8] sm:$0xff]
        %v1446 = vld [vmem:[%s904 + $0xd0] sm:$0xff]
        %v1447 = vld [vmem:[%s904 + $0xd8] sm:$0xff]
        %v1448 = vld [vmem:[%s904 + $0xe0] sm:$0xff]
        %v1449 = vld [vmem:[%s904 + $0xe8] sm:$0xff]
        %v1450 = vld [vmem:[%s904 + $0xf0] sm:$0xff]
        %v1451 = vld [vmem:[%s904 + $0xf8] sm:$0xff]
        %v1452 = vld [vmem:[%s904 + $0x100] sm:$0xff]
        %v1453 = vld [vmem:[%s904 + $0x108] sm:$0xff]
        %v1454 = vld [vmem:[%s904 + $0x110] sm:$0xff]
        %v1455 = vld [vmem:[%s904 + $0x118] sm:$0xff]
        %v1456 = vld [vmem:[%s904 + $0x120] sm:$0xff]
        %v1457 = vld [vmem:[%s904 + $0x128] sm:$0xff]
        %v1458 = vld [vmem:[%s904 + $0x130] sm:$0xff]
        %v1459 = vld [vmem:[%s904 + $0x138] sm:$0xff]
        %v1460 = vld [vmem:[%s904 + $0x140] sm:$0xff]
        %v1461 = vld [vmem:[%s904 + $0x148] sm:$0xff]
        %v1462 = vld [vmem:[%s904 + $0x150] sm:$0xff]
        %v1463 = vld [vmem:[%s904 + $0x158] sm:$0xff]
        %v1464 = vld [vmem:[%s904 + $0x160] sm:$0xff]
        %v1465 = vld [vmem:[%s904 + $0x168] sm:$0xff]
        %v1466 = vld [vmem:[%s904 + $0x170] sm:$0xff]
        %v1467 = vld [vmem:[%s904 + $0x178] sm:$0xff]
        %v1468 = vld [vmem:[%s904 + $0x180] sm:$0xff]
        %v1469 = vld [vmem:[%s904 + $0x188] sm:$0xff]
        %v1470 = vld [vmem:[%s904 + $0x190] sm:$0xff]
        %v1471 = vld [vmem:[%s904 + $0x198] sm:$0xff]
        %v1472 = vld [vmem:[%s904 + $0x1a0] sm:$0xff]
        %v1473 = vld [vmem:[%s904 + $0x1a8] sm:$0xff]
        %v1474 = vld [vmem:[%s904 + $0x1b0] sm:$0xff]
        %v1475 = vld [vmem:[%s904 + $0x1b8] sm:$0xff]
        %v1476 = vld [vmem:[%s904 + $0x1c0] sm:$0xff]
        %v1477 = vld [vmem:[%s904 + $0x1c8] sm:$0xff]
        %v1478 = vld [vmem:[%s904 + $0x1d0] sm:$0xff]
        %v1479 = vld [vmem:[%s904 + $0x1d8] sm:$0xff]
        %v1480 = vld [vmem:[%s904 + $0x1e0] sm:$0xff]
        %v1481 = vld [vmem:[%s904 + $0x1e8] sm:$0xff]
        %v1482 = vld [vmem:[%s904 + $0x1f0] sm:$0xff]
        %v1483 = vld [vmem:[%s904 + $0x1f8] sm:$0xff]
        %v1484 = vld [vmem:[%s904 + $0x200] sm:$0xff]
        %v1485 = vld [vmem:[%s904 + $0x208] sm:$0xff]
        %v1486 = vld [vmem:[%s904 + $0x210] sm:$0xff]
        %v1487 = vld [vmem:[%s904 + $0x218] sm:$0xff]
        %v1488 = vld [vmem:[%s904 + $0x220] sm:$0xff]
        %v1489 = vld [vmem:[%s904 + $0x228] sm:$0xff]
        %v1490 = vld [vmem:[%s904 + $0x230] sm:$0xff]
        %v1491 = vld [vmem:[%s904 + $0x238] sm:$0xff]
        %v1492 = vld [vmem:[%s904 + $0x240] sm:$0xff]
        %v1493 = vld [vmem:[%s904 + $0x248] sm:$0xff]
        %v1494 = vld [vmem:[%s904 + $0x250] sm:$0xff]
        %v1495 = vld [vmem:[%s904 + $0x258] sm:$0xff]
        %v1496 = vld [vmem:[%s904 + $0x260] sm:$0xff]
        %v1497 = vld [vmem:[%s904 + $0x268] sm:$0xff]
        %v1498 = vld [vmem:[%s904 + $0x270] sm:$0xff]
        %v1499 = vld [vmem:[%s904 + $0x278] sm:$0xff]
        %v1500 = vld [vmem:[%s904 + $0x280] sm:$0xff]
        %v1501 = vld [vmem:[%s904 + $0x288] sm:$0xff]
        %v1502 = vld [vmem:[%s904 + $0x290] sm:$0xff]
        %v1503 = vld [vmem:[%s904 + $0x298] sm:$0xff]
        %v1504 = vld [vmem:[%s904 + $0x2a0] sm:$0xff]
        %v1505 = vld [vmem:[%s904 + $0x2a8] sm:$0xff]
        %v1506 = vld [vmem:[%s904 + $0x2b0] sm:$0xff]
        %v1507 = vld [vmem:[%s904 + $0x2b8] sm:$0xff]
        %v1508 = vld [vmem:[%s904 + $0x2c0] sm:$0xff]
        %v1509 = vld [vmem:[%s904 + $0x2c8] sm:$0xff]
        %v1510 = vld [vmem:[%s904 + $0x2d0] sm:$0xff]
        %v1511 = vld [vmem:[%s904 + $0x2d8] sm:$0xff]
        %v1512 = vld [vmem:[%s904 + $0x2e0] sm:$0xff]
        %v1513 = vld [vmem:[%s904 + $0x2e8] sm:$0xff]
        %v1514 = vld [vmem:[%s904 + $0x2f0] sm:$0xff]
        %v1515 = vld [vmem:[%s904 + $0x2f8] sm:$0xff]
        %v1516 = vld [vmem:[%s913] sm:$0x3f]
        %v1518 = vlaneseq
        %v1519 = vshrl.u32 %v1518, 7
        %v1520 = vsub.s32 0, %v1519
        %v1521 = vrot.slane %v1516, %v1520
        %v1522 = vlaneseq
        %v1523 = vshrl.u32 %v1522, 7
        %v1524 = vsub.s32 1, %v1523
        %v1525 = vrot.slane %v1516, %v1524
        %v1526 = vlaneseq
        %v1527 = vshrl.u32 %v1526, 7
        %v1528 = vsub.s32 2, %v1527
        %v1529 = vrot.slane %v1516, %v1528
        %v1530 = vlaneseq
        %v1531 = vshrl.u32 %v1530, 7
        %v1532 = vsub.s32 3, %v1531
        %v1533 = vrot.slane %v1516, %v1532
        %v1534 = vlaneseq
        %v1535 = vshrl.u32 %v1534, 7
        %v1536 = vsub.s32 4, %v1535
        %v1537 = vrot.slane %v1516, %v1536
        %v1538 = vlaneseq
        %v1539 = vshrl.u32 %v1538, 7
        %v1540 = vsub.s32 5, %v1539
        %v1541 = vrot.slane %v1516, %v1540
        %v1644 = vunpack.c.l.b16 %v1420
        %v1645 = vunpack.c.h.b16 %v1420
        %v1646 = vunpack.c.l.b16 %v1421
        %v1647 = vunpack.c.h.b16 %v1421
        %v1648 = vunpack.c.l.b16 %v1422
        %v1649 = vunpack.c.h.b16 %v1422
        %v1650 = vunpack.c.l.b16 %v1423
        %v1651 = vunpack.c.h.b16 %v1423
        %v1652 = vunpack.c.l.b16 %v1424
        %v1653 = vunpack.c.h.b16 %v1424
        %v1654 = vunpack.c.l.b16 %v1425
        %v1655 = vunpack.c.h.b16 %v1425
        %v1656 = vunpack.c.l.b16 %v1426
        %v1657 = vunpack.c.h.b16 %v1426
        %v1658 = vunpack.c.l.b16 %v1427
        %v1659 = vunpack.c.h.b16 %v1427
        %v1660 = vunpack.c.l.b16 %v1428
        %v1661 = vunpack.c.h.b16 %v1428
        %v1662 = vunpack.c.l.b16 %v1429
        %v1663 = vunpack.c.h.b16 %v1429
        %v1664 = vunpack.c.l.b16 %v1430
        %v1665 = vunpack.c.h.b16 %v1430
        %v1666 = vunpack.c.l.b16 %v1431
        %v1667 = vunpack.c.h.b16 %v1431
        %v1668 = vunpack.c.l.b16 %v1432
        %v1669 = vunpack.c.h.b16 %v1432
        %v1670 = vunpack.c.l.b16 %v1433
        %v1671 = vunpack.c.h.b16 %v1433
        %v1672 = vunpack.c.l.b16 %v1434
        %v1673 = vunpack.c.h.b16 %v1434
        %v1674 = vunpack.c.l.b16 %v1435
        %v1675 = vunpack.c.h.b16 %v1435
        %v1676 = vunpack.c.l.b16 %v1436
        %v1677 = vunpack.c.h.b16 %v1436
        %v1678 = vunpack.c.l.b16 %v1437
        %v1679 = vunpack.c.h.b16 %v1437
        %v1680 = vunpack.c.l.b16 %v1438
        %v1681 = vunpack.c.h.b16 %v1438
        %v1682 = vunpack.c.l.b16 %v1439
        %v1683 = vunpack.c.h.b16 %v1439
        %v1684 = vunpack.c.l.b16 %v1440
        %v1685 = vunpack.c.h.b16 %v1440
        %v1686 = vunpack.c.l.b16 %v1441
        %v1687 = vunpack.c.h.b16 %v1441
        %v1688 = vunpack.c.l.b16 %v1442
        %v1689 = vunpack.c.h.b16 %v1442
        %v1690 = vunpack.c.l.b16 %v1443
        %v1691 = vunpack.c.h.b16 %v1443
        %v1692 = vunpack.c.l.b16 %v1444
        %v1693 = vunpack.c.h.b16 %v1444
        %v1694 = vunpack.c.l.b16 %v1445
        %v1695 = vunpack.c.h.b16 %v1445
        %v1696 = vunpack.c.l.b16 %v1446
        %v1697 = vunpack.c.h.b16 %v1446
        %v1698 = vunpack.c.l.b16 %v1447
        %v1699 = vunpack.c.h.b16 %v1447
        %v1700 = vunpack.c.l.b16 %v1448
        %v1701 = vunpack.c.h.b16 %v1448
        %v1702 = vunpack.c.l.b16 %v1449
        %v1703 = vunpack.c.h.b16 %v1449
        %v1704 = vunpack.c.l.b16 %v1450
        %v1705 = vunpack.c.h.b16 %v1450
        %v1706 = vunpack.c.l.b16 %v1451
        %v1707 = vunpack.c.h.b16 %v1451
        %v1708 = vunpack.c.l.b16 %v1452
        %v1709 = vunpack.c.h.b16 %v1452
        %v1710 = vunpack.c.l.b16 %v1453
        %v1711 = vunpack.c.h.b16 %v1453
        %v1712 = vunpack.c.l.b16 %v1454
        %v1713 = vunpack.c.h.b16 %v1454
        %v1714 = vunpack.c.l.b16 %v1455
        %v1715 = vunpack.c.h.b16 %v1455
        %v1716 = vunpack.c.l.b16 %v1456
        %v1717 = vunpack.c.h.b16 %v1456
        %v1718 = vunpack.c.l.b16 %v1457
        %v1719 = vunpack.c.h.b16 %v1457
        %v1720 = vunpack.c.l.b16 %v1458
        %v1721 = vunpack.c.h.b16 %v1458
        %v1722 = vunpack.c.l.b16 %v1459
        %v1723 = vunpack.c.h.b16 %v1459
        %v1724 = vunpack.c.l.b16 %v1460
        %v1725 = vunpack.c.h.b16 %v1460
        %v1726 = vunpack.c.l.b16 %v1461
        %v1727 = vunpack.c.h.b16 %v1461
        %v1728 = vunpack.c.l.b16 %v1462
        %v1729 = vunpack.c.h.b16 %v1462
        %v1730 = vunpack.c.l.b16 %v1463
        %v1731 = vunpack.c.h.b16 %v1463
        %v1732 = vunpack.c.l.b16 %v1464
        %v1733 = vunpack.c.h.b16 %v1464
        %v1734 = vunpack.c.l.b16 %v1465
        %v1735 = vunpack.c.h.b16 %v1465
        %v1736 = vunpack.c.l.b16 %v1466
        %v1737 = vunpack.c.h.b16 %v1466
        %v1738 = vunpack.c.l.b16 %v1467
        %v1739 = vunpack.c.h.b16 %v1467
        %v1740 = vunpack.c.l.b16 %v1468
        %v1741 = vunpack.c.h.b16 %v1468
        %v1742 = vunpack.c.l.b16 %v1469
        %v1743 = vunpack.c.h.b16 %v1469
        %v1744 = vunpack.c.l.b16 %v1470
        %v1745 = vunpack.c.h.b16 %v1470
        %v1746 = vunpack.c.l.b16 %v1471
        %v1747 = vunpack.c.h.b16 %v1471
        %v1748 = vunpack.c.l.b16 %v1472
        %v1749 = vunpack.c.h.b16 %v1472
        %v1750 = vunpack.c.l.b16 %v1473
        %v1751 = vunpack.c.h.b16 %v1473
        %v1752 = vunpack.c.l.b16 %v1474
        %v1753 = vunpack.c.h.b16 %v1474
        %v1754 = vunpack.c.l.b16 %v1475
        %v1755 = vunpack.c.h.b16 %v1475
        %v1756 = vunpack.c.l.b16 %v1476
        %v1757 = vunpack.c.h.b16 %v1476
        %v1758 = vunpack.c.l.b16 %v1477
        %v1759 = vunpack.c.h.b16 %v1477
        %v1760 = vunpack.c.l.b16 %v1478
        %v1761 = vunpack.c.h.b16 %v1478
        %v1762 = vunpack.c.l.b16 %v1479
        %v1763 = vunpack.c.h.b16 %v1479
        %v1764 = vunpack.c.l.b16 %v1480
        %v1765 = vunpack.c.h.b16 %v1480
        %v1766 = vunpack.c.l.b16 %v1481
        %v1767 = vunpack.c.h.b16 %v1481
        %v1768 = vunpack.c.l.b16 %v1482
        %v1769 = vunpack.c.h.b16 %v1482
        %v1770 = vunpack.c.l.b16 %v1483
        %v1771 = vunpack.c.h.b16 %v1483
        %v1772 = vunpack.c.l.b16 %v1484
        %v1773 = vunpack.c.h.b16 %v1484
        %v1774 = vunpack.c.l.b16 %v1485
        %v1775 = vunpack.c.h.b16 %v1485
        %v1776 = vunpack.c.l.b16 %v1486
        %v1777 = vunpack.c.h.b16 %v1486
        %v1778 = vunpack.c.l.b16 %v1487
        %v1779 = vunpack.c.h.b16 %v1487
        %v1780 = vunpack.c.l.b16 %v1488
        %v1781 = vunpack.c.h.b16 %v1488
        %v1782 = vunpack.c.l.b16 %v1489
        %v1783 = vunpack.c.h.b16 %v1489
        %v1784 = vunpack.c.l.b16 %v1490
        %v1785 = vunpack.c.h.b16 %v1490
        %v1786 = vunpack.c.l.b16 %v1491
        %v1787 = vunpack.c.h.b16 %v1491
        %v1788 = vunpack.c.l.b16 %v1492
        %v1789 = vunpack.c.h.b16 %v1492
        %v1790 = vunpack.c.l.b16 %v1493
        %v1791 = vunpack.c.h.b16 %v1493
        %v1792 = vunpack.c.l.b16 %v1494
        %v1793 = vunpack.c.h.b16 %v1494
        %v1794 = vunpack.c.l.b16 %v1495
        %v1795 = vunpack.c.h.b16 %v1495
        %v1796 = vunpack.c.l.b16 %v1496
        %v1797 = vunpack.c.h.b16 %v1496
        %v1798 = vunpack.c.l.b16 %v1497
        %v1799 = vunpack.c.h.b16 %v1497
        %v1800 = vunpack.c.l.b16 %v1498
        %v1801 = vunpack.c.h.b16 %v1498
        %v1802 = vunpack.c.l.b16 %v1499
        %v1803 = vunpack.c.h.b16 %v1499
        %v1804 = vunpack.c.l.b16 %v1500
        %v1805 = vunpack.c.h.b16 %v1500
        %v1806 = vunpack.c.l.b16 %v1501
        %v1807 = vunpack.c.h.b16 %v1501
        %v1808 = vunpack.c.l.b16 %v1502
        %v1809 = vunpack.c.h.b16 %v1502
        %v1810 = vunpack.c.l.b16 %v1503
        %v1811 = vunpack.c.h.b16 %v1503
        %v1812 = vunpack.c.l.b16 %v1504
        %v1813 = vunpack.c.h.b16 %v1504
        %v1814 = vunpack.c.l.b16 %v1505
        %v1815 = vunpack.c.h.b16 %v1505
        %v1816 = vunpack.c.l.b16 %v1506
        %v1817 = vunpack.c.h.b16 %v1506
        %v1818 = vunpack.c.l.b16 %v1507
        %v1819 = vunpack.c.h.b16 %v1507
        %v1820 = vunpack.c.l.b16 %v1508
        %v1821 = vunpack.c.h.b16 %v1508
        %v1822 = vunpack.c.l.b16 %v1509
        %v1823 = vunpack.c.h.b16 %v1509
        %v1824 = vunpack.c.l.b16 %v1510
        %v1825 = vunpack.c.h.b16 %v1510
        %v1826 = vunpack.c.l.b16 %v1511
        %v1827 = vunpack.c.h.b16 %v1511
        %v1828 = vunpack.c.l.b16 %v1512
        %v1829 = vunpack.c.h.b16 %v1512
        %v1830 = vunpack.c.l.b16 %v1513
        %v1831 = vunpack.c.h.b16 %v1513
        %v1832 = vunpack.c.l.b16 %v1514
        %v1833 = vunpack.c.h.b16 %v1514
        %v1834 = vunpack.c.l.b16 %v1515
        %v1835 = vunpack.c.h.b16 %v1515
        %v1836 = vpack.c.b16 %v1650, %v1644
        %v1837 = vpack.c.b16 %v1651, %v1645
        %v1838 = vpack.c.b16 %v1652, %v1646
        %v1839 = vpack.c.b16 %v1653, %v1647
        %v1840 = vpack.c.b16 %v1654, %v1648
        %v1841 = vpack.c.b16 %v1655, %v1649
        %v1842 = vpack.c.b16 %v1662, %v1656
        %v1843 = vpack.c.b16 %v1663, %v1657
        %v1844 = vpack.c.b16 %v1664, %v1658
        %v1845 = vpack.c.b16 %v1665, %v1659
        %v1846 = vpack.c.b16 %v1666, %v1660
        %v1847 = vpack.c.b16 %v1667, %v1661
        %v1848 = vpack.c.b16 %v1674, %v1668
        %v1849 = vpack.c.b16 %v1675, %v1669
        %v1850 = vpack.c.b16 %v1676, %v1670
        %v1851 = vpack.c.b16 %v1677, %v1671
        %v1852 = vpack.c.b16 %v1678, %v1672
        %v1853 = vpack.c.b16 %v1679, %v1673
        %v1854 = vpack.c.b16 %v1686, %v1680
        %v1855 = vpack.c.b16 %v1687, %v1681
        %v1856 = vpack.c.b16 %v1688, %v1682
        %v1857 = vpack.c.b16 %v1689, %v1683
        %v1858 = vpack.c.b16 %v1690, %v1684
        %v1859 = vpack.c.b16 %v1691, %v1685
        %v1860 = vpack.c.b16 %v1698, %v1692
        %v1861 = vpack.c.b16 %v1699, %v1693
        %v1862 = vpack.c.b16 %v1700, %v1694
        %v1863 = vpack.c.b16 %v1701, %v1695
        %v1864 = vpack.c.b16 %v1702, %v1696
        %v1865 = vpack.c.b16 %v1703, %v1697
        %v1866 = vpack.c.b16 %v1710, %v1704
        %v1867 = vpack.c.b16 %v1711, %v1705
        %v1868 = vpack.c.b16 %v1712, %v1706
        %v1869 = vpack.c.b16 %v1713, %v1707
        %v1870 = vpack.c.b16 %v1714, %v1708
        %v1871 = vpack.c.b16 %v1715, %v1709
        %v1872 = vpack.c.b16 %v1722, %v1716
        %v1873 = vpack.c.b16 %v1723, %v1717
        %v1874 = vpack.c.b16 %v1724, %v1718
        %v1875 = vpack.c.b16 %v1725, %v1719
        %v1876 = vpack.c.b16 %v1726, %v1720
        %v1877 = vpack.c.b16 %v1727, %v1721
        %v1878 = vpack.c.b16 %v1734, %v1728
        %v1879 = vpack.c.b16 %v1735, %v1729
        %v1880 = vpack.c.b16 %v1736, %v1730
        %v1881 = vpack.c.b16 %v1737, %v1731
        %v1882 = vpack.c.b16 %v1738, %v1732
        %v1883 = vpack.c.b16 %v1739, %v1733
        %v1884 = vpack.c.b16 %v1746, %v1740
        %v1885 = vpack.c.b16 %v1747, %v1741
        %v1886 = vpack.c.b16 %v1748, %v1742
        %v1887 = vpack.c.b16 %v1749, %v1743
        %v1888 = vpack.c.b16 %v1750, %v1744
        %v1889 = vpack.c.b16 %v1751, %v1745
        %v1890 = vpack.c.b16 %v1758, %v1752
        %v1891 = vpack.c.b16 %v1759, %v1753
        %v1892 = vpack.c.b16 %v1760, %v1754
        %v1893 = vpack.c.b16 %v1761, %v1755
        %v1894 = vpack.c.b16 %v1762, %v1756
        %v1895 = vpack.c.b16 %v1763, %v1757
        %v1896 = vpack.c.b16 %v1770, %v1764
        %v1897 = vpack.c.b16 %v1771, %v1765
        %v1898 = vpack.c.b16 %v1772, %v1766
        %v1899 = vpack.c.b16 %v1773, %v1767
        %v1900 = vpack.c.b16 %v1774, %v1768
        %v1901 = vpack.c.b16 %v1775, %v1769
        %v1902 = vpack.c.b16 %v1782, %v1776
        %v1903 = vpack.c.b16 %v1783, %v1777
        %v1904 = vpack.c.b16 %v1784, %v1778
        %v1905 = vpack.c.b16 %v1785, %v1779
        %v1906 = vpack.c.b16 %v1786, %v1780
        %v1907 = vpack.c.b16 %v1787, %v1781
        %v1908 = vpack.c.b16 %v1794, %v1788
        %v1909 = vpack.c.b16 %v1795, %v1789
        %v1910 = vpack.c.b16 %v1796, %v1790
        %v1911 = vpack.c.b16 %v1797, %v1791
        %v1912 = vpack.c.b16 %v1798, %v1792
        %v1913 = vpack.c.b16 %v1799, %v1793
        %v1914 = vpack.c.b16 %v1806, %v1800
        %v1915 = vpack.c.b16 %v1807, %v1801
        %v1916 = vpack.c.b16 %v1808, %v1802
        %v1917 = vpack.c.b16 %v1809, %v1803
        %v1918 = vpack.c.b16 %v1810, %v1804
        %v1919 = vpack.c.b16 %v1811, %v1805
        %v1920 = vpack.c.b16 %v1818, %v1812
        %v1921 = vpack.c.b16 %v1819, %v1813
        %v1922 = vpack.c.b16 %v1820, %v1814
        %v1923 = vpack.c.b16 %v1821, %v1815
        %v1924 = vpack.c.b16 %v1822, %v1816
        %v1925 = vpack.c.b16 %v1823, %v1817
        %v1926 = vpack.c.b16 %v1830, %v1824
        %v1927 = vpack.c.b16 %v1831, %v1825
        %v1928 = vpack.c.b16 %v1832, %v1826
        %v1929 = vpack.c.b16 %v1833, %v1827
        %v1930 = vpack.c.b16 %v1834, %v1828
        %v1931 = vpack.c.b16 %v1835, %v1829
        %2028 = vmatprep.subr.bf16.mxu0 %v1879
        %2029 = vmatpush1.bf16.msra.mxu0 %v1878
        %2030 = vmatprep.subr.bf16.mxu0 %v1873
        %2031 = vmatpush1.bf16.msra.mxu0 %v1872
        %2032 = vmatprep.subr.bf16.mxu0 %v1867
        %2033 = vmatpush1.bf16.msra.mxu0 %v1866
        %2034 = vmatprep.subr.bf16.mxu0 %v1861
        %2035 = vmatpush1.bf16.msra.mxu0 %v1860
        %2036 = vmatprep.subr.bf16.mxu0 %v1855
        %2037 = vmatpush1.bf16.msra.mxu0 %v1854
        %2038 = vmatprep.subr.bf16.mxu0 %v1849
        %2039 = vmatpush1.bf16.msra.mxu0 %v1848
        %2040 = vmatprep.subr.bf16.mxu0 %v1843
        %2041 = vmatpush1.bf16.msra.mxu0 %v1842
        %2042 = vmatprep.subr.bf16.mxu0 %v1837
        %2043 = vmatpush1.bf16.msra.mxu0 %v1836
        %2044 = vmatprep.subr.bf16.mxu0 %v1927
        %2045 = vmatpush2.bf16.msra.mxu0 %v1926
        %2046 = vmatprep.subr.bf16.mxu0 %v1921
        %2047 = vmatpush2.bf16.msra.mxu0 %v1920
        %2048 = vmatprep.subr.bf16.mxu0 %v1915
        %2049 = vmatpush2.bf16.msra.mxu0 %v1914
        %2050 = vmatprep.subr.bf16.mxu0 %v1909
        %2051 = vmatpush2.bf16.msra.mxu0 %v1908
        %2052 = vmatprep.subr.bf16.mxu0 %v1903
        %2053 = vmatpush2.bf16.msra.mxu0 %v1902
        %2054 = vmatprep.subr.bf16.mxu0 %v1897
        %2055 = vmatpush2.bf16.msra.mxu0 %v1896
        %2056 = vmatprep.subr.bf16.mxu0 %v1891
        %2057 = vmatpush2.bf16.msra.mxu0 %v1890
        %2058 = vmatprep.subr.bf16.mxu0 %v1885
        %2059 = vmatpush2.bf16.msra.mxu0 %v1884
        %2060 = vmatprep.mubr.bf16.mxu0 %v1419
        %2061 = vmatmul.mubr.bf16.gmra.mxu0 %v1418
        %v2062 = vpop.f32.mrf.mxu0
        %v2063 = vadd.f32 %v1521, %v2062
        %v2064 = vpop.f32.mrf.mxu0
        %v2065 = vadd.f32 %v1525, %v2064
        %v2066 = vpop.f32.mrf.mxu0
        %v2067 = vpop.f32.mrf.mxu0
        %2068 = vdwg.mxu0
        %2069 = vmatprep.subr.bf16.mxu0 %v1881
        %2070 = vmatpush1.bf16.msra.mxu0 %v1880
        %2071 = vmatprep.subr.bf16.mxu0 %v1875
        %2072 = vmatpush1.bf16.msra.mxu0 %v1874
        %2073 = vmatprep.subr.bf16.mxu0 %v1869
        %2074 = vmatpush1.bf16.msra.mxu0 %v1868
        %2075 = vmatprep.subr.bf16.mxu0 %v1863
        %2076 = vmatpush1.bf16.msra.mxu0 %v1862
        %2077 = vmatprep.subr.bf16.mxu0 %v1857
        %2078 = vmatpush1.bf16.msra.mxu0 %v1856
        %2079 = vmatprep.subr.bf16.mxu0 %v1851
        %2080 = vmatpush1.bf16.msra.mxu0 %v1850
        %2081 = vmatprep.subr.bf16.mxu0 %v1845
        %2082 = vmatpush1.bf16.msra.mxu0 %v1844
        %2083 = vmatprep.subr.bf16.mxu0 %v1839
        %2084 = vmatpush1.bf16.msra.mxu0 %v1838
        %2085 = vmatprep.subr.bf16.mxu0 %v1929
        %2086 = vmatpush2.bf16.msra.mxu0 %v1928
        %2087 = vmatprep.subr.bf16.mxu0 %v1923
        %2088 = vmatpush2.bf16.msra.mxu0 %v1922
        %2089 = vmatprep.subr.bf16.mxu0 %v1917
        %2090 = vmatpush2.bf16.msra.mxu0 %v1916
        %2091 = vmatprep.subr.bf16.mxu0 %v1911
        %2092 = vmatpush2.bf16.msra.mxu0 %v1910
        %2093 = vmatprep.subr.bf16.mxu0 %v1905
        %2094 = vmatpush2.bf16.msra.mxu0 %v1904
        %2095 = vmatprep.subr.bf16.mxu0 %v1899
        %2096 = vmatpush2.bf16.msra.mxu0 %v1898
        %2097 = vmatprep.subr.bf16.mxu0 %v1893
        %2098 = vmatpush2.bf16.msra.mxu0 %v1892
        %2099 = vmatprep.subr.bf16.mxu0 %v1887
        %2100 = vmatpush2.bf16.msra.mxu0 %v1886
        %2101 = vmatprep.mubr.bf16.mxu0 %v1419
        %2102 = vmatmul.mubr.bf16.gmra.mxu0 %v1418
        %v2103 = vpop.f32.mrf.mxu0
        %v2104 = vadd.f32 %v1529, %v2103
        %v2105 = vpop.f32.mrf.mxu0
        %v2106 = vadd.f32 %v1533, %v2105
        %v2107 = vpop.f32.mrf.mxu0
        %v2108 = vpop.f32.mrf.mxu0
        %2109 = vdwg.mxu0
        %2110 = vmatprep.subr.bf16.mxu0 %v1883
        %2111 = vmatpush1.bf16.msra.mxu0 %v1882
        %2112 = vmatprep.subr.bf16.mxu0 %v1877
        %2113 = vmatpush1.bf16.msra.mxu0 %v1876
        %2114 = vmatprep.subr.bf16.mxu0 %v1871
        %2115 = vmatpush1.bf16.msra.mxu0 %v1870
        %2116 = vmatprep.subr.bf16.mxu0 %v1865
        %2117 = vmatpush1.bf16.msra.mxu0 %v1864
        %2118 = vmatprep.subr.bf16.mxu0 %v1859
        %2119 = vmatpush1.bf16.msra.mxu0 %v1858
        %2120 = vmatprep.subr.bf16.mxu0 %v1853
        %2121 = vmatpush1.bf16.msra.mxu0 %v1852
        %2122 = vmatprep.subr.bf16.mxu0 %v1847
        %2123 = vmatpush1.bf16.msra.mxu0 %v1846
        %2124 = vmatprep.subr.bf16.mxu0 %v1841
        %2125 = vmatpush1.bf16.msra.mxu0 %v1840
        %2126 = vmatprep.subr.bf16.mxu0 %v1931
        %2127 = vmatpush2.bf16.msra.mxu0 %v1930
        %2128 = vmatprep.subr.bf16.mxu0 %v1925
        %2129 = vmatpush2.bf16.msra.mxu0 %v1924
        %2130 = vmatprep.subr.bf16.mxu0 %v1919
        %2131 = vmatpush2.bf16.msra.mxu0 %v1918
        %2132 = vmatprep.subr.bf16.mxu0 %v1913
        %2133 = vmatpush2.bf16.msra.mxu0 %v1912
        %2134 = vmatprep.subr.bf16.mxu0 %v1907
        %2135 = vmatpush2.bf16.msra.mxu0 %v1906
        %2136 = vmatprep.subr.bf16.mxu0 %v1901
        %2137 = vmatpush2.bf16.msra.mxu0 %v1900
        %2138 = vmatprep.subr.bf16.mxu0 %v1895
        %2139 = vmatpush2.bf16.msra.mxu0 %v1894
        %2140 = vmatprep.subr.bf16.mxu0 %v1889
        %2141 = vmatpush2.bf16.msra.mxu0 %v1888
        %2142 = vmatprep.mubr.bf16.mxu0 %v1419
        %2143 = vmatmul.mubr.bf16.gmra.mxu0 %v1418
        %v2144 = vpop.f32.mrf.mxu0
        %v2145 = vadd.f32 %v1537, %v2144
        %v2146 = vpop.f32.mrf.mxu0
        %v2147 = vadd.f32 %v1541, %v2146
        %v2148 = vpop.f32.mrf.mxu0
        %v2149 = vpop.f32.mrf.mxu0
        %2150 = vdwg.mxu0
        %vm2151 = vcmask 261120
        %v2153 = vsel %vm2151, %v2063, 0
        %v2156 = vsel %vm2151, %v2104, 0
        %2158 = vmatprep.subr.mxu0 0.0
        %2159 = vmatpush1.xpose.msra.mxu0 0.0
        %2160 = vmatprep.subr.mxu0 0.0
        %2161 = vmatpush1.xpose.msra.mxu0 0.0
        %2162 = vmatprep.subr.mxu0 0.0
        %2163 = vmatpush1.xpose.msra.mxu0 0.0
        %2164 = vmatprep.subr.mxu0 0.0
        %2165 = vmatpush1.xpose.msra.mxu0 0.0
        %2166 = vmatprep.subr.mxu0 0.0
        %2167 = vmatpush1.xpose.msra.mxu0 0.0
        %2168 = vmatprep.subr.mxu0 0.0
        %2169 = vmatpush1.xpose.msra.mxu0 0.0
        %2170 = vmatprep.subr.mxu0 0.0
        %2171 = vmatpush1.xpose.msra.mxu0 0.0
        %2172 = vmatprep.subr.mxu0 0.0
        %2173 = vmatpush1.xpose.msra.mxu0 0.0
        %2174 = vmatprep.subr.mxu0 0.0
        %2175 = vmatpush1.xpose.msra.mxu0 0.0
        %2176 = vmatprep.subr.mxu0 0.0
        %2177 = vmatpush1.xpose.msra.mxu0 0.0
        %2178 = vmatprep.subr.mxu0 0.0
        %2179 = vmatpush1.xpose.msra.mxu0 0.0
        %2180 = vmatprep.subr.mxu0 0.0
        %2181 = vmatpush1.xpose.msra.mxu0 0.0
        %2182 = vmatprep.subr.mxu0 0.0
        %2183 = vmatpush1.xpose.msra.mxu0 0.0
        %2184 = vmatprep.subr.mxu0 0.0
        %2185 = vmatpush1.xpose.msra.mxu0 0.0
        %2186 = vmatprep.subr.mxu0 0.0
        %2187 = vmatpush1.xpose.msra.mxu0 0.0
        %2188 = vmatprep.subr.mxu0 0.0
        %2189 = vmatpush1.xpose.msra.mxu0 %v2156
        %2190 = vmatprep.subr.mxu0 0.0
        %2191 = vmatpush2.xpose.msra.mxu0 0.0
        %2192 = vmatprep.subr.mxu0 0.0
        %2193 = vmatpush2.xpose.msra.mxu0 0.0
        %2194 = vmatprep.subr.mxu0 0.0
        %2195 = vmatpush2.xpose.msra.mxu0 0.0
        %2196 = vmatprep.subr.mxu0 0.0
        %2197 = vmatpush2.xpose.msra.mxu0 0.0
        %2198 = vmatprep.subr.mxu0 0.0
        %2199 = vmatpush2.xpose.msra.mxu0 0.0
        %2200 = vmatprep.subr.mxu0 0.0
        %2201 = vmatpush2.xpose.msra.mxu0 0.0
        %2202 = vmatprep.subr.mxu0 0.0
        %2203 = vmatpush2.xpose.msra.mxu0 0.0
        %2204 = vmatprep.subr.mxu0 0.0
        %2205 = vmatpush2.xpose.msra.mxu0 0.0
        %2206 = vmatprep.subr.mxu0 0.0
        %2207 = vmatpush2.xpose.msra.mxu0 0.0
        %2208 = vmatprep.subr.mxu0 0.0
        %2209 = vmatpush2.xpose.msra.mxu0 0.0
        %2210 = vmatprep.subr.mxu0 0.0
        %2211 = vmatpush2.xpose.msra.mxu0 0.0
        %2212 = vmatprep.subr.mxu0 0.0
        %2213 = vmatpush2.xpose.msra.mxu0 0.0
        %2214 = vmatprep.subr.mxu0 0.0
        %2215 = vmatpush2.xpose.msra.mxu0 0.0
        %2216 = vmatprep.subr.mxu0 0.0
        %2217 = vmatpush2.xpose.msra.mxu0 0.0
        %2218 = vmatprep.subr.mxu0 0.0
        %2219 = vmatpush2.xpose.msra.mxu0 0.0
        %2220 = vmatprep.subr.mxu0 0.0
        %2221 = vmatpush2.xpose.msra.mxu0 0.0
        %2222 = vmatprep.mubr.f32.mxu0 0.0
        %2223 = vmatmul.mubr.f32.gmra.mxu0 %v2153
        %v2224 = vpop.f32.mrf.mxu0
        %v2225 = vadd.f32 0.0, %v2224
        %v2226 = vpop.f32.mrf.mxu0
        %2227 = vdwg.mxu0
        %vm2228 = vcmask 36864
        %v2229 = vsel %vm2228, %v2225, -inf
        %2230 = vmax.xlane.f32.xlu0 %v2229
        %v2231 = vpop.xlane.xlu0 %2230
        %v2232 = vsub.f32 %v2225, %v2231
        %v2233 = vmul.f32 %v2232, 1.442695
        %v2234 = vpow.pop %v2233
        %v2235 = vsel %vm2228, %v2234, 0.0
        %2236 = vadd.xlane.f32.xlu0 %v2235
        %v2237 = vpop.xlane.xlu0 %2236
        %v2238 = vrcp.pop %v2237
        %v2239 = vmul.f32 %v2234, %v2238
        %vm2240 = vcmask 39936
        %v2242 = vsel %vm2240, %v2239, 0
        %v2245 = vsel %vm1370, %v2145, 0
        %2247 = vmatprep.subr.mxu0 0.0
        %2248 = vmatpush1.msra.mxu0 0.0
        %2249 = vmatprep.subr.mxu0 0.0
        %2250 = vmatpush1.msra.mxu0 0.0
        %2251 = vmatprep.subr.mxu0 0.0
        %2252 = vmatpush1.msra.mxu0 0.0
        %2253 = vmatprep.subr.mxu0 0.0
        %2254 = vmatpush1.msra.mxu0 0.0
        %2255 = vmatprep.subr.mxu0 0.0
        %2256 = vmatpush1.msra.mxu0 0.0
        %2257 = vmatprep.subr.mxu0 0.0
        %2258 = vmatpush1.msra.mxu0 0.0
        %2259 = vmatprep.subr.mxu0 0.0
        %2260 = vmatpush1.msra.mxu0 0.0
        %2261 = vmatprep.subr.mxu0 0.0
        %2262 = vmatpush1.msra.mxu0 0.0
        %2263 = vmatprep.subr.mxu0 0.0
        %2264 = vmatpush1.msra.mxu0 0.0
        %2265 = vmatprep.subr.mxu0 0.0
        %2266 = vmatpush1.msra.mxu0 0.0
        %2267 = vmatprep.subr.mxu0 0.0
        %2268 = vmatpush1.msra.mxu0 0.0
        %2269 = vmatprep.subr.mxu0 0.0
        %2270 = vmatpush1.msra.mxu0 0.0
        %2271 = vmatprep.subr.mxu0 0.0
        %2272 = vmatpush1.msra.mxu0 0.0
        %2273 = vmatprep.subr.mxu0 0.0
        %2274 = vmatpush1.msra.mxu0 0.0
        %2275 = vmatprep.subr.mxu0 0.0
        %2276 = vmatpush1.msra.mxu0 0.0
        %2277 = vmatprep.subr.mxu0 0.0
        %2278 = vmatpush1.msra.mxu0 %v2245
        %2279 = vmatprep.subr.mxu0 0.0
        %2280 = vmatpush2.msra.mxu0 0.0
        %2281 = vmatprep.subr.mxu0 0.0
        %2282 = vmatpush2.msra.mxu0 0.0
        %2283 = vmatprep.subr.mxu0 0.0
        %2284 = vmatpush2.msra.mxu0 0.0
        %2285 = vmatprep.subr.mxu0 0.0
        %2286 = vmatpush2.msra.mxu0 0.0
        %2287 = vmatprep.subr.mxu0 0.0
        %2288 = vmatpush2.msra.mxu0 0.0
        %2289 = vmatprep.subr.mxu0 0.0
        %2290 = vmatpush2.msra.mxu0 0.0
        %2291 = vmatprep.subr.mxu0 0.0
        %2292 = vmatpush2.msra.mxu0 0.0
        %2293 = vmatprep.subr.mxu0 0.0
        %2294 = vmatpush2.msra.mxu0 0.0
        %2295 = vmatprep.subr.mxu0 0.0
        %2296 = vmatpush2.msra.mxu0 0.0
        %2297 = vmatprep.subr.mxu0 0.0
        %2298 = vmatpush2.msra.mxu0 0.0
        %2299 = vmatprep.subr.mxu0 0.0
        %2300 = vmatpush2.msra.mxu0 0.0
        %2301 = vmatprep.subr.mxu0 0.0
        %2302 = vmatpush2.msra.mxu0 0.0
        %2303 = vmatprep.subr.mxu0 0.0
        %2304 = vmatpush2.msra.mxu0 0.0
        %2305 = vmatprep.subr.mxu0 0.0
        %2306 = vmatpush2.msra.mxu0 0.0
        %2307 = vmatprep.subr.mxu0 0.0
        %2308 = vmatpush2.msra.mxu0 0.0
        %2309 = vmatprep.subr.mxu0 0.0
        %2310 = vmatpush2.msra.mxu0 0.0
        %2311 = vmatprep.mubr.f32.mxu0 0.0
        %2312 = vmatmul.mubr.f32.gmra.mxu0 %v2242
        %v2313 = vpop.f32.mrf.mxu0
        %v2314 = vadd.f32 0.0, %v2313
        %v2315 = vpop.f32.mrf.mxu0
        %2316 = vdwg.mxu0
        %vm2317 = vcmask 258048
        %2318 = vst.msk [vmem:[#allocation3] sm:$0x1f] %vm2317, %v2314
        %2319 = vrot.lane.b32.xlu0 %v2063, 96
        %v2320 = vpop.permute.xlu0 %2319
        %2321 = vrot.lane.b32.xlu0 %v2104, 96
        %v2322 = vpop.permute.xlu0 %2321
        %v2323 = vsel %vm2151, %v2320, 0
        %v2325 = vsel %vm2151, %v2322, 0
        %2327 = vmatprep.subr.mxu0 0.0
        %2328 = vmatpush1.xpose.msra.mxu0 0.0
        %2329 = vmatprep.subr.mxu0 0.0
        %2330 = vmatpush1.xpose.msra.mxu0 0.0
        %2331 = vmatprep.subr.mxu0 0.0
        %2332 = vmatpush1.xpose.msra.mxu0 0.0
        %2333 = vmatprep.subr.mxu0 0.0
        %2334 = vmatpush1.xpose.msra.mxu0 0.0
        %2335 = vmatprep.subr.mxu0 0.0
        %2336 = vmatpush1.xpose.msra.mxu0 0.0
        %2337 = vmatprep.subr.mxu0 0.0
        %2338 = vmatpush1.xpose.msra.mxu0 0.0
        %2339 = vmatprep.subr.mxu0 0.0
        %2340 = vmatpush1.xpose.msra.mxu0 0.0
        %2341 = vmatprep.subr.mxu0 0.0
        %2342 = vmatpush1.xpose.msra.mxu0 0.0
        %2343 = vmatprep.subr.mxu0 0.0
        %2344 = vmatpush1.xpose.msra.mxu0 0.0
        %2345 = vmatprep.subr.mxu0 0.0
        %2346 = vmatpush1.xpose.msra.mxu0 0.0
        %2347 = vmatprep.subr.mxu0 0.0
        %2348 = vmatpush1.xpose.msra.mxu0 0.0
        %2349 = vmatprep.subr.mxu0 0.0
        %2350 = vmatpush1.xpose.msra.mxu0 0.0
        %2351 = vmatprep.subr.mxu0 0.0
        %2352 = vmatpush1.xpose.msra.mxu0 0.0
        %2353 = vmatprep.subr.mxu0 0.0
        %2354 = vmatpush1.xpose.msra.mxu0 0.0
        %2355 = vmatprep.subr.mxu0 0.0
        %2356 = vmatpush1.xpose.msra.mxu0 0.0
        %2357 = vmatprep.subr.mxu0 0.0
        %2358 = vmatpush1.xpose.msra.mxu0 %v2325
        %2359 = vmatprep.subr.mxu0 0.0
        %2360 = vmatpush2.xpose.msra.mxu0 0.0
        %2361 = vmatprep.subr.mxu0 0.0
        %2362 = vmatpush2.xpose.msra.mxu0 0.0
        %2363 = vmatprep.subr.mxu0 0.0
        %2364 = vmatpush2.xpose.msra.mxu0 0.0
        %2365 = vmatprep.subr.mxu0 0.0
        %2366 = vmatpush2.xpose.msra.mxu0 0.0
        %2367 = vmatprep.subr.mxu0 0.0
        %2368 = vmatpush2.xpose.msra.mxu0 0.0
        %2369 = vmatprep.subr.mxu0 0.0
        %2370 = vmatpush2.xpose.msra.mxu0 0.0
        %2371 = vmatprep.subr.mxu0 0.0
        %2372 = vmatpush2.xpose.msra.mxu0 0.0
        %2373 = vmatprep.subr.mxu0 0.0
        %2374 = vmatpush2.xpose.msra.mxu0 0.0
        %2375 = vmatprep.subr.mxu0 0.0
        %2376 = vmatpush2.xpose.msra.mxu0 0.0
        %2377 = vmatprep.subr.mxu0 0.0
        %2378 = vmatpush2.xpose.msra.mxu0 0.0
        %2379 = vmatprep.subr.mxu0 0.0
        %2380 = vmatpush2.xpose.msra.mxu0 0.0
        %2381 = vmatprep.subr.mxu0 0.0
        %2382 = vmatpush2.xpose.msra.mxu0 0.0
        %2383 = vmatprep.subr.mxu0 0.0
        %2384 = vmatpush2.xpose.msra.mxu0 0.0
        %2385 = vmatprep.subr.mxu0 0.0
        %2386 = vmatpush2.xpose.msra.mxu0 0.0
        %2387 = vmatprep.subr.mxu0 0.0
        %2388 = vmatpush2.xpose.msra.mxu0 0.0
        %2389 = vmatprep.subr.mxu0 0.0
        %2390 = vmatpush2.xpose.msra.mxu0 0.0
        %2391 = vmatprep.mubr.f32.mxu0 0.0
        %2392 = vmatmul.mubr.f32.gmra.mxu0 %v2323
        %v2393 = vpop.f32.mrf.mxu0
        %v2394 = vadd.f32 0.0, %v2393
        %v2395 = vpop.f32.mrf.mxu0
        %2396 = vdwg.mxu0
        %v2397 = vsel %vm2228, %v2394, -inf
        %2398 = vmax.xlane.f32.xlu0 %v2397
        %v2399 = vpop.xlane.xlu0 %2398
        %v2400 = vsub.f32 %v2394, %v2399
        %v2401 = vmul.f32 %v2400, 1.442695
        %v2402 = vpow.pop %v2401
        %v2403 = vsel %vm2228, %v2402, 0.0
        %2404 = vadd.xlane.f32.xlu0 %v2403
        %v2405 = vpop.xlane.xlu0 %2404
        %v2406 = vrcp.pop %v2405
        %v2407 = vmul.f32 %v2402, %v2406
        %2408 = vrot.lane.b32.xlu0 %v2145, 96
        %v2409 = vpop.permute.xlu0 %2408
        %v2411 = vsel %vm2240, %v2407, 0
        %v2413 = vsel %vm1370, %v2409, 0
        %2415 = vmatprep.subr.mxu0 0.0
        %2416 = vmatpush1.msra.mxu0 0.0
        %2417 = vmatprep.subr.mxu0 0.0
        %2418 = vmatpush1.msra.mxu0 0.0
        %2419 = vmatprep.subr.mxu0 0.0
        %2420 = vmatpush1.msra.mxu0 0.0
        %2421 = vmatprep.subr.mxu0 0.0
        %2422 = vmatpush1.msra.mxu0 0.0
        %2423 = vmatprep.subr.mxu0 0.0
        %2424 = vmatpush1.msra.mxu0 0.0
        %2425 = vmatprep.subr.mxu0 0.0
        %2426 = vmatpush1.msra.mxu0 0.0
        %2427 = vmatprep.subr.mxu0 0.0
        %2428 = vmatpush1.msra.mxu0 0.0
        %2429 = vmatprep.subr.mxu0 0.0
        %2430 = vmatpush1.msra.mxu0 0.0
        %2431 = vmatprep.subr.mxu0 0.0
        %2432 = vmatpush1.msra.mxu0 0.0
        %2433 = vmatprep.subr.mxu0 0.0
        %2434 = vmatpush1.msra.mxu0 0.0
        %2435 = vmatprep.subr.mxu0 0.0
        %2436 = vmatpush1.msra.mxu0 0.0
        %2437 = vmatprep.subr.mxu0 0.0
        %2438 = vmatpush1.msra.mxu0 0.0
        %2439 = vmatprep.subr.mxu0 0.0
        %2440 = vmatpush1.msra.mxu0 0.0
        %2441 = vmatprep.subr.mxu0 0.0
        %2442 = vmatpush1.msra.mxu0 0.0
        %2443 = vmatprep.subr.mxu0 0.0
        %2444 = vmatpush1.msra.mxu0 0.0
        %2445 = vmatprep.subr.mxu0 0.0
        %2446 = vmatpush1.msra.mxu0 %v2413
        %2447 = vmatprep.subr.mxu0 0.0
        %2448 = vmatpush2.msra.mxu0 0.0
        %2449 = vmatprep.subr.mxu0 0.0
        %2450 = vmatpush2.msra.mxu0 0.0
        %2451 = vmatprep.subr.mxu0 0.0
        %2452 = vmatpush2.msra.mxu0 0.0
        %2453 = vmatprep.subr.mxu0 0.0
        %2454 = vmatpush2.msra.mxu0 0.0
        %2455 = vmatprep.subr.mxu0 0.0
        %2456 = vmatpush2.msra.mxu0 0.0
        %2457 = vmatprep.subr.mxu0 0.0
        %2458 = vmatpush2.msra.mxu0 0.0
        %2459 = vmatprep.subr.mxu0 0.0
        %2460 = vmatpush2.msra.mxu0 0.0
        %2461 = vmatprep.subr.mxu0 0.0
        %2462 = vmatpush2.msra.mxu0 0.0
        %2463 = vmatprep.subr.mxu0 0.0
        %2464 = vmatpush2.msra.mxu0 0.0
        %2465 = vmatprep.subr.mxu0 0.0
        %2466 = vmatpush2.msra.mxu0 0.0
        %2467 = vmatprep.subr.mxu0 0.0
        %2468 = vmatpush2.msra.mxu0 0.0
        %2469 = vmatprep.subr.mxu0 0.0
        %2470 = vmatpush2.msra.mxu0 0.0
        %2471 = vmatprep.subr.mxu0 0.0
        %2472 = vmatpush2.msra.mxu0 0.0
        %2473 = vmatprep.subr.mxu0 0.0
        %2474 = vmatpush2.msra.mxu0 0.0
        %2475 = vmatprep.subr.mxu0 0.0
        %2476 = vmatpush2.msra.mxu0 0.0
        %2477 = vmatprep.subr.mxu0 0.0
        %2478 = vmatpush2.msra.mxu0 0.0
        %2479 = vmatprep.mubr.f32.mxu0 0.0
        %2480 = vmatmul.mubr.f32.gmra.mxu0 %v2411
        %v2481 = vpop.f32.mrf.mxu0
        %v2482 = vadd.f32 0.0, %v2481
        %v2483 = vpop.f32.mrf.mxu0
        %2484 = vdwg.mxu0
        %2486 = vrot.lane.b32.xlu0 %v2482, 32
        %v2487 = vpop.permute.xlu0 %2486
        %vm2489 = vcmask 520448
        %2490 = vst.msk [vmem:[#allocation3] sm:$0x1f] %vm2489, %v2487
        %2491 = vrot.lane.b32.xlu0 %v2063, 64
        %v2492 = vpop.permute.xlu0 %2491
        %2493 = vrot.lane.b32.xlu0 %v2104, 64
        %v2494 = vpop.permute.xlu0 %2493
        %v2495 = vsel %vm2151, %v2492, 0
        %v2497 = vsel %vm2151, %v2494, 0
        %2499 = vmatprep.subr.mxu0 0.0
        %2500 = vmatpush1.xpose.msra.mxu0 0.0
        %2501 = vmatprep.subr.mxu0 0.0
        %2502 = vmatpush1.xpose.msra.mxu0 0.0
        %2503 = vmatprep.subr.mxu0 0.0
        %2504 = vmatpush1.xpose.msra.mxu0 0.0
        %2505 = vmatprep.subr.mxu0 0.0
        %2506 = vmatpush1.xpose.msra.mxu0 0.0
        %2507 = vmatprep.subr.mxu0 0.0
        %2508 = vmatpush1.xpose.msra.mxu0 0.0
        %2509 = vmatprep.subr.mxu0 0.0
        %2510 = vmatpush1.xpose.msra.mxu0 0.0
        %2511 = vmatprep.subr.mxu0 0.0
        %2512 = vmatpush1.xpose.msra.mxu0 0.0
        %2513 = vmatprep.subr.mxu0 0.0
        %2514 = vmatpush1.xpose.msra.mxu0 0.0
        %2515 = vmatprep.subr.mxu0 0.0
        %2516 = vmatpush1.xpose.msra.mxu0 0.0
        %2517 = vmatprep.subr.mxu0 0.0
        %2518 = vmatpush1.xpose.msra.mxu0 0.0
        %2519 = vmatprep.subr.mxu0 0.0
        %2520 = vmatpush1.xpose.msra.mxu0 0.0
        %2521 = vmatprep.subr.mxu0 0.0
        %2522 = vmatpush1.xpose.msra.mxu0 0.0
        %2523 = vmatprep.subr.mxu0 0.0
        %2524 = vmatpush1.xpose.msra.mxu0 0.0
        %2525 = vmatprep.subr.mxu0 0.0
        %2526 = vmatpush1.xpose.msra.mxu0 0.0
        %2527 = vmatprep.subr.mxu0 0.0
        %2528 = vmatpush1.xpose.msra.mxu0 0.0
        %2529 = vmatprep.subr.mxu0 0.0
        %2530 = vmatpush1.xpose.msra.mxu0 %v2497
        %2531 = vmatprep.subr.mxu0 0.0
        %2532 = vmatpush2.xpose.msra.mxu0 0.0
        %2533 = vmatprep.subr.mxu0 0.0
        %2534 = vmatpush2.xpose.msra.mxu0 0.0
        %2535 = vmatprep.subr.mxu0 0.0
        %2536 = vmatpush2.xpose.msra.mxu0 0.0
        %2537 = vmatprep.subr.mxu0 0.0
        %2538 = vmatpush2.xpose.msra.mxu0 0.0
        %2539 = vmatprep.subr.mxu0 0.0
        %2540 = vmatpush2.xpose.msra.mxu0 0.0
        %2541 = vmatprep.subr.mxu0 0.0
        %2542 = vmatpush2.xpose.msra.mxu0 0.0
        %2543 = vmatprep.subr.mxu0 0.0
        %2544 = vmatpush2.xpose.msra.mxu0 0.0
        %2545 = vmatprep.subr.mxu0 0.0
        %2546 = vmatpush2.xpose.msra.mxu0 0.0
        %2547 = vmatprep.subr.mxu0 0.0
        %2548 = vmatpush2.xpose.msra.mxu0 0.0
        %2549 = vmatprep.subr.mxu0 0.0
        %2550 = vmatpush2.xpose.msra.mxu0 0.0
        %2551 = vmatprep.subr.mxu0 0.0
        %2552 = vmatpush2.xpose.msra.mxu0 0.0
        %2553 = vmatprep.subr.mxu0 0.0
        %2554 = vmatpush2.xpose.msra.mxu0 0.0
        %2555 = vmatprep.subr.mxu0 0.0
        %2556 = vmatpush2.xpose.msra.mxu0 0.0
        %2557 = vmatprep.subr.mxu0 0.0
        %2558 = vmatpush2.xpose.msra.mxu0 0.0
        %2559 = vmatprep.subr.mxu0 0.0
        %2560 = vmatpush2.xpose.msra.mxu0 0.0
        %2561 = vmatprep.subr.mxu0 0.0
        %2562 = vmatpush2.xpose.msra.mxu0 0.0
        %2563 = vmatprep.mubr.f32.mxu0 0.0
        %2564 = vmatmul.mubr.f32.gmra.mxu0 %v2495
        %v2565 = vpop.f32.mrf.mxu0
        %v2566 = vadd.f32 0.0, %v2565
        %v2567 = vpop.f32.mrf.mxu0
        %2568 = vdwg.mxu0
        %v2569 = vsel %vm2228, %v2566, -inf
        %2570 = vmax.xlane.f32.xlu0 %v2569
        %v2571 = vpop.xlane.xlu0 %2570
        %v2572 = vsub.f32 %v2566, %v2571
        %v2573 = vmul.f32 %v2572, 1.442695
        %v2574 = vpow.pop %v2573
        %v2575 = vsel %vm2228, %v2574, 0.0
        %2576 = vadd.xlane.f32.xlu0 %v2575
        %v2577 = vpop.xlane.xlu0 %2576
        %v2578 = vrcp.pop %v2577
        %v2579 = vmul.f32 %v2574, %v2578
        %2580 = vrot.lane.b32.xlu0 %v2145, 64
        %v2581 = vpop.permute.xlu0 %2580
        %v2583 = vsel %vm2240, %v2579, 0
        %v2585 = vsel %vm1370, %v2581, 0
        %2587 = vmatprep.subr.mxu0 0.0
        %2588 = vmatpush1.msra.mxu0 0.0
        %2589 = vmatprep.subr.mxu0 0.0
        %2590 = vmatpush1.msra.mxu0 0.0
        %2591 = vmatprep.subr.mxu0 0.0
        %2592 = vmatpush1.msra.mxu0 0.0
        %2593 = vmatprep.subr.mxu0 0.0
        %2594 = vmatpush1.msra.mxu0 0.0
        %2595 = vmatprep.subr.mxu0 0.0
        %2596 = vmatpush1.msra.mxu0 0.0
        %2597 = vmatprep.subr.mxu0 0.0
        %2598 = vmatpush1.msra.mxu0 0.0
        %2599 = vmatprep.subr.mxu0 0.0
        %2600 = vmatpush1.msra.mxu0 0.0
        %2601 = vmatprep.subr.mxu0 0.0
        %2602 = vmatpush1.msra.mxu0 0.0
        %2603 = vmatprep.subr.mxu0 0.0
        %2604 = vmatpush1.msra.mxu0 0.0
        %2605 = vmatprep.subr.mxu0 0.0
        %2606 = vmatpush1.msra.mxu0 0.0
        %2607 = vmatprep.subr.mxu0 0.0
        %2608 = vmatpush1.msra.mxu0 0.0
        %2609 = vmatprep.subr.mxu0 0.0
        %2610 = vmatpush1.msra.mxu0 0.0
        %2611 = vmatprep.subr.mxu0 0.0
        %2612 = vmatpush1.msra.mxu0 0.0
        %2613 = vmatprep.subr.mxu0 0.0
        %2614 = vmatpush1.msra.mxu0 0.0
        %2615 = vmatprep.subr.mxu0 0.0
        %2616 = vmatpush1.msra.mxu0 0.0
        %2617 = vmatprep.subr.mxu0 0.0
        %2618 = vmatpush1.msra.mxu0 %v2585
        %2619 = vmatprep.subr.mxu0 0.0
        %2620 = vmatpush2.msra.mxu0 0.0
        %2621 = vmatprep.subr.mxu0 0.0
        %2622 = vmatpush2.msra.mxu0 0.0
        %2623 = vmatprep.subr.mxu0 0.0
        %2624 = vmatpush2.msra.mxu0 0.0
        %2625 = vmatprep.subr.mxu0 0.0
        %2626 = vmatpush2.msra.mxu0 0.0
        %2627 = vmatprep.subr.mxu0 0.0
        %2628 = vmatpush2.msra.mxu0 0.0
        %2629 = vmatprep.subr.mxu0 0.0
        %2630 = vmatpush2.msra.mxu0 0.0
        %2631 = vmatprep.subr.mxu0 0.0
        %2632 = vmatpush2.msra.mxu0 0.0
        %2633 = vmatprep.subr.mxu0 0.0
        %2634 = vmatpush2.msra.mxu0 0.0
        %2635 = vmatprep.subr.mxu0 0.0
        %2636 = vmatpush2.msra.mxu0 0.0
        %2637 = vmatprep.subr.mxu0 0.0
        %2638 = vmatpush2.msra.mxu0 0.0
        %2639 = vmatprep.subr.mxu0 0.0
        %2640 = vmatpush2.msra.mxu0 0.0
        %2641 = vmatprep.subr.mxu0 0.0
        %2642 = vmatpush2.msra.mxu0 0.0
        %2643 = vmatprep.subr.mxu0 0.0
        %2644 = vmatpush2.msra.mxu0 0.0
        %2645 = vmatprep.subr.mxu0 0.0
        %2646 = vmatpush2.msra.mxu0 0.0
        %2647 = vmatprep.subr.mxu0 0.0
        %2648 = vmatpush2.msra.mxu0 0.0
        %2649 = vmatprep.subr.mxu0 0.0
        %2650 = vmatpush2.msra.mxu0 0.0
        %2651 = vmatprep.mubr.f32.mxu0 0.0
        %2652 = vmatmul.mubr.f32.gmra.mxu0 %v2583
        %v2653 = vpop.f32.mrf.mxu0
        %v2654 = vadd.f32 0.0, %v2653
        %v2655 = vpop.f32.mrf.mxu0
        %2656 = vdwg.mxu0
        %2658 = vrot.lane.b32.xlu0 %v2654, 64
        %v2659 = vpop.permute.xlu0 %2658
        %vm2661 = vcmask 782848
        %2662 = vst.msk [vmem:[#allocation3] sm:$0x1f] %vm2661, %v2659
        %2663 = vrot.lane.b32.xlu0 %v2063, 32
        %v2664 = vpop.permute.xlu0 %2663
        %2665 = vrot.lane.b32.xlu0 %v2104, 32
        %v2666 = vpop.permute.xlu0 %2665
        %v2667 = vsel %vm2151, %v2664, 0
        %v2669 = vsel %vm2151, %v2666, 0
        %2671 = vmatprep.subr.mxu0 0.0
        %2672 = vmatpush1.xpose.msra.mxu0 0.0
        %2673 = vmatprep.subr.mxu0 0.0
        %2674 = vmatpush1.xpose.msra.mxu0 0.0
        %2675 = vmatprep.subr.mxu0 0.0
        %2676 = vmatpush1.xpose.msra.mxu0 0.0
        %2677 = vmatprep.subr.mxu0 0.0
        %2678 = vmatpush1.xpose.msra.mxu0 0.0
        %2679 = vmatprep.subr.mxu0 0.0
        %2680 = vmatpush1.xpose.msra.mxu0 0.0
        %2681 = vmatprep.subr.mxu0 0.0
        %2682 = vmatpush1.xpose.msra.mxu0 0.0
        %2683 = vmatprep.subr.mxu0 0.0
        %2684 = vmatpush1.xpose.msra.mxu0 0.0
        %2685 = vmatprep.subr.mxu0 0.0
        %2686 = vmatpush1.xpose.msra.mxu0 0.0
        %2687 = vmatprep.subr.mxu0 0.0
        %2688 = vmatpush1.xpose.msra.mxu0 0.0
        %2689 = vmatprep.subr.mxu0 0.0
        %2690 = vmatpush1.xpose.msra.mxu0 0.0
        %2691 = vmatprep.subr.mxu0 0.0
        %2692 = vmatpush1.xpose.msra.mxu0 0.0
        %2693 = vmatprep.subr.mxu0 0.0
        %2694 = vmatpush1.xpose.msra.mxu0 0.0
        %2695 = vmatprep.subr.mxu0 0.0
        %2696 = vmatpush1.xpose.msra.mxu0 0.0
        %2697 = vmatprep.subr.mxu0 0.0
        %2698 = vmatpush1.xpose.msra.mxu0 0.0
        %2699 = vmatprep.subr.mxu0 0.0
        %2700 = vmatpush1.xpose.msra.mxu0 0.0
        %2701 = vmatprep.subr.mxu0 0.0
        %2702 = vmatpush1.xpose.msra.mxu0 %v2669
        %2703 = vmatprep.subr.mxu0 0.0
        %2704 = vmatpush2.xpose.msra.mxu0 0.0
        %2705 = vmatprep.subr.mxu0 0.0
        %2706 = vmatpush2.xpose.msra.mxu0 0.0
        %2707 = vmatprep.subr.mxu0 0.0
        %2708 = vmatpush2.xpose.msra.mxu0 0.0
        %2709 = vmatprep.subr.mxu0 0.0
        %2710 = vmatpush2.xpose.msra.mxu0 0.0
        %2711 = vmatprep.subr.mxu0 0.0
        %2712 = vmatpush2.xpose.msra.mxu0 0.0
        %2713 = vmatprep.subr.mxu0 0.0
        %2714 = vmatpush2.xpose.msra.mxu0 0.0
        %2715 = vmatprep.subr.mxu0 0.0
        %2716 = vmatpush2.xpose.msra.mxu0 0.0
        %2717 = vmatprep.subr.mxu0 0.0
        %2718 = vmatpush2.xpose.msra.mxu0 0.0
        %2719 = vmatprep.subr.mxu0 0.0
        %2720 = vmatpush2.xpose.msra.mxu0 0.0
        %2721 = vmatprep.subr.mxu0 0.0
        %2722 = vmatpush2.xpose.msra.mxu0 0.0
        %2723 = vmatprep.subr.mxu0 0.0
        %2724 = vmatpush2.xpose.msra.mxu0 0.0
        %2725 = vmatprep.subr.mxu0 0.0
        %2726 = vmatpush2.xpose.msra.mxu0 0.0
        %2727 = vmatprep.subr.mxu0 0.0
        %2728 = vmatpush2.xpose.msra.mxu0 0.0
        %2729 = vmatprep.subr.mxu0 0.0
        %2730 = vmatpush2.xpose.msra.mxu0 0.0
        %2731 = vmatprep.subr.mxu0 0.0
        %2732 = vmatpush2.xpose.msra.mxu0 0.0
        %2733 = vmatprep.subr.mxu0 0.0
        %2734 = vmatpush2.xpose.msra.mxu0 0.0
        %2735 = vmatprep.mubr.f32.mxu0 0.0
        %2736 = vmatmul.mubr.f32.gmra.mxu0 %v2667
        %v2737 = vpop.f32.mrf.mxu0
        %v2738 = vadd.f32 0.0, %v2737
        %v2739 = vpop.f32.mrf.mxu0
        %2740 = vdwg.mxu0
        %v2741 = vsel %vm2228, %v2738, -inf
        %2742 = vmax.xlane.f32.xlu0 %v2741
        %v2743 = vpop.xlane.xlu0 %2742
        %v2744 = vsub.f32 %v2738, %v2743
        %v2745 = vmul.f32 %v2744, 1.442695
        %v2746 = vpow.pop %v2745
        %v2747 = vsel %vm2228, %v2746, 0.0
        %2748 = vadd.xlane.f32.xlu0 %v2747
        %v2749 = vpop.xlane.xlu0 %2748
        %v2750 = vrcp.pop %v2749
        %v2751 = vmul.f32 %v2746, %v2750
        %2752 = vrot.lane.b32.xlu0 %v2145, 32
        %v2753 = vpop.permute.xlu0 %2752
        %v2755 = vsel %vm2240, %v2751, 0
        %v2757 = vsel %vm1370, %v2753, 0
        %2759 = vmatprep.subr.mxu0 0.0
        %2760 = vmatpush1.msra.mxu0 0.0
        %2761 = vmatprep.subr.mxu0 0.0
        %2762 = vmatpush1.msra.mxu0 0.0
        %2763 = vmatprep.subr.mxu0 0.0
        %2764 = vmatpush1.msra.mxu0 0.0
        %2765 = vmatprep.subr.mxu0 0.0
        %2766 = vmatpush1.msra.mxu0 0.0
        %2767 = vmatprep.subr.mxu0 0.0
        %2768 = vmatpush1.msra.mxu0 0.0
        %2769 = vmatprep.subr.mxu0 0.0
        %2770 = vmatpush1.msra.mxu0 0.0
        %2771 = vmatprep.subr.mxu0 0.0
        %2772 = vmatpush1.msra.mxu0 0.0
        %2773 = vmatprep.subr.mxu0 0.0
        %2774 = vmatpush1.msra.mxu0 0.0
        %2775 = vmatprep.subr.mxu0 0.0
        %2776 = vmatpush1.msra.mxu0 0.0
        %2777 = vmatprep.subr.mxu0 0.0
        %2778 = vmatpush1.msra.mxu0 0.0
        %2779 = vmatprep.subr.mxu0 0.0
        %2780 = vmatpush1.msra.mxu0 0.0
        %2781 = vmatprep.subr.mxu0 0.0
        %2782 = vmatpush1.msra.mxu0 0.0
        %2783 = vmatprep.subr.mxu0 0.0
        %2784 = vmatpush1.msra.mxu0 0.0
        %2785 = vmatprep.subr.mxu0 0.0
        %2786 = vmatpush1.msra.mxu0 0.0
        %2787 = vmatprep.subr.mxu0 0.0
        %2788 = vmatpush1.msra.mxu0 0.0
        %2789 = vmatprep.subr.mxu0 0.0
        %2790 = vmatpush1.msra.mxu0 %v2757
        %2791 = vmatprep.subr.mxu0 0.0
        %2792 = vmatpush2.msra.mxu0 0.0
        %2793 = vmatprep.subr.mxu0 0.0
        %2794 = vmatpush2.msra.mxu0 0.0
        %2795 = vmatprep.subr.mxu0 0.0
        %2796 = vmatpush2.msra.mxu0 0.0
        %2797 = vmatprep.subr.mxu0 0.0
        %2798 = vmatpush2.msra.mxu0 0.0
        %2799 = vmatprep.subr.mxu0 0.0
        %2800 = vmatpush2.msra.mxu0 0.0
        %2801 = vmatprep.subr.mxu0 0.0
        %2802 = vmatpush2.msra.mxu0 0.0
        %2803 = vmatprep.subr.mxu0 0.0
        %2804 = vmatpush2.msra.mxu0 0.0
        %2805 = vmatprep.subr.mxu0 0.0
        %2806 = vmatpush2.msra.mxu0 0.0
        %2807 = vmatprep.subr.mxu0 0.0
        %2808 = vmatpush2.msra.mxu0 0.0
        %2809 = vmatprep.subr.mxu0 0.0
        %2810 = vmatpush2.msra.mxu0 0.0
        %2811 = vmatprep.subr.mxu0 0.0
        %2812 = vmatpush2.msra.mxu0 0.0
        %2813 = vmatprep.subr.mxu0 0.0
        %2814 = vmatpush2.msra.mxu0 0.0
        %2815 = vmatprep.subr.mxu0 0.0
        %2816 = vmatpush2.msra.mxu0 0.0
        %2817 = vmatprep.subr.mxu0 0.0
        %2818 = vmatpush2.msra.mxu0 0.0
        %2819 = vmatprep.subr.mxu0 0.0
        %2820 = vmatpush2.msra.mxu0 0.0
        %2821 = vmatprep.subr.mxu0 0.0
        %2822 = vmatpush2.msra.mxu0 0.0
        %2823 = vmatprep.mubr.f32.mxu0 0.0
        %2824 = vmatmul.mubr.f32.gmra.mxu0 %v2755
        %v2825 = vpop.f32.mrf.mxu0
        %v2826 = vadd.f32 0.0, %v2825
        %v2827 = vpop.f32.mrf.mxu0
        %2828 = vdwg.mxu0
        %2830 = vrot.lane.b32.xlu0 %v2826, 96
        %v2831 = vpop.permute.xlu0 %2830
        %vm2833 = vcmask 1045248
        %2834 = vst.msk [vmem:[#allocation3] sm:$0x1f] %vm2833, %v2831
        %v2836 = vsel %vm2151, %v2065, 0
        %v2839 = vsel %vm2151, %v2106, 0
        %2841 = vmatprep.subr.mxu0 0.0
        %2842 = vmatpush1.xpose.msra.mxu0 0.0
        %2843 = vmatprep.subr.mxu0 0.0
        %2844 = vmatpush1.xpose.msra.mxu0 0.0
        %2845 = vmatprep.subr.mxu0 0.0
        %2846 = vmatpush1.xpose.msra.mxu0 0.0
        %2847 = vmatprep.subr.mxu0 0.0
        %2848 = vmatpush1.xpose.msra.mxu0 0.0
        %2849 = vmatprep.subr.mxu0 0.0
        %2850 = vmatpush1.xpose.msra.mxu0 0.0
        %2851 = vmatprep.subr.mxu0 0.0
        %2852 = vmatpush1.xpose.msra.mxu0 0.0
        %2853 = vmatprep.subr.mxu0 0.0
        %2854 = vmatpush1.xpose.msra.mxu0 0.0
        %2855 = vmatprep.subr.mxu0 0.0
        %2856 = vmatpush1.xpose.msra.mxu0 0.0
        %2857 = vmatprep.subr.mxu0 0.0
        %2858 = vmatpush1.xpose.msra.mxu0 0.0
        %2859 = vmatprep.subr.mxu0 0.0
        %2860 = vmatpush1.xpose.msra.mxu0 0.0
        %2861 = vmatprep.subr.mxu0 0.0
        %2862 = vmatpush1.xpose.msra.mxu0 0.0
        %2863 = vmatprep.subr.mxu0 0.0
        %2864 = vmatpush1.xpose.msra.mxu0 0.0
        %2865 = vmatprep.subr.mxu0 0.0
        %2866 = vmatpush1.xpose.msra.mxu0 0.0
        %2867 = vmatprep.subr.mxu0 0.0
        %2868 = vmatpush1.xpose.msra.mxu0 0.0
        %2869 = vmatprep.subr.mxu0 0.0
        %2870 = vmatpush1.xpose.msra.mxu0 0.0
        %2871 = vmatprep.subr.mxu0 0.0
        %2872 = vmatpush1.xpose.msra.mxu0 %v2839
        %2873 = vmatprep.subr.mxu0 0.0
        %2874 = vmatpush2.xpose.msra.mxu0 0.0
        %2875 = vmatprep.subr.mxu0 0.0
        %2876 = vmatpush2.xpose.msra.mxu0 0.0
        %2877 = vmatprep.subr.mxu0 0.0
        %2878 = vmatpush2.xpose.msra.mxu0 0.0
        %2879 = vmatprep.subr.mxu0 0.0
        %2880 = vmatpush2.xpose.msra.mxu0 0.0
        %2881 = vmatprep.subr.mxu0 0.0
        %2882 = vmatpush2.xpose.msra.mxu0 0.0
        %2883 = vmatprep.subr.mxu0 0.0
        %2884 = vmatpush2.xpose.msra.mxu0 0.0
        %2885 = vmatprep.subr.mxu0 0.0
        %2886 = vmatpush2.xpose.msra.mxu0 0.0
        %2887 = vmatprep.subr.mxu0 0.0
        %2888 = vmatpush2.xpose.msra.mxu0 0.0
        %2889 = vmatprep.subr.mxu0 0.0
        %2890 = vmatpush2.xpose.msra.mxu0 0.0
        %2891 = vmatprep.subr.mxu0 0.0
        %2892 = vmatpush2.xpose.msra.mxu0 0.0
        %2893 = vmatprep.subr.mxu0 0.0
        %2894 = vmatpush2.xpose.msra.mxu0 0.0
        %2895 = vmatprep.subr.mxu0 0.0
        %2896 = vmatpush2.xpose.msra.mxu0 0.0
        %2897 = vmatprep.subr.mxu0 0.0
        %2898 = vmatpush2.xpose.msra.mxu0 0.0
        %2899 = vmatprep.subr.mxu0 0.0
        %2900 = vmatpush2.xpose.msra.mxu0 0.0
        %2901 = vmatprep.subr.mxu0 0.0
        %2902 = vmatpush2.xpose.msra.mxu0 0.0
        %2903 = vmatprep.subr.mxu0 0.0
        %2904 = vmatpush2.xpose.msra.mxu0 0.0
        %2905 = vmatprep.mubr.f32.mxu0 0.0
        %2906 = vmatmul.mubr.f32.gmra.mxu0 %v2836
        %v2907 = vpop.f32.mrf.mxu0
        %v2908 = vadd.f32 0.0, %v2907
        %v2909 = vpop.f32.mrf.mxu0
        %2910 = vdwg.mxu0
        %v2911 = vsel %vm2228, %v2908, -inf
        %2912 = vmax.xlane.f32.xlu0 %v2911
        %v2913 = vpop.xlane.xlu0 %2912
        %v2914 = vsub.f32 %v2908, %v2913
        %v2915 = vmul.f32 %v2914, 1.442695
        %v2916 = vpow.pop %v2915
        %v2917 = vsel %vm2228, %v2916, 0.0
        %2918 = vadd.xlane.f32.xlu0 %v2917
        %v2919 = vpop.xlane.xlu0 %2918
        %v2920 = vrcp.pop %v2919
        %v2921 = vmul.f32 %v2916, %v2920
        %v2923 = vsel %vm2240, %v2921, 0
        %v2926 = vsel %vm1370, %v2147, 0
        %2928 = vmatprep.subr.mxu0 0.0
        %2929 = vmatpush1.msra.mxu0 0.0
        %2930 = vmatprep.subr.mxu0 0.0
        %2931 = vmatpush1.msra.mxu0 0.0
        %2932 = vmatprep.subr.mxu0 0.0
        %2933 = vmatpush1.msra.mxu0 0.0
        %2934 = vmatprep.subr.mxu0 0.0
        %2935 = vmatpush1.msra.mxu0 0.0
        %2936 = vmatprep.subr.mxu0 0.0
        %2937 = vmatpush1.msra.mxu0 0.0
        %2938 = vmatprep.subr.mxu0 0.0
        %2939 = vmatpush1.msra.mxu0 0.0
        %2940 = vmatprep.subr.mxu0 0.0
        %2941 = vmatpush1.msra.mxu0 0.0
        %2942 = vmatprep.subr.mxu0 0.0
        %2943 = vmatpush1.msra.mxu0 0.0
        %2944 = vmatprep.subr.mxu0 0.0
        %2945 = vmatpush1.msra.mxu0 0.0
        %2946 = vmatprep.subr.mxu0 0.0
        %2947 = vmatpush1.msra.mxu0 0.0
        %2948 = vmatprep.subr.mxu0 0.0
        %2949 = vmatpush1.msra.mxu0 0.0
        %2950 = vmatprep.subr.mxu0 0.0
        %2951 = vmatpush1.msra.mxu0 0.0
        %2952 = vmatprep.subr.mxu0 0.0
        %2953 = vmatpush1.msra.mxu0 0.0
        %2954 = vmatprep.subr.mxu0 0.0
        %2955 = vmatpush1.msra.mxu0 0.0
        %2956 = vmatprep.subr.mxu0 0.0
        %2957 = vmatpush1.msra.mxu0 0.0
        %2958 = vmatprep.subr.mxu0 0.0
        %2959 = vmatpush1.msra.mxu0 %v2926
        %2960 = vmatprep.subr.mxu0 0.0
        %2961 = vmatpush2.msra.mxu0 0.0
        %2962 = vmatprep.subr.mxu0 0.0
        %2963 = vmatpush2.msra.mxu0 0.0
        %2964 = vmatprep.subr.mxu0 0.0
        %2965 = vmatpush2.msra.mxu0 0.0
        %2966 = vmatprep.subr.mxu0 0.0
        %2967 = vmatpush2.msra.mxu0 0.0
        %2968 = vmatprep.subr.mxu0 0.0
        %2969 = vmatpush2.msra.mxu0 0.0
        %2970 = vmatprep.subr.mxu0 0.0
        %2971 = vmatpush2.msra.mxu0 0.0
        %2972 = vmatprep.subr.mxu0 0.0
        %2973 = vmatpush2.msra.mxu0 0.0
        %2974 = vmatprep.subr.mxu0 0.0
        %2975 = vmatpush2.msra.mxu0 0.0
        %2976 = vmatprep.subr.mxu0 0.0
        %2977 = vmatpush2.msra.mxu0 0.0
        %2978 = vmatprep.subr.mxu0 0.0
        %2979 = vmatpush2.msra.mxu0 0.0
        %2980 = vmatprep.subr.mxu0 0.0
        %2981 = vmatpush2.msra.mxu0 0.0
        %2982 = vmatprep.subr.mxu0 0.0
        %2983 = vmatpush2.msra.mxu0 0.0
        %2984 = vmatprep.subr.mxu0 0.0
        %2985 = vmatpush2.msra.mxu0 0.0
        %2986 = vmatprep.subr.mxu0 0.0
        %2987 = vmatpush2.msra.mxu0 0.0
        %2988 = vmatprep.subr.mxu0 0.0
        %2989 = vmatpush2.msra.mxu0 0.0
        %2990 = vmatprep.subr.mxu0 0.0
        %2991 = vmatpush2.msra.mxu0 0.0
        %2992 = vmatprep.mubr.f32.mxu0 0.0
        %2993 = vmatmul.mubr.f32.gmra.mxu0 %v2923
        %v2994 = vpop.f32.mrf.mxu0
        %v2995 = vadd.f32 0.0, %v2994
        %v2996 = vpop.f32.mrf.mxu0
        %2997 = vdwg.mxu0
        %2998 = vst.msk [vmem:[#allocation3 + $0x8] sm:$0x1f] %vm2317, %v2995
        %2999 = vrot.lane.b32.xlu0 %v2065, 96
        %v3000 = vpop.permute.xlu0 %2999
        %3001 = vrot.lane.b32.xlu0 %v2106, 96
        %v3002 = vpop.permute.xlu0 %3001
        %v3003 = vsel %vm2151, %v3000, 0
        %v3005 = vsel %vm2151, %v3002, 0
        %3007 = vmatprep.subr.mxu0 0.0
        %3008 = vmatpush1.xpose.msra.mxu0 0.0
        %3009 = vmatprep.subr.mxu0 0.0
        %3010 = vmatpush1.xpose.msra.mxu0 0.0
        %3011 = vmatprep.subr.mxu0 0.0
        %3012 = vmatpush1.xpose.msra.mxu0 0.0
        %3013 = vmatprep.subr.mxu0 0.0
        %3014 = vmatpush1.xpose.msra.mxu0 0.0
        %3015 = vmatprep.subr.mxu0 0.0
        %3016 = vmatpush1.xpose.msra.mxu0 0.0
        %3017 = vmatprep.subr.mxu0 0.0
        %3018 = vmatpush1.xpose.msra.mxu0 0.0
        %3019 = vmatprep.subr.mxu0 0.0
        %3020 = vmatpush1.xpose.msra.mxu0 0.0
        %3021 = vmatprep.subr.mxu0 0.0
        %3022 = vmatpush1.xpose.msra.mxu0 0.0
        %3023 = vmatprep.subr.mxu0 0.0
        %3024 = vmatpush1.xpose.msra.mxu0 0.0
        %3025 = vmatprep.subr.mxu0 0.0
        %3026 = vmatpush1.xpose.msra.mxu0 0.0
        %3027 = vmatprep.subr.mxu0 0.0
        %3028 = vmatpush1.xpose.msra.mxu0 0.0
        %3029 = vmatprep.subr.mxu0 0.0
        %3030 = vmatpush1.xpose.msra.mxu0 0.0
        %3031 = vmatprep.subr.mxu0 0.0
        %3032 = vmatpush1.xpose.msra.mxu0 0.0
        %3033 = vmatprep.subr.mxu0 0.0
        %3034 = vmatpush1.xpose.msra.mxu0 0.0
        %3035 = vmatprep.subr.mxu0 0.0
        %3036 = vmatpush1.xpose.msra.mxu0 0.0
        %3037 = vmatprep.subr.mxu0 0.0
        %3038 = vmatpush1.xpose.msra.mxu0 %v3005
        %3039 = vmatprep.subr.mxu0 0.0
        %3040 = vmatpush2.xpose.msra.mxu0 0.0
        %3041 = vmatprep.subr.mxu0 0.0
        %3042 = vmatpush2.xpose.msra.mxu0 0.0
        %3043 = vmatprep.subr.mxu0 0.0
        %3044 = vmatpush2.xpose.msra.mxu0 0.0
        %3045 = vmatprep.subr.mxu0 0.0
        %3046 = vmatpush2.xpose.msra.mxu0 0.0
        %3047 = vmatprep.subr.mxu0 0.0
        %3048 = vmatpush2.xpose.msra.mxu0 0.0
        %3049 = vmatprep.subr.mxu0 0.0
        %3050 = vmatpush2.xpose.msra.mxu0 0.0
        %3051 = vmatprep.subr.mxu0 0.0
        %3052 = vmatpush2.xpose.msra.mxu0 0.0
        %3053 = vmatprep.subr.mxu0 0.0
        %3054 = vmatpush2.xpose.msra.mxu0 0.0
        %3055 = vmatprep.subr.mxu0 0.0
        %3056 = vmatpush2.xpose.msra.mxu0 0.0
        %3057 = vmatprep.subr.mxu0 0.0
        %3058 = vmatpush2.xpose.msra.mxu0 0.0
        %3059 = vmatprep.subr.mxu0 0.0
        %3060 = vmatpush2.xpose.msra.mxu0 0.0
        %3061 = vmatprep.subr.mxu0 0.0
        %3062 = vmatpush2.xpose.msra.mxu0 0.0
        %3063 = vmatprep.subr.mxu0 0.0
        %3064 = vmatpush2.xpose.msra.mxu0 0.0
        %3065 = vmatprep.subr.mxu0 0.0
        %3066 = vmatpush2.xpose.msra.mxu0 0.0
        %3067 = vmatprep.subr.mxu0 0.0
        %3068 = vmatpush2.xpose.msra.mxu0 0.0
        %3069 = vmatprep.subr.mxu0 0.0
        %3070 = vmatpush2.xpose.msra.mxu0 0.0
        %3071 = vmatprep.mubr.f32.mxu0 0.0
        %3072 = vmatmul.mubr.f32.gmra.mxu0 %v3003
        %v3073 = vpop.f32.mrf.mxu0
        %v3074 = vadd.f32 0.0, %v3073
        %v3075 = vpop.f32.mrf.mxu0
        %3076 = vdwg.mxu0
        %v3077 = vsel %vm2228, %v3074, -inf
        %3078 = vmax.xlane.f32.xlu0 %v3077
        %v3079 = vpop.xlane.xlu0 %3078
        %v3080 = vsub.f32 %v3074, %v3079
        %v3081 = vmul.f32 %v3080, 1.442695
        %v3082 = vpow.pop %v3081
        %v3083 = vsel %vm2228, %v3082, 0.0
        %3084 = vadd.xlane.f32.xlu0 %v3083
        %v3085 = vpop.xlane.xlu0 %3084
        %v3086 = vrcp.pop %v3085
        %v3087 = vmul.f32 %v3082, %v3086
        %3088 = vrot.lane.b32.xlu0 %v2147, 96
        %v3089 = vpop.permute.xlu0 %3088
        %v3091 = vsel %vm2240, %v3087, 0
        %v3093 = vsel %vm1370, %v3089, 0
        %3095 = vmatprep.subr.mxu0 0.0
        %3096 = vmatpush1.msra.mxu0 0.0
        %3097 = vmatprep.subr.mxu0 0.0
        %3098 = vmatpush1.msra.mxu0 0.0
        %3099 = vmatprep.subr.mxu0 0.0
        %3100 = vmatpush1.msra.mxu0 0.0
        %3101 = vmatprep.subr.mxu0 0.0
        %3102 = vmatpush1.msra.mxu0 0.0
        %3103 = vmatprep.subr.mxu0 0.0
        %3104 = vmatpush1.msra.mxu0 0.0
        %3105 = vmatprep.subr.mxu0 0.0
        %3106 = vmatpush1.msra.mxu0 0.0
        %3107 = vmatprep.subr.mxu0 0.0
        %3108 = vmatpush1.msra.mxu0 0.0
        %3109 = vmatprep.subr.mxu0 0.0
        %3110 = vmatpush1.msra.mxu0 0.0
        %3111 = vmatprep.subr.mxu0 0.0
        %3112 = vmatpush1.msra.mxu0 0.0
        %3113 = vmatprep.subr.mxu0 0.0
        %3114 = vmatpush1.msra.mxu0 0.0
        %3115 = vmatprep.subr.mxu0 0.0
        %3116 = vmatpush1.msra.mxu0 0.0
        %3117 = vmatprep.subr.mxu0 0.0
        %3118 = vmatpush1.msra.mxu0 0.0
        %3119 = vmatprep.subr.mxu0 0.0
        %3120 = vmatpush1.msra.mxu0 0.0
        %3121 = vmatprep.subr.mxu0 0.0
        %3122 = vmatpush1.msra.mxu0 0.0
        %3123 = vmatprep.subr.mxu0 0.0
        %3124 = vmatpush1.msra.mxu0 0.0
        %3125 = vmatprep.subr.mxu0 0.0
        %3126 = vmatpush1.msra.mxu0 %v3093
        %3127 = vmatprep.subr.mxu0 0.0
        %3128 = vmatpush2.msra.mxu0 0.0
        %3129 = vmatprep.subr.mxu0 0.0
        %3130 = vmatpush2.msra.mxu0 0.0
        %3131 = vmatprep.subr.mxu0 0.0
        %3132 = vmatpush2.msra.mxu0 0.0
        %3133 = vmatprep.subr.mxu0 0.0
        %3134 = vmatpush2.msra.mxu0 0.0
        %3135 = vmatprep.subr.mxu0 0.0
        %3136 = vmatpush2.msra.mxu0 0.0
        %3137 = vmatprep.subr.mxu0 0.0
        %3138 = vmatpush2.msra.mxu0 0.0
        %3139 = vmatprep.subr.mxu0 0.0
        %3140 = vmatpush2.msra.mxu0 0.0
        %3141 = vmatprep.subr.mxu0 0.0
        %3142 = vmatpush2.msra.mxu0 0.0
        %3143 = vmatprep.subr.mxu0 0.0
        %3144 = vmatpush2.msra.mxu0 0.0
        %3145 = vmatprep.subr.mxu0 0.0
        %3146 = vmatpush2.msra.mxu0 0.0
        %3147 = vmatprep.subr.mxu0 0.0
        %3148 = vmatpush2.msra.mxu0 0.0
        %3149 = vmatprep.subr.mxu0 0.0
        %3150 = vmatpush2.msra.mxu0 0.0
        %3151 = vmatprep.subr.mxu0 0.0
        %3152 = vmatpush2.msra.mxu0 0.0
        %3153 = vmatprep.subr.mxu0 0.0
        %3154 = vmatpush2.msra.mxu0 0.0
        %3155 = vmatprep.subr.mxu0 0.0
        %3156 = vmatpush2.msra.mxu0 0.0
        %3157 = vmatprep.subr.mxu0 0.0
        %3158 = vmatpush2.msra.mxu0 0.0
        %3159 = vmatprep.mubr.f32.mxu0 0.0
        %3160 = vmatmul.mubr.f32.gmra.mxu0 %v3091
        %v3161 = vpop.f32.mrf.mxu0
        %v3162 = vadd.f32 0.0, %v3161
        %v3163 = vpop.f32.mrf.mxu0
        %3164 = vdwg.mxu0
        %3166 = vrot.lane.b32.xlu0 %v3162, 32
        %v3167 = vpop.permute.xlu0 %3166
        %3169 = vst.msk [vmem:[#allocation3 + $0x8] sm:$0x1f] %vm2489, %v3167
        %3170 = vrot.lane.b32.xlu0 %v2065, 64
        %v3171 = vpop.permute.xlu0 %3170
        %3172 = vrot.lane.b32.xlu0 %v2106, 64
        %v3173 = vpop.permute.xlu0 %3172
        %v3174 = vsel %vm2151, %v3171, 0
        %v3176 = vsel %vm2151, %v3173, 0
        %3178 = vmatprep.subr.mxu0 0.0
        %3179 = vmatpush1.xpose.msra.mxu0 0.0
        %3180 = vmatprep.subr.mxu0 0.0
        %3181 = vmatpush1.xpose.msra.mxu0 0.0
        %3182 = vmatprep.subr.mxu0 0.0
        %3183 = vmatpush1.xpose.msra.mxu0 0.0
        %3184 = vmatprep.subr.mxu0 0.0
        %3185 = vmatpush1.xpose.msra.mxu0 0.0
        %3186 = vmatprep.subr.mxu0 0.0
        %3187 = vmatpush1.xpose.msra.mxu0 0.0
        %3188 = vmatprep.subr.mxu0 0.0
        %3189 = vmatpush1.xpose.msra.mxu0 0.0
        %3190 = vmatprep.subr.mxu0 0.0
        %3191 = vmatpush1.xpose.msra.mxu0 0.0
        %3192 = vmatprep.subr.mxu0 0.0
        %3193 = vmatpush1.xpose.msra.mxu0 0.0
        %3194 = vmatprep.subr.mxu0 0.0
        %3195 = vmatpush1.xpose.msra.mxu0 0.0
        %3196 = vmatprep.subr.mxu0 0.0
        %3197 = vmatpush1.xpose.msra.mxu0 0.0
        %3198 = vmatprep.subr.mxu0 0.0
        %3199 = vmatpush1.xpose.msra.mxu0 0.0
        %3200 = vmatprep.subr.mxu0 0.0
        %3201 = vmatpush1.xpose.msra.mxu0 0.0
        %3202 = vmatprep.subr.mxu0 0.0
        %3203 = vmatpush1.xpose.msra.mxu0 0.0
        %3204 = vmatprep.subr.mxu0 0.0
        %3205 = vmatpush1.xpose.msra.mxu0 0.0
        %3206 = vmatprep.subr.mxu0 0.0
        %3207 = vmatpush1.xpose.msra.mxu0 0.0
        %3208 = vmatprep.subr.mxu0 0.0
        %3209 = vmatpush1.xpose.msra.mxu0 %v3176
        %3210 = vmatprep.subr.mxu0 0.0
        %3211 = vmatpush2.xpose.msra.mxu0 0.0
        %3212 = vmatprep.subr.mxu0 0.0
        %3213 = vmatpush2.xpose.msra.mxu0 0.0
        %3214 = vmatprep.subr.mxu0 0.0
        %3215 = vmatpush2.xpose.msra.mxu0 0.0
        %3216 = vmatprep.subr.mxu0 0.0
        %3217 = vmatpush2.xpose.msra.mxu0 0.0
        %3218 = vmatprep.subr.mxu0 0.0
        %3219 = vmatpush2.xpose.msra.mxu0 0.0
        %3220 = vmatprep.subr.mxu0 0.0
        %3221 = vmatpush2.xpose.msra.mxu0 0.0
        %3222 = vmatprep.subr.mxu0 0.0
        %3223 = vmatpush2.xpose.msra.mxu0 0.0
        %3224 = vmatprep.subr.mxu0 0.0
        %3225 = vmatpush2.xpose.msra.mxu0 0.0
        %3226 = vmatprep.subr.mxu0 0.0
        %3227 = vmatpush2.xpose.msra.mxu0 0.0
        %3228 = vmatprep.subr.mxu0 0.0
        %3229 = vmatpush2.xpose.msra.mxu0 0.0
        %3230 = vmatprep.subr.mxu0 0.0
        %3231 = vmatpush2.xpose.msra.mxu0 0.0
        %3232 = vmatprep.subr.mxu0 0.0
        %3233 = vmatpush2.xpose.msra.mxu0 0.0
        %3234 = vmatprep.subr.mxu0 0.0
        %3235 = vmatpush2.xpose.msra.mxu0 0.0
        %3236 = vmatprep.subr.mxu0 0.0
        %3237 = vmatpush2.xpose.msra.mxu0 0.0
        %3238 = vmatprep.subr.mxu0 0.0
        %3239 = vmatpush2.xpose.msra.mxu0 0.0
        %3240 = vmatprep.subr.mxu0 0.0
        %3241 = vmatpush2.xpose.msra.mxu0 0.0
        %3242 = vmatprep.mubr.f32.mxu0 0.0
        %3243 = vmatmul.mubr.f32.gmra.mxu0 %v3174
        %v3244 = vpop.f32.mrf.mxu0
        %v3245 = vadd.f32 0.0, %v3244
        %v3246 = vpop.f32.mrf.mxu0
        %3247 = vdwg.mxu0
        %v3248 = vsel %vm2228, %v3245, -inf
        %3249 = vmax.xlane.f32.xlu0 %v3248
        %v3250 = vpop.xlane.xlu0 %3249
        %v3251 = vsub.f32 %v3245, %v3250
        %v3252 = vmul.f32 %v3251, 1.442695
        %v3253 = vpow.pop %v3252
        %v3254 = vsel %vm2228, %v3253, 0.0
        %3255 = vadd.xlane.f32.xlu0 %v3254
        %v3256 = vpop.xlane.xlu0 %3255
        %v3257 = vrcp.pop %v3256
        %v3258 = vmul.f32 %v3253, %v3257
        %3259 = vrot.lane.b32.xlu0 %v2147, 64
        %v3260 = vpop.permute.xlu0 %3259
        %v3262 = vsel %vm2240, %v3258, 0
        %v3264 = vsel %vm1370, %v3260, 0
        %3266 = vmatprep.subr.mxu0 0.0
        %3267 = vmatpush1.msra.mxu0 0.0
        %3268 = vmatprep.subr.mxu0 0.0
        %3269 = vmatpush1.msra.mxu0 0.0
        %3270 = vmatprep.subr.mxu0 0.0
        %3271 = vmatpush1.msra.mxu0 0.0
        %3272 = vmatprep.subr.mxu0 0.0
        %3273 = vmatpush1.msra.mxu0 0.0
        %3274 = vmatprep.subr.mxu0 0.0
        %3275 = vmatpush1.msra.mxu0 0.0
        %3276 = vmatprep.subr.mxu0 0.0
        %3277 = vmatpush1.msra.mxu0 0.0
        %3278 = vmatprep.subr.mxu0 0.0
        %3279 = vmatpush1.msra.mxu0 0.0
        %3280 = vmatprep.subr.mxu0 0.0
        %3281 = vmatpush1.msra.mxu0 0.0
        %3282 = vmatprep.subr.mxu0 0.0
        %3283 = vmatpush1.msra.mxu0 0.0
        %3284 = vmatprep.subr.mxu0 0.0
        %3285 = vmatpush1.msra.mxu0 0.0
        %3286 = vmatprep.subr.mxu0 0.0
        %3287 = vmatpush1.msra.mxu0 0.0
        %3288 = vmatprep.subr.mxu0 0.0
        %3289 = vmatpush1.msra.mxu0 0.0
        %3290 = vmatprep.subr.mxu0 0.0
        %3291 = vmatpush1.msra.mxu0 0.0
        %3292 = vmatprep.subr.mxu0 0.0
        %3293 = vmatpush1.msra.mxu0 0.0
        %3294 = vmatprep.subr.mxu0 0.0
        %3295 = vmatpush1.msra.mxu0 0.0
        %3296 = vmatprep.subr.mxu0 0.0
        %3297 = vmatpush1.msra.mxu0 %v3264
        %3298 = vmatprep.subr.mxu0 0.0
        %3299 = vmatpush2.msra.mxu0 0.0
        %3300 = vmatprep.subr.mxu0 0.0
        %3301 = vmatpush2.msra.mxu0 0.0
        %3302 = vmatprep.subr.mxu0 0.0
        %3303 = vmatpush2.msra.mxu0 0.0
        %3304 = vmatprep.subr.mxu0 0.0
        %3305 = vmatpush2.msra.mxu0 0.0
        %3306 = vmatprep.subr.mxu0 0.0
        %3307 = vmatpush2.msra.mxu0 0.0
        %3308 = vmatprep.subr.mxu0 0.0
        %3309 = vmatpush2.msra.mxu0 0.0
        %3310 = vmatprep.subr.mxu0 0.0
        %3311 = vmatpush2.msra.mxu0 0.0
        %3312 = vmatprep.subr.mxu0 0.0
        %3313 = vmatpush2.msra.mxu0 0.0
        %3314 = vmatprep.subr.mxu0 0.0
        %3315 = vmatpush2.msra.mxu0 0.0
        %3316 = vmatprep.subr.mxu0 0.0
        %3317 = vmatpush2.msra.mxu0 0.0
        %3318 = vmatprep.subr.mxu0 0.0
        %3319 = vmatpush2.msra.mxu0 0.0
        %3320 = vmatprep.subr.mxu0 0.0
        %3321 = vmatpush2.msra.mxu0 0.0
        %3322 = vmatprep.subr.mxu0 0.0
        %3323 = vmatpush2.msra.mxu0 0.0
        %3324 = vmatprep.subr.mxu0 0.0
        %3325 = vmatpush2.msra.mxu0 0.0
        %3326 = vmatprep.subr.mxu0 0.0
        %3327 = vmatpush2.msra.mxu0 0.0
        %3328 = vmatprep.subr.mxu0 0.0
        %3329 = vmatpush2.msra.mxu0 0.0
        %3330 = vmatprep.mubr.f32.mxu0 0.0
        %3331 = vmatmul.mubr.f32.gmra.mxu0 %v3262
        %v3332 = vpop.f32.mrf.mxu0
        %v3333 = vadd.f32 0.0, %v3332
        %v3334 = vpop.f32.mrf.mxu0
        %3335 = vdwg.mxu0
        %3337 = vrot.lane.b32.xlu0 %v3333, 64
        %v3338 = vpop.permute.xlu0 %3337
        %3340 = vst.msk [vmem:[#allocation3 + $0x8] sm:$0x1f] %vm2661, %v3338
        %3341 = vrot.lane.b32.xlu0 %v2065, 32
        %v3342 = vpop.permute.xlu0 %3341
        %3343 = vrot.lane.b32.xlu0 %v2106, 32
        %v3344 = vpop.permute.xlu0 %3343
        %v3345 = vsel %vm2151, %v3342, 0
        %v3347 = vsel %vm2151, %v3344, 0
        %3349 = vmatprep.subr.mxu0 0.0
        %3350 = vmatpush1.xpose.msra.mxu0 0.0
        %3351 = vmatprep.subr.mxu0 0.0
        %3352 = vmatpush1.xpose.msra.mxu0 0.0
        %3353 = vmatprep.subr.mxu0 0.0
        %3354 = vmatpush1.xpose.msra.mxu0 0.0
        %3355 = vmatprep.subr.mxu0 0.0
        %3356 = vmatpush1.xpose.msra.mxu0 0.0
        %3357 = vmatprep.subr.mxu0 0.0
        %3358 = vmatpush1.xpose.msra.mxu0 0.0
        %3359 = vmatprep.subr.mxu0 0.0
        %3360 = vmatpush1.xpose.msra.mxu0 0.0
        %3361 = vmatprep.subr.mxu0 0.0
        %3362 = vmatpush1.xpose.msra.mxu0 0.0
        %3363 = vmatprep.subr.mxu0 0.0
        %3364 = vmatpush1.xpose.msra.mxu0 0.0
        %3365 = vmatprep.subr.mxu0 0.0
        %3366 = vmatpush1.xpose.msra.mxu0 0.0
        %3367 = vmatprep.subr.mxu0 0.0
        %3368 = vmatpush1.xpose.msra.mxu0 0.0
        %3369 = vmatprep.subr.mxu0 0.0
        %3370 = vmatpush1.xpose.msra.mxu0 0.0
        %3371 = vmatprep.subr.mxu0 0.0
        %3372 = vmatpush1.xpose.msra.mxu0 0.0
        %3373 = vmatprep.subr.mxu0 0.0
        %3374 = vmatpush1.xpose.msra.mxu0 0.0
        %3375 = vmatprep.subr.mxu0 0.0
        %3376 = vmatpush1.xpose.msra.mxu0 0.0
        %3377 = vmatprep.subr.mxu0 0.0
        %3378 = vmatpush1.xpose.msra.mxu0 0.0
        %3379 = vmatprep.subr.mxu0 0.0
        %3380 = vmatpush1.xpose.msra.mxu0 %v3347
        %3381 = vmatprep.subr.mxu0 0.0
        %3382 = vmatpush2.xpose.msra.mxu0 0.0
        %3383 = vmatprep.subr.mxu0 0.0
        %3384 = vmatpush2.xpose.msra.mxu0 0.0
        %3385 = vmatprep.subr.mxu0 0.0
        %3386 = vmatpush2.xpose.msra.mxu0 0.0
        %3387 = vmatprep.subr.mxu0 0.0
        %3388 = vmatpush2.xpose.msra.mxu0 0.0
        %3389 = vmatprep.subr.mxu0 0.0
        %3390 = vmatpush2.xpose.msra.mxu0 0.0
        %3391 = vmatprep.subr.mxu0 0.0
        %3392 = vmatpush2.xpose.msra.mxu0 0.0
        %3393 = vmatprep.subr.mxu0 0.0
        %3394 = vmatpush2.xpose.msra.mxu0 0.0
        %3395 = vmatprep.subr.mxu0 0.0
        %3396 = vmatpush2.xpose.msra.mxu0 0.0
        %3397 = vmatprep.subr.mxu0 0.0
        %3398 = vmatpush2.xpose.msra.mxu0 0.0
        %3399 = vmatprep.subr.mxu0 0.0
        %3400 = vmatpush2.xpose.msra.mxu0 0.0
        %3401 = vmatprep.subr.mxu0 0.0
        %3402 = vmatpush2.xpose.msra.mxu0 0.0
        %3403 = vmatprep.subr.mxu0 0.0
        %3404 = vmatpush2.xpose.msra.mxu0 0.0
        %3405 = vmatprep.subr.mxu0 0.0
        %3406 = vmatpush2.xpose.msra.mxu0 0.0
        %3407 = vmatprep.subr.mxu0 0.0
        %3408 = vmatpush2.xpose.msra.mxu0 0.0
        %3409 = vmatprep.subr.mxu0 0.0
        %3410 = vmatpush2.xpose.msra.mxu0 0.0
        %3411 = vmatprep.subr.mxu0 0.0
        %3412 = vmatpush2.xpose.msra.mxu0 0.0
        %3413 = vmatprep.mubr.f32.mxu0 0.0
        %3414 = vmatmul.mubr.f32.gmra.mxu0 %v3345
        %v3415 = vpop.f32.mrf.mxu0
        %v3416 = vadd.f32 0.0, %v3415
        %v3417 = vpop.f32.mrf.mxu0
        %3418 = vdwg.mxu0
        %v3419 = vsel %vm2228, %v3416, -inf
        %3420 = vmax.xlane.f32.xlu0 %v3419
        %v3421 = vpop.xlane.xlu0 %3420
        %v3422 = vsub.f32 %v3416, %v3421
        %v3423 = vmul.f32 %v3422, 1.442695
        %v3424 = vpow.pop %v3423
        %v3425 = vsel %vm2228, %v3424, 0.0
        %3426 = vadd.xlane.f32.xlu0 %v3425
        %v3427 = vpop.xlane.xlu0 %3426
        %v3428 = vrcp.pop %v3427
        %v3429 = vmul.f32 %v3424, %v3428
        %3430 = vrot.lane.b32.xlu0 %v2147, 32
        %v3431 = vpop.permute.xlu0 %3430
        %v3433 = vsel %vm2240, %v3429, 0
        %v3435 = vsel %vm1370, %v3431, 0
        %3437 = vmatprep.subr.mxu0 0.0
        %3438 = vmatpush1.msra.mxu0 0.0
        %3439 = vmatprep.subr.mxu0 0.0
        %3440 = vmatpush1.msra.mxu0 0.0
        %3441 = vmatprep.subr.mxu0 0.0
        %3442 = vmatpush1.msra.mxu0 0.0
        %3443 = vmatprep.subr.mxu0 0.0
        %3444 = vmatpush1.msra.mxu0 0.0
        %3445 = vmatprep.subr.mxu0 0.0
        %3446 = vmatpush1.msra.mxu0 0.0
        %3447 = vmatprep.subr.mxu0 0.0
        %3448 = vmatpush1.msra.mxu0 0.0
        %3449 = vmatprep.subr.mxu0 0.0
        %3450 = vmatpush1.msra.mxu0 0.0
        %3451 = vmatprep.subr.mxu0 0.0
        %3452 = vmatpush1.msra.mxu0 0.0
        %3453 = vmatprep.subr.mxu0 0.0
        %3454 = vmatpush1.msra.mxu0 0.0
        %3455 = vmatprep.subr.mxu0 0.0
        %3456 = vmatpush1.msra.mxu0 0.0
        %3457 = vmatprep.subr.mxu0 0.0
        %3458 = vmatpush1.msra.mxu0 0.0
        %3459 = vmatprep.subr.mxu0 0.0
        %3460 = vmatpush1.msra.mxu0 0.0
        %3461 = vmatprep.subr.mxu0 0.0
        %3462 = vmatpush1.msra.mxu0 0.0
        %3463 = vmatprep.subr.mxu0 0.0
        %3464 = vmatpush1.msra.mxu0 0.0
        %3465 = vmatprep.subr.mxu0 0.0
        %3466 = vmatpush1.msra.mxu0 0.0
        %3467 = vmatprep.subr.mxu0 0.0
        %3468 = vmatpush1.msra.mxu0 %v3435
        %3469 = vmatprep.subr.mxu0 0.0
        %3470 = vmatpush2.msra.mxu0 0.0
        %3471 = vmatprep.subr.mxu0 0.0
        %3472 = vmatpush2.msra.mxu0 0.0
        %3473 = vmatprep.subr.mxu0 0.0
        %3474 = vmatpush2.msra.mxu0 0.0
        %3475 = vmatprep.subr.mxu0 0.0
        %3476 = vmatpush2.msra.mxu0 0.0
        %3477 = vmatprep.subr.mxu0 0.0
        %3478 = vmatpush2.msra.mxu0 0.0
        %3479 = vmatprep.subr.mxu0 0.0
        %3480 = vmatpush2.msra.mxu0 0.0
        %3481 = vmatprep.subr.mxu0 0.0
        %3482 = vmatpush2.msra.mxu0 0.0
        %3483 = vmatprep.subr.mxu0 0.0
        %3484 = vmatpush2.msra.mxu0 0.0
        %3485 = vmatprep.subr.mxu0 0.0
        %3486 = vmatpush2.msra.mxu0 0.0
        %3487 = vmatprep.subr.mxu0 0.0
        %3488 = vmatpush2.msra.mxu0 0.0
        %3489 = vmatprep.subr.mxu0 0.0
        %3490 = vmatpush2.msra.mxu0 0.0
        %3491 = vmatprep.subr.mxu0 0.0
        %3492 = vmatpush2.msra.mxu0 0.0
        %3493 = vmatprep.subr.mxu0 0.0
        %3494 = vmatpush2.msra.mxu0 0.0
        %3495 = vmatprep.subr.mxu0 0.0
        %3496 = vmatpush2.msra.mxu0 0.0
        %3497 = vmatprep.subr.mxu0 0.0
        %3498 = vmatpush2.msra.mxu0 0.0
        %3499 = vmatprep.subr.mxu0 0.0
        %3500 = vmatpush2.msra.mxu0 0.0
        %3501 = vmatprep.mubr.f32.mxu0 0.0
        %3502 = vmatmul.mubr.f32.gmra.mxu0 %v3433
        %v3503 = vpop.f32.mrf.mxu0
        %v3504 = vadd.f32 0.0, %v3503
        %v3505 = vpop.f32.mrf.mxu0
        %3506 = vdwg.mxu0
        %3508 = vrot.lane.b32.xlu0 %v3504, 96
        %v3509 = vpop.permute.xlu0 %3508
        %3511 = vst.msk [vmem:[#allocation3 + $0x8] sm:$0x1f] %vm2833, %v3509
        %v3512 = vld [vmem:[#allocation3] sm:$0x1f]
        %v3513 = vld [vmem:[#allocation3 + $0x8] sm:$0x1f]
        %v3514 = vpack.c.bf16 %v3512, %v3512
        %v3515 = vpack.c.bf16 %v3513, %v3513
        %v3516 = vld [vmem:[%s922] sm:$0xff]
        %v3517 = vld [vmem:[%s922 + $0x8] sm:$0xff]
        %v3518 = vld [vmem:[%s922 + $0x10] sm:$0xff]
        %v3519 = vld [vmem:[%s922 + $0x18] sm:$0xff]
        %v3520 = vld [vmem:[%s922 + $0x20] sm:$0xff]
        %v3521 = vld [vmem:[%s922 + $0x28] sm:$0xff]
        %v3522 = vld [vmem:[%s922 + $0x30] sm:$0xff]
        %v3523 = vld [vmem:[%s922 + $0x38] sm:$0xff]
        %v3524 = vld [vmem:[%s922 + $0x40] sm:$0xff]
        %v3525 = vld [vmem:[%s922 + $0x48] sm:$0xff]
        %v3526 = vld [vmem:[%s922 + $0x50] sm:$0xff]
        %v3527 = vld [vmem:[%s922 + $0x58] sm:$0xff]
        %v3528 = vld [vmem:[%s922 + $0x60] sm:$0xff]
        %v3529 = vld [vmem:[%s922 + $0x68] sm:$0xff]
        %v3530 = vld [vmem:[%s922 + $0x70] sm:$0xff]
        %v3531 = vld [vmem:[%s922 + $0x78] sm:$0xff]
        %v3532 = vld [vmem:[%s922 + $0x80] sm:$0xff]
        %v3533 = vld [vmem:[%s922 + $0x88] sm:$0xff]
        %v3534 = vld [vmem:[%s922 + $0x90] sm:$0xff]
        %v3535 = vld [vmem:[%s922 + $0x98] sm:$0xff]
        %v3536 = vld [vmem:[%s922 + $0xa0] sm:$0xff]
        %v3537 = vld [vmem:[%s922 + $0xa8] sm:$0xff]
        %v3538 = vld [vmem:[%s922 + $0xb0] sm:$0xff]
        %v3539 = vld [vmem:[%s922 + $0xb8] sm:$0xff]
        %v3540 = vld [vmem:[%s922 + $0xc0] sm:$0xff]
        %v3541 = vld [vmem:[%s922 + $0xc8] sm:$0xff]
        %v3542 = vld [vmem:[%s922 + $0xd0] sm:$0xff]
        %v3543 = vld [vmem:[%s922 + $0xd8] sm:$0xff]
        %v3544 = vld [vmem:[%s922 + $0xe0] sm:$0xff]
        %v3545 = vld [vmem:[%s922 + $0xe8] sm:$0xff]
        %v3546 = vld [vmem:[%s922 + $0xf0] sm:$0xff]
        %v3547 = vld [vmem:[%s922 + $0xf8] sm:$0xff]
        %v3548 = vld [vmem:[%s931] sm:$0x3]
        %v3550 = vlaneseq
        %v3551 = vshrl.u32 %v3550, 7
        %v3552 = vsub.s32 0, %v3551
        %v3553 = vrot.slane %v3548, %v3552
        %v3554 = vlaneseq
        %v3555 = vshrl.u32 %v3554, 7
        %v3556 = vsub.s32 1, %v3555
        %v3557 = vrot.slane %v3548, %v3556
        %v3592 = vunpack.c.l.b16 %v3516
        %v3593 = vunpack.c.h.b16 %v3516
        %v3594 = vunpack.c.l.b16 %v3517
        %v3595 = vunpack.c.h.b16 %v3517
        %v3596 = vunpack.c.l.b16 %v3518
        %v3597 = vunpack.c.h.b16 %v3518
        %v3598 = vunpack.c.l.b16 %v3519
        %v3599 = vunpack.c.h.b16 %v3519
        %v3600 = vunpack.c.l.b16 %v3520
        %v3601 = vunpack.c.h.b16 %v3520
        %v3602 = vunpack.c.l.b16 %v3521
        %v3603 = vunpack.c.h.b16 %v3521
        %v3604 = vunpack.c.l.b16 %v3522
        %v3605 = vunpack.c.h.b16 %v3522
        %v3606 = vunpack.c.l.b16 %v3523
        %v3607 = vunpack.c.h.b16 %v3523
        %v3608 = vunpack.c.l.b16 %v3524
        %v3609 = vunpack.c.h.b16 %v3524
        %v3610 = vunpack.c.l.b16 %v3525
        %v3611 = vunpack.c.h.b16 %v3525
        %v3612 = vunpack.c.l.b16 %v3526
        %v3613 = vunpack.c.h.b16 %v3526
        %v3614 = vunpack.c.l.b16 %v3527
        %v3615 = vunpack.c.h.b16 %v3527
        %v3616 = vunpack.c.l.b16 %v3528
        %v3617 = vunpack.c.h.b16 %v3528
        %v3618 = vunpack.c.l.b16 %v3529
        %v3619 = vunpack.c.h.b16 %v3529
        %v3620 = vunpack.c.l.b16 %v3530
        %v3621 = vunpack.c.h.b16 %v3530
        %v3622 = vunpack.c.l.b16 %v3531
        %v3623 = vunpack.c.h.b16 %v3531
        %v3624 = vunpack.c.l.b16 %v3532
        %v3625 = vunpack.c.h.b16 %v3532
        %v3626 = vunpack.c.l.b16 %v3533
        %v3627 = vunpack.c.h.b16 %v3533
        %v3628 = vunpack.c.l.b16 %v3534
        %v3629 = vunpack.c.h.b16 %v3534
        %v3630 = vunpack.c.l.b16 %v3535
        %v3631 = vunpack.c.h.b16 %v3535
        %v3632 = vunpack.c.l.b16 %v3536
        %v3633 = vunpack.c.h.b16 %v3536
        %v3634 = vunpack.c.l.b16 %v3537
        %v3635 = vunpack.c.h.b16 %v3537
        %v3636 = vunpack.c.l.b16 %v3538
        %v3637 = vunpack.c.h.b16 %v3538
        %v3638 = vunpack.c.l.b16 %v3539
        %v3639 = vunpack.c.h.b16 %v3539
        %v3640 = vunpack.c.l.b16 %v3540
        %v3641 = vunpack.c.h.b16 %v3540
        %v3642 = vunpack.c.l.b16 %v3541
        %v3643 = vunpack.c.h.b16 %v3541
        %v3644 = vunpack.c.l.b16 %v3542
        %v3645 = vunpack.c.h.b16 %v3542
        %v3646 = vunpack.c.l.b16 %v3543
        %v3647 = vunpack.c.h.b16 %v3543
        %v3648 = vunpack.c.l.b16 %v3544
        %v3649 = vunpack.c.h.b16 %v3544
        %v3650 = vunpack.c.l.b16 %v3545
        %v3651 = vunpack.c.h.b16 %v3545
        %v3652 = vunpack.c.l.b16 %v3546
        %v3653 = vunpack.c.h.b16 %v3546
        %v3654 = vunpack.c.l.b16 %v3547
        %v3655 = vunpack.c.h.b16 %v3547
        %v3656 = vpack.c.b16 %v3594, %v3592
        %v3657 = vpack.c.b16 %v3595, %v3593
        %v3658 = vpack.c.b16 %v3598, %v3596
        %v3659 = vpack.c.b16 %v3599, %v3597
        %v3660 = vpack.c.b16 %v3602, %v3600
        %v3661 = vpack.c.b16 %v3603, %v3601
        %v3662 = vpack.c.b16 %v3606, %v3604
        %v3663 = vpack.c.b16 %v3607, %v3605
        %v3664 = vpack.c.b16 %v3610, %v3608
        %v3665 = vpack.c.b16 %v3611, %v3609
        %v3666 = vpack.c.b16 %v3614, %v3612
        %v3667 = vpack.c.b16 %v3615, %v3613
        %v3668 = vpack.c.b16 %v3618, %v3616
        %v3669 = vpack.c.b16 %v3619, %v3617
        %v3670 = vpack.c.b16 %v3622, %v3620
        %v3671 = vpack.c.b16 %v3623, %v3621
        %v3672 = vpack.c.b16 %v3626, %v3624
        %v3673 = vpack.c.b16 %v3627, %v3625
        %v3674 = vpack.c.b16 %v3630, %v3628
        %v3675 = vpack.c.b16 %v3631, %v3629
        %v3676 = vpack.c.b16 %v3634, %v3632
        %v3677 = vpack.c.b16 %v3635, %v3633
        %v3678 = vpack.c.b16 %v3638, %v3636
        %v3679 = vpack.c.b16 %v3639, %v3637
        %v3680 = vpack.c.b16 %v3642, %v3640
        %v3681 = vpack.c.b16 %v3643, %v3641
        %v3682 = vpack.c.b16 %v3646, %v3644
        %v3683 = vpack.c.b16 %v3647, %v3645
        %v3684 = vpack.c.b16 %v3650, %v3648
        %v3685 = vpack.c.b16 %v3651, %v3649
        %v3686 = vpack.c.b16 %v3654, %v3652
        %v3687 = vpack.c.b16 %v3655, %v3653
        %3720 = vmatprep.subr.bf16.mxu0 %v3671
        %3721 = vmatpush1.bf16.msra.mxu0 %v3670
        %3722 = vmatprep.subr.bf16.mxu0 %v3669
        %3723 = vmatpush1.bf16.msra.mxu0 %v3668
        %3724 = vmatprep.subr.bf16.mxu0 %v3667
        %3725 = vmatpush1.bf16.msra.mxu0 %v3666
        %3726 = vmatprep.subr.bf16.mxu0 %v3665
        %3727 = vmatpush1.bf16.msra.mxu0 %v3664
        %3728 = vmatprep.subr.bf16.mxu0 %v3663
        %3729 = vmatpush1.bf16.msra.mxu0 %v3662
        %3730 = vmatprep.subr.bf16.mxu0 %v3661
        %3731 = vmatpush1.bf16.msra.mxu0 %v3660
        %3732 = vmatprep.subr.bf16.mxu0 %v3659
        %3733 = vmatpush1.bf16.msra.mxu0 %v3658
        %3734 = vmatprep.subr.bf16.mxu0 %v3657
        %3735 = vmatpush1.bf16.msra.mxu0 %v3656
        %3736 = vmatprep.subr.bf16.mxu0 %v3687
        %3737 = vmatpush2.bf16.msra.mxu0 %v3686
        %3738 = vmatprep.subr.bf16.mxu0 %v3685
        %3739 = vmatpush2.bf16.msra.mxu0 %v3684
        %3740 = vmatprep.subr.bf16.mxu0 %v3683
        %3741 = vmatpush2.bf16.msra.mxu0 %v3682
        %3742 = vmatprep.subr.bf16.mxu0 %v3681
        %3743 = vmatpush2.bf16.msra.mxu0 %v3680
        %3744 = vmatprep.subr.bf16.mxu0 %v3679
        %3745 = vmatpush2.bf16.msra.mxu0 %v3678
        %3746 = vmatprep.subr.bf16.mxu0 %v3677
        %3747 = vmatpush2.bf16.msra.mxu0 %v3676
        %3748 = vmatprep.subr.bf16.mxu0 %v3675
        %3749 = vmatpush2.bf16.msra.mxu0 %v3674
        %3750 = vmatprep.subr.bf16.mxu0 %v3673
        %3751 = vmatpush2.bf16.msra.mxu0 %v3672
        %3752 = vmatprep.mubr.bf16.mxu0 %v3515
        %3753 = vmatmul.mubr.bf16.gmra.mxu0 %v3514
        %v3754 = vpop.f32.mrf.mxu0
        %v3755 = vadd.f32 %v3553, %v3754
        %v3756 = vpop.f32.mrf.mxu0
        %v3757 = vadd.f32 %v3557, %v3756
        %v3758 = vpop.f32.mrf.mxu0
        %v3759 = vpop.f32.mrf.mxu0
        %3760 = vdwg.mxu0
        %v3761 = vadd.f32 %v1366, %v3755
        %v3762 = vadd.f32 %v1367, %v3757
        %v3763 = vld [vmem:[%s940] sm:$0x3]
        %v3764 = vld [vmem:[%s949] sm:$0x3]
        %v3765 = vsel %vm1370, %v3761, 0.0
        %v3766 = vsel %vm1370, %v3762, 0.0
        %v3767 = vadd.f32 %v3765, %v3766
        %3768 = vadd.xlane.f32.xlu0 %v3767
        %v3769 = vpop.xlane.xlu0 %3768
        %v3770 = vmul.f32 %v3769, %v1376
        %v3771 = vsub.f32 %v3761, %v3770
        %v3772 = vsub.f32 %v3762, %v3770
        %v3773 = vmul.f32 %v3771, %v3771
        %v3774 = vmul.f32 %v3772, %v3772
        %v3775 = vsel %vm1370, %v3773, 0.0
        %v3776 = vsel %vm1370, %v3774, 0.0
        %v3777 = vadd.f32 %v3775, %v3776
        %3778 = vadd.xlane.f32.xlu0 %v3777
        %v3779 = vpop.xlane.xlu0 %3778
        %v3780 = vmul.f32 %v3779, %v1376
        %v3781 = vadd.f32 %v3780, 1e-12
        %v3782 = vrsqrt.pop %v3781
        %v3783 = vmul.f32 %v3771, %v3782
        %v3784 = vmul.f32 %v3772, %v3782
        %v3786 = vlaneseq
        %v3787 = vshrl.u32 %v3786, 7
        %v3788 = vsub.s32 0, %v3787
        %v3789 = vrot.slane %v3763, %v3788
        %v3790 = vlaneseq
        %v3791 = vshrl.u32 %v3790, 7
        %v3792 = vsub.s32 1, %v3791
        %v3793 = vrot.slane %v3763, %v3792
        %v3796 = vmul.f32 %v3783, %v3789
        %v3797 = vmul.f32 %v3784, %v3793
        %v3799 = vlaneseq
        %v3800 = vshrl.u32 %v3799, 7
        %v3801 = vsub.s32 0, %v3800
        %v3802 = vrot.slane %v3764, %v3801
        %v3803 = vlaneseq
        %v3804 = vshrl.u32 %v3803, 7
        %v3805 = vsub.s32 1, %v3804
        %v3806 = vrot.slane %v3764, %v3805
        %v3809 = vadd.f32 %v3796, %v3802
        %v3810 = vadd.f32 %v3797, %v3806
        %v3811 = vpack.c.bf16 %v3809, %v3809
        %v3812 = vpack.c.bf16 %v3810, %v3810
        %v3813 = vld [vmem:[%s958] sm:$0xff]
        %v3814 = vld [vmem:[%s958 + $0x8] sm:$0xff]
        %v3815 = vld [vmem:[%s958 + $0x10] sm:$0xff]
        %v3816 = vld [vmem:[%s958 + $0x18] sm:$0xff]
        %v3817 = vld [vmem:[%s958 + $0x20] sm:$0xff]
        %v3818 = vld [vmem:[%s958 + $0x28] sm:$0xff]
        %v3819 = vld [vmem:[%s958 + $0x30] sm:$0xff]
        %v3820 = vld [vmem:[%s958 + $0x38] sm:$0xff]
        %v3821 = vld [vmem:[%s958 + $0x40] sm:$0xff]
        %v3822 = vld [vmem:[%s958 + $0x48] sm:$0xff]
        %v3823 = vld [vmem:[%s958 + $0x50] sm:$0xff]
        %v3824 = vld [vmem:[%s958 + $0x58] sm:$0xff]
        %v3825 = vld [vmem:[%s958 + $0x60] sm:$0xff]
        %v3826 = vld [vmem:[%s958 + $0x68] sm:$0xff]
        %v3827 = vld [vmem:[%s958 + $0x70] sm:$0xff]
        %v3828 = vld [vmem:[%s958 + $0x78] sm:$0xff]
        %v3829 = vld [vmem:[%s958 + $0x80] sm:$0xff]
        %v3830 = vld [vmem:[%s958 + $0x88] sm:$0xff]
        %v3831 = vld [vmem:[%s958 + $0x90] sm:$0xff]
        %v3832 = vld [vmem:[%s958 + $0x98] sm:$0xff]
        %v3833 = vld [vmem:[%s958 + $0xa0] sm:$0xff]
        %v3834 = vld [vmem:[%s958 + $0xa8] sm:$0xff]
        %v3835 = vld [vmem:[%s958 + $0xb0] sm:$0xff]
        %v3836 = vld [vmem:[%s958 + $0xb8] sm:$0xff]
        %v3837 = vld [vmem:[%s958 + $0xc0] sm:$0xff]
        %v3838 = vld [vmem:[%s958 + $0xc8] sm:$0xff]
        %v3839 = vld [vmem:[%s958 + $0xd0] sm:$0xff]
        %v3840 = vld [vmem:[%s958 + $0xd8] sm:$0xff]
        %v3841 = vld [vmem:[%s958 + $0xe0] sm:$0xff]
        %v3842 = vld [vmem:[%s958 + $0xe8] sm:$0xff]
        %v3843 = vld [vmem:[%s958 + $0xf0] sm:$0xff]
        %v3844 = vld [vmem:[%s958 + $0xf8] sm:$0xff]
        %v3845 = vld [vmem:[%s958 + $0x100] sm:$0xff]
        %v3846 = vld [vmem:[%s958 + $0x108] sm:$0xff]
        %v3847 = vld [vmem:[%s958 + $0x110] sm:$0xff]
        %v3848 = vld [vmem:[%s958 + $0x118] sm:$0xff]
        %v3849 = vld [vmem:[%s958 + $0x120] sm:$0xff]
        %v3850 = vld [vmem:[%s958 + $0x128] sm:$0xff]
        %v3851 = vld [vmem:[%s958 + $0x130] sm:$0xff]
        %v3852 = vld [vmem:[%s958 + $0x138] sm:$0xff]
        %v3853 = vld [vmem:[%s958 + $0x140] sm:$0xff]
        %v3854 = vld [vmem:[%s958 + $0x148] sm:$0xff]
        %v3855 = vld [vmem:[%s958 + $0x150] sm:$0xff]
        %v3856 = vld [vmem:[%s958 + $0x158] sm:$0xff]
        %v3857 = vld [vmem:[%s958 + $0x160] sm:$0xff]
        %v3858 = vld [vmem:[%s958 + $0x168] sm:$0xff]
        %v3859 = vld [vmem:[%s958 + $0x170] sm:$0xff]
        %v3860 = vld [vmem:[%s958 + $0x178] sm:$0xff]
        %v3861 = vld [vmem:[%s958 + $0x180] sm:$0xff]
        %v3862 = vld [vmem:[%s958 + $0x188] sm:$0xff]
        %v3863 = vld [vmem:[%s958 + $0x190] sm:$0xff]
        %v3864 = vld [vmem:[%s958 + $0x198] sm:$0xff]
        %v3865 = vld [vmem:[%s958 + $0x1a0] sm:$0xff]
        %v3866 = vld [vmem:[%s958 + $0x1a8] sm:$0xff]
        %v3867 = vld [vmem:[%s958 + $0x1b0] sm:$0xff]
        %v3868 = vld [vmem:[%s958 + $0x1b8] sm:$0xff]
        %v3869 = vld [vmem:[%s958 + $0x1c0] sm:$0xff]
        %v3870 = vld [vmem:[%s958 + $0x1c8] sm:$0xff]
        %v3871 = vld [vmem:[%s958 + $0x1d0] sm:$0xff]
        %v3872 = vld [vmem:[%s958 + $0x1d8] sm:$0xff]
        %v3873 = vld [vmem:[%s958 + $0x1e0] sm:$0xff]
        %v3874 = vld [vmem:[%s958 + $0x1e8] sm:$0xff]
        %v3875 = vld [vmem:[%s958 + $0x1f0] sm:$0xff]
        %v3876 = vld [vmem:[%s958 + $0x1f8] sm:$0xff]
        %v3877 = vld [vmem:[%s967] sm:$0xf]
        %v3879 = vlaneseq
        %v3880 = vshrl.u32 %v3879, 7
        %v3881 = vsub.s32 0, %v3880
        %v3882 = vrot.slane %v3877, %v3881
        %v3883 = vlaneseq
        %v3884 = vshrl.u32 %v3883, 7
        %v3885 = vsub.s32 1, %v3884
        %v3886 = vrot.slane %v3877, %v3885
        %v3887 = vlaneseq
        %v3888 = vshrl.u32 %v3887, 7
        %v3889 = vsub.s32 2, %v3888
        %v3890 = vrot.slane %v3877, %v3889
        %v3891 = vlaneseq
        %v3892 = vshrl.u32 %v3891, 7
        %v3893 = vsub.s32 3, %v3892
        %v3894 = vrot.slane %v3877, %v3893
        %v3963 = vunpack.c.l.b16 %v3813
        %v3964 = vunpack.c.h.b16 %v3813
        %v3965 = vunpack.c.l.b16 %v3814
        %v3966 = vunpack.c.h.b16 %v3814
        %v3967 = vunpack.c.l.b16 %v3815
        %v3968 = vunpack.c.h.b16 %v3815
        %v3969 = vunpack.c.l.b16 %v3816
        %v3970 = vunpack.c.h.b16 %v3816
        %v3971 = vunpack.c.l.b16 %v3817
        %v3972 = vunpack.c.h.b16 %v3817
        %v3973 = vunpack.c.l.b16 %v3818
        %v3974 = vunpack.c.h.b16 %v3818
        %v3975 = vunpack.c.l.b16 %v3819
        %v3976 = vunpack.c.h.b16 %v3819
        %v3977 = vunpack.c.l.b16 %v3820
        %v3978 = vunpack.c.h.b16 %v3820
        %v3979 = vunpack.c.l.b16 %v3821
        %v3980 = vunpack.c.h.b16 %v3821
        %v3981 = vunpack.c.l.b16 %v3822
        %v3982 = vunpack.c.h.b16 %v3822
        %v3983 = vunpack.c.l.b16 %v3823
        %v3984 = vunpack.c.h.b16 %v3823
        %v3985 = vunpack.c.l.b16 %v3824
        %v3986 = vunpack.c.h.b16 %v3824
        %v3987 = vunpack.c.l.b16 %v3825
        %v3988 = vunpack.c.h.b16 %v3825
        %v3989 = vunpack.c.l.b16 %v3826
        %v3990 = vunpack.c.h.b16 %v3826
        %v3991 = vunpack.c.l.b16 %v3827
        %v3992 = vunpack.c.h.b16 %v3827
        %v3993 = vunpack.c.l.b16 %v3828
        %v3994 = vunpack.c.h.b16 %v3828
        %v3995 = vunpack.c.l.b16 %v3829
        %v3996 = vunpack.c.h.b16 %v3829
        %v3997 = vunpack.c.l.b16 %v3830
        %v3998 = vunpack.c.h.b16 %v3830
        %v3999 = vunpack.c.l.b16 %v3831
        %v4000 = vunpack.c.h.b16 %v3831
        %v4001 = vunpack.c.l.b16 %v3832
        %v4002 = vunpack.c.h.b16 %v3832
        %v4003 = vunpack.c.l.b16 %v3833
        %v4004 = vunpack.c.h.b16 %v3833
        %v4005 = vunpack.c.l.b16 %v3834
        %v4006 = vunpack.c.h.b16 %v3834
        %v4007 = vunpack.c.l.b16 %v3835
        %v4008 = vunpack.c.h.b16 %v3835
        %v4009 = vunpack.c.l.b16 %v3836
        %v4010 = vunpack.c.h.b16 %v3836
        %v4011 = vunpack.c.l.b16 %v3837
        %v4012 = vunpack.c.h.b16 %v3837
        %v4013 = vunpack.c.l.b16 %v3838
        %v4014 = vunpack.c.h.b16 %v3838
        %v4015 = vunpack.c.l.b16 %v3839
        %v4016 = vunpack.c.h.b16 %v3839
        %v4017 = vunpack.c.l.b16 %v3840
        %v4018 = vunpack.c.h.b16 %v3840
        %v4019 = vunpack.c.l.b16 %v3841
        %v4020 = vunpack.c.h.b16 %v3841
        %v4021 = vunpack.c.l.b16 %v3842
        %v4022 = vunpack.c.h.b16 %v3842
        %v4023 = vunpack.c.l.b16 %v3843
        %v4024 = vunpack.c.h.b16 %v3843
        %v4025 = vunpack.c.l.b16 %v3844
        %v4026 = vunpack.c.h.b16 %v3844
        %v4027 = vunpack.c.l.b16 %v3845
        %v4028 = vunpack.c.h.b16 %v3845
        %v4029 = vunpack.c.l.b16 %v3846
        %v4030 = vunpack.c.h.b16 %v3846
        %v4031 = vunpack.c.l.b16 %v3847
        %v4032 = vunpack.c.h.b16 %v3847
        %v4033 = vunpack.c.l.b16 %v3848
        %v4034 = vunpack.c.h.b16 %v3848
        %v4035 = vunpack.c.l.b16 %v3849
        %v4036 = vunpack.c.h.b16 %v3849
        %v4037 = vunpack.c.l.b16 %v3850
        %v4038 = vunpack.c.h.b16 %v3850
        %v4039 = vunpack.c.l.b16 %v3851
        %v4040 = vunpack.c.h.b16 %v3851
        %v4041 = vunpack.c.l.b16 %v3852
        %v4042 = vunpack.c.h.b16 %v3852
        %v4043 = vunpack.c.l.b16 %v3853
        %v4044 = vunpack.c.h.b16 %v3853
        %v4045 = vunpack.c.l.b16 %v3854
        %v4046 = vunpack.c.h.b16 %v3854
        %v4047 = vunpack.c.l.b16 %v3855
        %v4048 = vunpack.c.h.b16 %v3855
        %v4049 = vunpack.c.l.b16 %v3856
        %v4050 = vunpack.c.h.b16 %v3856
        %v4051 = vunpack.c.l.b16 %v3857
        %v4052 = vunpack.c.h.b16 %v3857
        %v4053 = vunpack.c.l.b16 %v3858
        %v4054 = vunpack.c.h.b16 %v3858
        %v4055 = vunpack.c.l.b16 %v3859
        %v4056 = vunpack.c.h.b16 %v3859
        %v4057 = vunpack.c.l.b16 %v3860
        %v4058 = vunpack.c.h.b16 %v3860
        %v4059 = vunpack.c.l.b16 %v3861
        %v4060 = vunpack.c.h.b16 %v3861
        %v4061 = vunpack.c.l.b16 %v3862
        %v4062 = vunpack.c.h.b16 %v3862
        %v4063 = vunpack.c.l.b16 %v3863
        %v4064 = vunpack.c.h.b16 %v3863
        %v4065 = vunpack.c.l.b16 %v3864
        %v4066 = vunpack.c.h.b16 %v3864
        %v4067 = vunpack.c.l.b16 %v3865
        %v4068 = vunpack.c.h.b16 %v3865
        %v4069 = vunpack.c.l.b16 %v3866
        %v4070 = vunpack.c.h.b16 %v3866
        %v4071 = vunpack.c.l.b16 %v3867
        %v4072 = vunpack.c.h.b16 %v3867
        %v4073 = vunpack.c.l.b16 %v3868
        %v4074 = vunpack.c.h.b16 %v3868
        %v4075 = vunpack.c.l.b16 %v3869
        %v4076 = vunpack.c.h.b16 %v3869
        %v4077 = vunpack.c.l.b16 %v3870
        %v4078 = vunpack.c.h.b16 %v3870
        %v4079 = vunpack.c.l.b16 %v3871
        %v4080 = vunpack.c.h.b16 %v3871
        %v4081 = vunpack.c.l.b16 %v3872
        %v4082 = vunpack.c.h.b16 %v3872
        %v4083 = vunpack.c.l.b16 %v3873
        %v4084 = vunpack.c.h.b16 %v3873
        %v4085 = vunpack.c.l.b16 %v3874
        %v4086 = vunpack.c.h.b16 %v3874
        %v4087 = vunpack.c.l.b16 %v3875
        %v4088 = vunpack.c.h.b16 %v3875
        %v4089 = vunpack.c.l.b16 %v3876
        %v4090 = vunpack.c.h.b16 %v3876
        %v4091 = vpack.c.b16 %v3967, %v3963
        %v4092 = vpack.c.b16 %v3968, %v3964
        %v4093 = vpack.c.b16 %v3969, %v3965
        %v4094 = vpack.c.b16 %v3970, %v3966
        %v4095 = vpack.c.b16 %v3975, %v3971
        %v4096 = vpack.c.b16 %v3976, %v3972
        %v4097 = vpack.c.b16 %v3977, %v3973
        %v4098 = vpack.c.b16 %v3978, %v3974
        %v4099 = vpack.c.b16 %v3983, %v3979
        %v4100 = vpack.c.b16 %v3984, %v3980
        %v4101 = vpack.c.b16 %v3985, %v3981
        %v4102 = vpack.c.b16 %v3986, %v3982
        %v4103 = vpack.c.b16 %v3991, %v3987
        %v4104 = vpack.c.b16 %v3992, %v3988
        %v4105 = vpack.c.b16 %v3993, %v3989
        %v4106 = vpack.c.b16 %v3994, %v3990
        %v4107 = vpack.c.b16 %v3999, %v3995
        %v4108 = vpack.c.b16 %v4000, %v3996
        %v4109 = vpack.c.b16 %v4001, %v3997
        %v4110 = vpack.c.b16 %v4002, %v3998
        %v4111 = vpack.c.b16 %v4007, %v4003
        %v4112 = vpack.c.b16 %v4008, %v4004
        %v4113 = vpack.c.b16 %v4009, %v4005
        %v4114 = vpack.c.b16 %v4010, %v4006
        %v4115 = vpack.c.b16 %v4015, %v4011
        %v4116 = vpack.c.b16 %v4016, %v4012
        %v4117 = vpack.c.b16 %v4017, %v4013
        %v4118 = vpack.c.b16 %v4018, %v4014
        %v4119 = vpack.c.b16 %v4023, %v4019
        %v4120 = vpack.c.b16 %v4024, %v4020
        %v4121 = vpack.c.b16 %v4025, %v4021
        %v4122 = vpack.c.b16 %v4026, %v4022
        %v4123 = vpack.c.b16 %v4031, %v4027
        %v4124 = vpack.c.b16 %v4032, %v4028
        %v4125 = vpack.c.b16 %v4033, %v4029
        %v4126 = vpack.c.b16 %v4034, %v4030
        %v4127 = vpack.c.b16 %v4039, %v4035
        %v4128 = vpack.c.b16 %v4040, %v4036
        %v4129 = vpack.c.b16 %v4041, %v4037
        %v4130 = vpack.c.b16 %v4042, %v4038
        %v4131 = vpack.c.b16 %v4047, %v4043
        %v4132 = vpack.c.b16 %v4048, %v4044
        %v4133 = vpack.c.b16 %v4049, %v4045
        %v4134 = vpack.c.b16 %v4050, %v4046
        %v4135 = vpack.c.b16 %v4055, %v4051
        %v4136 = vpack.c.b16 %v4056, %v4052
        %v4137 = vpack.c.b16 %v4057, %v4053
        %v4138 = vpack.c.b16 %v4058, %v4054
        %v4139 = vpack.c.b16 %v4063, %v4059
        %v4140 = vpack.c.b16 %v4064, %v4060
        %v4141 = vpack.c.b16 %v4065, %v4061
        %v4142 = vpack.c.b16 %v4066, %v4062
        %v4143 = vpack.c.b16 %v4071, %v4067
        %v4144 = vpack.c.b16 %v4072, %v4068
        %v4145 = vpack.c.b16 %v4073, %v4069
        %v4146 = vpack.c.b16 %v4074, %v4070
        %v4147 = vpack.c.b16 %v4079, %v4075
        %v4148 = vpack.c.b16 %v4080, %v4076
        %v4149 = vpack.c.b16 %v4081, %v4077
        %v4150 = vpack.c.b16 %v4082, %v4078
        %v4151 = vpack.c.b16 %v4087, %v4083
        %v4152 = vpack.c.b16 %v4088, %v4084
        %v4153 = vpack.c.b16 %v4089, %v4085
        %v4154 = vpack.c.b16 %v4090, %v4086
        %4219 = vmatprep.subr.bf16.mxu0 %v4120
        %4220 = vmatpush1.bf16.msra.mxu0 %v4119
        %4221 = vmatprep.subr.bf16.mxu0 %v4116
        %4222 = vmatpush1.bf16.msra.mxu0 %v4115
        %4223 = vmatprep.subr.bf16.mxu0 %v4112
        %4224 = vmatpush1.bf16.msra.mxu0 %v4111
        %4225 = vmatprep.subr.bf16.mxu0 %v4108
        %4226 = vmatpush1.bf16.msra.mxu0 %v4107
        %4227 = vmatprep.subr.bf16.mxu0 %v4104
        %4228 = vmatpush1.bf16.msra.mxu0 %v4103
        %4229 = vmatprep.subr.bf16.mxu0 %v4100
        %4230 = vmatpush1.bf16.msra.mxu0 %v4099
        %4231 = vmatprep.subr.bf16.mxu0 %v4096
        %4232 = vmatpush1.bf16.msra.mxu0 %v4095
        %4233 = vmatprep.subr.bf16.mxu0 %v4092
        %4234 = vmatpush1.bf16.msra.mxu0 %v4091
        %4235 = vmatprep.subr.bf16.mxu0 %v4152
        %4236 = vmatpush2.bf16.msra.mxu0 %v4151
        %4237 = vmatprep.subr.bf16.mxu0 %v4148
        %4238 = vmatpush2.bf16.msra.mxu0 %v4147
        %4239 = vmatprep.subr.bf16.mxu0 %v4144
        %4240 = vmatpush2.bf16.msra.mxu0 %v4143
        %4241 = vmatprep.subr.bf16.mxu0 %v4140
        %4242 = vmatpush2.bf16.msra.mxu0 %v4139
        %4243 = vmatprep.subr.bf16.mxu0 %v4136
        %4244 = vmatpush2.bf16.msra.mxu0 %v4135
        %4245 = vmatprep.subr.bf16.mxu0 %v4132
        %4246 = vmatpush2.bf16.msra.mxu0 %v4131
        %4247 = vmatprep.subr.bf16.mxu0 %v4128
        %4248 = vmatpush2.bf16.msra.mxu0 %v4127
        %4249 = vmatprep.subr.bf16.mxu0 %v4124
        %4250 = vmatpush2.bf16.msra.mxu0 %v4123
        %4251 = vmatprep.mubr.bf16.mxu0 %v3812
        %4252 = vmatmul.mubr.bf16.gmra.mxu0 %v3811
        %v4253 = vpop.f32.mrf.mxu0
        %v4254 = vadd.f32 %v3882, %v4253
        %v4255 = vpop.f32.mrf.mxu0
        %v4256 = vadd.f32 %v3886, %v4255
        %v4257 = vpop.f32.mrf.mxu0
        %v4258 = vpop.f32.mrf.mxu0
        %4259 = vdwg.mxu0
        %4260 = vmatprep.subr.bf16.mxu0 %v4122
        %4261 = vmatpush1.bf16.msra.mxu0 %v4121
        %4262 = vmatprep.subr.bf16.mxu0 %v4118
        %4263 = vmatpush1.bf16.msra.mxu0 %v4117
        %4264 = vmatprep.subr.bf16.mxu0 %v4114
        %4265 = vmatpush1.bf16.msra.mxu0 %v4113
        %4266 = vmatprep.subr.bf16.mxu0 %v4110
        %4267 = vmatpush1.bf16.msra.mxu0 %v4109
        %4268 = vmatprep.subr.bf16.mxu0 %v4106
        %4269 = vmatpush1.bf16.msra.mxu0 %v4105
        %4270 = vmatprep.subr.bf16.mxu0 %v4102
        %4271 = vmatpush1.bf16.msra.mxu0 %v4101
        %4272 = vmatprep.subr.bf16.mxu0 %v4098
        %4273 = vmatpush1.bf16.msra.mxu0 %v4097
        %4274 = vmatprep.subr.bf16.mxu0 %v4094
        %4275 = vmatpush1.bf16.msra.mxu0 %v4093
        %4276 = vmatprep.subr.bf16.mxu0 %v4154
        %4277 = vmatpush2.bf16.msra.mxu0 %v4153
        %4278 = vmatprep.subr.bf16.mxu0 %v4150
        %4279 = vmatpush2.bf16.msra.mxu0 %v4149
        %4280 = vmatprep.subr.bf16.mxu0 %v4146
        %4281 = vmatpush2.bf16.msra.mxu0 %v4145
        %4282 = vmatprep.subr.bf16.mxu0 %v4142
        %4283 = vmatpush2.bf16.msra.mxu0 %v4141
        %4284 = vmatprep.subr.bf16.mxu0 %v4138
        %4285 = vmatpush2.bf16.msra.mxu0 %v4137
        %4286 = vmatprep.subr.bf16.mxu0 %v4134
        %4287 = vmatpush2.bf16.msra.mxu0 %v4133
        %4288 = vmatprep.subr.bf16.mxu0 %v4130
        %4289 = vmatpush2.bf16.msra.mxu0 %v4129
        %4290 = vmatprep.subr.bf16.mxu0 %v4126
        %4291 = vmatpush2.bf16.msra.mxu0 %v4125
        %4292 = vmatprep.mubr.bf16.mxu0 %v3812
        %4293 = vmatmul.mubr.bf16.gmra.mxu0 %v3811
        %v4294 = vpop.f32.mrf.mxu0
        %v4295 = vadd.f32 %v3890, %v4294
        %v4296 = vpop.f32.mrf.mxu0
        %v4297 = vadd.f32 %v3894, %v4296
        %v4298 = vpop.f32.mrf.mxu0
        %v4299 = vpop.f32.mrf.mxu0
        %4300 = vdwg.mxu0
        %v4301 = vmul.f32 %v4254, 0.5
        %v4302 = vmul.f32 %v4256, 0.5
        %v4303 = vmul.f32 %v4295, 0.5
        %v4304 = vmul.f32 %v4297, 0.5
        %v4305 = vmul.f32 %v4254, 0.70710677
        %v4306 = vmul.f32 %v4256, 0.70710677
        %v4307 = vmul.f32 %v4295, 0.70710677
        %v4308 = vmul.f32 %v4297, 0.70710677
        %vm4309 = vcmp.ge.f32.partialorder %v4305, 0.0
        %vm4310 = vcmp.ge.f32.partialorder %v4306, 0.0
        %vm4311 = vcmp.ge.f32.partialorder %v4307, 0.0
        %vm4312 = vcmp.ge.f32.partialorder %v4308, 0.0
        %v4313 = vsel %vm4309, 1.0, -1.0
        %v4314 = vsel %vm4310, 1.0, -1.0
        %v4315 = vsel %vm4311, 1.0, -1.0
        %v4316 = vsel %vm4312, 1.0, -1.0
        %v4317 = vand.u32 2147483647, %v4305
        %v4318 = vand.u32 2147483647, %v4306
        %v4319 = vand.u32 2147483647, %v4307
        %v4320 = vand.u32 2147483647, %v4308
        %v4321 = vmul.f32 %v4317, 0.3275911
        %v4322 = vmul.f32 %v4318, 0.3275911
        %v4323 = vmul.f32 %v4319, 0.3275911
        %v4324 = vmul.f32 %v4320, 0.3275911
        %v4325 = vadd.f32 %v4321, 1.0
        %v4326 = vadd.f32 %v4322, 1.0
        %v4327 = vadd.f32 %v4323, 1.0
        %v4328 = vadd.f32 %v4324, 1.0
        %v4329 = vrcp.pop %v4325
        %v4330 = vmul.f32 1.0, %v4329
        %v4331 = vrcp.pop %v4326
        %v4332 = vmul.f32 1.0, %v4331
        %v4333 = vrcp.pop %v4327
        %v4334 = vmul.f32 1.0, %v4333
        %v4335 = vrcp.pop %v4328
        %v4336 = vmul.f32 1.0, %v4335
        %v4337 = vmul.f32 %v4330, 1.0614054
        %v4338 = vmul.f32 %v4332, 1.0614054
        %v4339 = vmul.f32 %v4334, 1.0614054
        %v4340 = vmul.f32 %v4336, 1.0614054
        %v4341 = vadd.f32 %v4337, -1.4531521
        %v4342 = vadd.f32 %v4338, -1.4531521
        %v4343 = vadd.f32 %v4339, -1.4531521
        %v4344 = vadd.f32 %v4340, -1.4531521
        %v4345 = vmul.f32 %v4341, %v4330
        %v4346 = vmul.f32 %v4342, %v4332
        %v4347 = vmul.f32 %v4343, %v4334
        %v4348 = vmul.f32 %v4344, %v4336
        %v4349 = vadd.f32 %v4345, 1.4214138
        %v4350 = vadd.f32 %v4346, 1.4214138
        %v4351 = vadd.f32 %v4347, 1.4214138
        %v4352 = vadd.f32 %v4348, 1.4214138
        %v4353 = vmul.f32 %v4349, %v4330
        %v4354 = vmul.f32 %v4350, %v4332
        %v4355 = vmul.f32 %v4351, %v4334
        %v4356 = vmul.f32 %v4352, %v4336
        %v4357 = vadd.f32 %v4353, -0.28449672
        %v4358 = vadd.f32 %v4354, -0.28449672
        %v4359 = vadd.f32 %v4355, -0.28449672
        %v4360 = vadd.f32 %v4356, -0.28449672
        %v4361 = vmul.f32 %v4357, %v4330
        %v4362 = vmul.f32 %v4358, %v4332
        %v4363 = vmul.f32 %v4359, %v4334
        %v4364 = vmul.f32 %v4360, %v4336
        %v4365 = vadd.f32 %v4361, 0.2548296
        %v4366 = vadd.f32 %v4362, 0.2548296
        %v4367 = vadd.f32 %v4363, 0.2548296
        %v4368 = vadd.f32 %v4364, 0.2548296
        %v4369 = vmul.f32 %v4365, %v4330
        %v4370 = vmul.f32 %v4366, %v4332
        %v4371 = vmul.f32 %v4367, %v4334
        %v4372 = vmul.f32 %v4368, %v4336
        %v4373 = vsub.f32 0.0, %v4317
        %v4374 = vsub.f32 0.0, %v4318
        %v4375 = vsub.f32 0.0, %v4319
        %v4376 = vsub.f32 0.0, %v4320
        %v4377 = vmul.f32 %v4373, %v4317
        %v4378 = vmul.f32 %v4374, %v4318
        %v4379 = vmul.f32 %v4375, %v4319
        %v4380 = vmul.f32 %v4376, %v4320
        %v4381 = vmul.f32 %v4377, 1.442695
        %v4382 = vpow.pop %v4381
        %v4383 = vmul.f32 %v4378, 1.442695
        %v4384 = vpow.pop %v4383
        %v4385 = vmul.f32 %v4379, 1.442695
        %v4386 = vpow.pop %v4385
        %v4387 = vmul.f32 %v4380, 1.442695
        %v4388 = vpow.pop %v4387
        %v4389 = vmul.f32 %v4369, %v4382
        %v4390 = vmul.f32 %v4370, %v4384
        %v4391 = vmul.f32 %v4371, %v4386
        %v4392 = vmul.f32 %v4372, %v4388
        %v4393 = vsub.f32 1.0, %v4389
        %v4394 = vsub.f32 1.0, %v4390
        %v4395 = vsub.f32 1.0, %v4391
        %v4396 = vsub.f32 1.0, %v4392
        %v4397 = vmul.f32 %v4313, %v4393
        %v4398 = vmul.f32 %v4314, %v4394
        %v4399 = vmul.f32 %v4315, %v4395
        %v4400 = vmul.f32 %v4316, %v4396
        %v4401 = vadd.f32 %v4397, 1.0
        %v4402 = vadd.f32 %v4398, 1.0
        %v4403 = vadd.f32 %v4399, 1.0
        %v4404 = vadd.f32 %v4400, 1.0
        %v4405 = vmul.f32 %v4301, %v4401
        %v4406 = vmul.f32 %v4302, %v4402
        %v4407 = vmul.f32 %v4303, %v4403
        %v4408 = vmul.f32 %v4304, %v4404
        %v4409 = vpack.c.bf16 %v4405, %v4405
        %v4410 = vpack.c.bf16 %v4406, %v4406
        %v4411 = vpack.c.bf16 %v4407, %v4407
        %v4412 = vpack.c.bf16 %v4408, %v4408
        %v4413 = vld [vmem:[%s976] sm:$0xff]
        %v4414 = vld [vmem:[%s976 + $0x8] sm:$0xff]
        %v4415 = vld [vmem:[%s976 + $0x10] sm:$0xff]
        %v4416 = vld [vmem:[%s976 + $0x18] sm:$0xff]
        %v4417 = vld [vmem:[%s976 + $0x20] sm:$0xff]
        %v4418 = vld [vmem:[%s976 + $0x28] sm:$0xff]
        %v4419 = vld [vmem:[%s976 + $0x30] sm:$0xff]
        %v4420 = vld [vmem:[%s976 + $0x38] sm:$0xff]
        %v4421 = vld [vmem:[%s976 + $0x40] sm:$0xff]
        %v4422 = vld [vmem:[%s976 + $0x48] sm:$0xff]
        %v4423 = vld [vmem:[%s976 + $0x50] sm:$0xff]
        %v4424 = vld [vmem:[%s976 + $0x58] sm:$0xff]
        %v4425 = vld [vmem:[%s976 + $0x60] sm:$0xff]
        %v4426 = vld [vmem:[%s976 + $0x68] sm:$0xff]
        %v4427 = vld [vmem:[%s976 + $0x70] sm:$0xff]
        %v4428 = vld [vmem:[%s976 + $0x78] sm:$0xff]
        %v4429 = vld [vmem:[%s976 + $0x80] sm:$0xff]
        %v4430 = vld [vmem:[%s976 + $0x88] sm:$0xff]
        %v4431 = vld [vmem:[%s976 + $0x90] sm:$0xff]
        %v4432 = vld [vmem:[%s976 + $0x98] sm:$0xff]
        %v4433 = vld [vmem:[%s976 + $0xa0] sm:$0xff]
        %v4434 = vld [vmem:[%s976 + $0xa8] sm:$0xff]
        %v4435 = vld [vmem:[%s976 + $0xb0] sm:$0xff]
        %v4436 = vld [vmem:[%s976 + $0xb8] sm:$0xff]
        %v4437 = vld [vmem:[%s976 + $0xc0] sm:$0xff]
        %v4438 = vld [vmem:[%s976 + $0xc8] sm:$0xff]
        %v4439 = vld [vmem:[%s976 + $0xd0] sm:$0xff]
        %v4440 = vld [vmem:[%s976 + $0xd8] sm:$0xff]
        %v4441 = vld [vmem:[%s976 + $0xe0] sm:$0xff]
        %v4442 = vld [vmem:[%s976 + $0xe8] sm:$0xff]
        %v4443 = vld [vmem:[%s976 + $0xf0] sm:$0xff]
        %v4444 = vld [vmem:[%s976 + $0xf8] sm:$0xff]
        %v4445 = vld [vmem:[%s976 + $0x100] sm:$0xff]
        %v4446 = vld [vmem:[%s976 + $0x108] sm:$0xff]
        %v4447 = vld [vmem:[%s976 + $0x110] sm:$0xff]
        %v4448 = vld [vmem:[%s976 + $0x118] sm:$0xff]
        %v4449 = vld [vmem:[%s976 + $0x120] sm:$0xff]
        %v4450 = vld [vmem:[%s976 + $0x128] sm:$0xff]
        %v4451 = vld [vmem:[%s976 + $0x130] sm:$0xff]
        %v4452 = vld [vmem:[%s976 + $0x138] sm:$0xff]
        %v4453 = vld [vmem:[%s976 + $0x140] sm:$0xff]
        %v4454 = vld [vmem:[%s976 + $0x148] sm:$0xff]
        %v4455 = vld [vmem:[%s976 + $0x150] sm:$0xff]
        %v4456 = vld [vmem:[%s976 + $0x158] sm:$0xff]
        %v4457 = vld [vmem:[%s976 + $0x160] sm:$0xff]
        %v4458 = vld [vmem:[%s976 + $0x168] sm:$0xff]
        %v4459 = vld [vmem:[%s976 + $0x170] sm:$0xff]
        %v4460 = vld [vmem:[%s976 + $0x178] sm:$0xff]
        %v4461 = vld [vmem:[%s976 + $0x180] sm:$0xff]
        %v4462 = vld [vmem:[%s976 + $0x188] sm:$0xff]
        %v4463 = vld [vmem:[%s976 + $0x190] sm:$0xff]
        %v4464 = vld [vmem:[%s976 + $0x198] sm:$0xff]
        %v4465 = vld [vmem:[%s976 + $0x1a0] sm:$0xff]
        %v4466 = vld [vmem:[%s976 + $0x1a8] sm:$0xff]
        %v4467 = vld [vmem:[%s976 + $0x1b0] sm:$0xff]
        %v4468 = vld [vmem:[%s976 + $0x1b8] sm:$0xff]
        %v4469 = vld [vmem:[%s976 + $0x1c0] sm:$0xff]
        %v4470 = vld [vmem:[%s976 + $0x1c8] sm:$0xff]
        %v4471 = vld [vmem:[%s976 + $0x1d0] sm:$0xff]
        %v4472 = vld [vmem:[%s976 + $0x1d8] sm:$0xff]
        %v4473 = vld [vmem:[%s976 + $0x1e0] sm:$0xff]
        %v4474 = vld [vmem:[%s976 + $0x1e8] sm:$0xff]
        %v4475 = vld [vmem:[%s976 + $0x1f0] sm:$0xff]
        %v4476 = vld [vmem:[%s976 + $0x1f8] sm:$0xff]
        %v4477 = vld [vmem:[%s985] sm:$0x3]
        %v4479 = vlaneseq
        %v4480 = vshrl.u32 %v4479, 7
        %v4481 = vsub.s32 0, %v4480
        %v4482 = vrot.slane %v4477, %v4481
        %v4483 = vlaneseq
        %v4484 = vshrl.u32 %v4483, 7
        %v4485 = vsub.s32 1, %v4484
        %v4486 = vrot.slane %v4477, %v4485
        %v4553 = vunpack.c.l.b16 %v4413
        %v4554 = vunpack.c.h.b16 %v4413
        %v4555 = vunpack.c.l.b16 %v4414
        %v4556 = vunpack.c.h.b16 %v4414
        %v4557 = vunpack.c.l.b16 %v4415
        %v4558 = vunpack.c.h.b16 %v4415
        %v4559 = vunpack.c.l.b16 %v4416
        %v4560 = vunpack.c.h.b16 %v4416
        %v4561 = vunpack.c.l.b16 %v4417
        %v4562 = vunpack.c.h.b16 %v4417
        %v4563 = vunpack.c.l.b16 %v4418
        %v4564 = vunpack.c.h.b16 %v4418
        %v4565 = vunpack.c.l.b16 %v4419
        %v4566 = vunpack.c.h.b16 %v4419
        %v4567 = vunpack.c.l.b16 %v4420
        %v4568 = vunpack.c.h.b16 %v4420
        %v4569 = vunpack.c.l.b16 %v4421
        %v4570 = vunpack.c.h.b16 %v4421
        %v4571 = vunpack.c.l.b16 %v4422
        %v4572 = vunpack.c.h.b16 %v4422
        %v4573 = vunpack.c.l.b16 %v4423
        %v4574 = vunpack.c.h.b16 %v4423
        %v4575 = vunpack.c.l.b16 %v4424
        %v4576 = vunpack.c.h.b16 %v4424
        %v4577 = vunpack.c.l.b16 %v4425
        %v4578 = vunpack.c.h.b16 %v4425
        %v4579 = vunpack.c.l.b16 %v4426
        %v4580 = vunpack.c.h.b16 %v4426
        %v4581 = vunpack.c.l.b16 %v4427
        %v4582 = vunpack.c.h.b16 %v4427
        %v4583 = vunpack.c.l.b16 %v4428
        %v4584 = vunpack.c.h.b16 %v4428
        %v4585 = vunpack.c.l.b16 %v4429
        %v4586 = vunpack.c.h.b16 %v4429
        %v4587 = vunpack.c.l.b16 %v4430
        %v4588 = vunpack.c.h.b16 %v4430
        %v4589 = vunpack.c.l.b16 %v4431
        %v4590 = vunpack.c.h.b16 %v4431
        %v4591 = vunpack.c.l.b16 %v4432
        %v4592 = vunpack.c.h.b16 %v4432
        %v4593 = vunpack.c.l.b16 %v4433
        %v4594 = vunpack.c.h.b16 %v4433
        %v4595 = vunpack.c.l.b16 %v4434
        %v4596 = vunpack.c.h.b16 %v4434
        %v4597 = vunpack.c.l.b16 %v4435
        %v4598 = vunpack.c.h.b16 %v4435
        %v4599 = vunpack.c.l.b16 %v4436
        %v4600 = vunpack.c.h.b16 %v4436
        %v4601 = vunpack.c.l.b16 %v4437
        %v4602 = vunpack.c.h.b16 %v4437
        %v4603 = vunpack.c.l.b16 %v4438
        %v4604 = vunpack.c.h.b16 %v4438
        %v4605 = vunpack.c.l.b16 %v4439
        %v4606 = vunpack.c.h.b16 %v4439
        %v4607 = vunpack.c.l.b16 %v4440
        %v4608 = vunpack.c.h.b16 %v4440
        %v4609 = vunpack.c.l.b16 %v4441
        %v4610 = vunpack.c.h.b16 %v4441
        %v4611 = vunpack.c.l.b16 %v4442
        %v4612 = vunpack.c.h.b16 %v4442
        %v4613 = vunpack.c.l.b16 %v4443
        %v4614 = vunpack.c.h.b16 %v4443
        %v4615 = vunpack.c.l.b16 %v4444
        %v4616 = vunpack.c.h.b16 %v4444
        %v4617 = vunpack.c.l.b16 %v4445
        %v4618 = vunpack.c.h.b16 %v4445
        %v4619 = vunpack.c.l.b16 %v4446
        %v4620 = vunpack.c.h.b16 %v4446
        %v4621 = vunpack.c.l.b16 %v4447
        %v4622 = vunpack.c.h.b16 %v4447
        %v4623 = vunpack.c.l.b16 %v4448
        %v4624 = vunpack.c.h.b16 %v4448
        %v4625 = vunpack.c.l.b16 %v4449
        %v4626 = vunpack.c.h.b16 %v4449
        %v4627 = vunpack.c.l.b16 %v4450
        %v4628 = vunpack.c.h.b16 %v4450
        %v4629 = vunpack.c.l.b16 %v4451
        %v4630 = vunpack.c.h.b16 %v4451
        %v4631 = vunpack.c.l.b16 %v4452
        %v4632 = vunpack.c.h.b16 %v4452
        %v4633 = vunpack.c.l.b16 %v4453
        %v4634 = vunpack.c.h.b16 %v4453
        %v4635 = vunpack.c.l.b16 %v4454
        %v4636 = vunpack.c.h.b16 %v4454
        %v4637 = vunpack.c.l.b16 %v4455
        %v4638 = vunpack.c.h.b16 %v4455
        %v4639 = vunpack.c.l.b16 %v4456
        %v4640 = vunpack.c.h.b16 %v4456
        %v4641 = vunpack.c.l.b16 %v4457
        %v4642 = vunpack.c.h.b16 %v4457
        %v4643 = vunpack.c.l.b16 %v4458
        %v4644 = vunpack.c.h.b16 %v4458
        %v4645 = vunpack.c.l.b16 %v4459
        %v4646 = vunpack.c.h.b16 %v4459
        %v4647 = vunpack.c.l.b16 %v4460
        %v4648 = vunpack.c.h.b16 %v4460
        %v4649 = vunpack.c.l.b16 %v4461
        %v4650 = vunpack.c.h.b16 %v4461
        %v4651 = vunpack.c.l.b16 %v4462
        %v4652 = vunpack.c.h.b16 %v4462
        %v4653 = vunpack.c.l.b16 %v4463
        %v4654 = vunpack.c.h.b16 %v4463
        %v4655 = vunpack.c.l.b16 %v4464
        %v4656 = vunpack.c.h.b16 %v4464
        %v4657 = vunpack.c.l.b16 %v4465
        %v4658 = vunpack.c.h.b16 %v4465
        %v4659 = vunpack.c.l.b16 %v4466
        %v4660 = vunpack.c.h.b16 %v4466
        %v4661 = vunpack.c.l.b16 %v4467
        %v4662 = vunpack.c.h.b16 %v4467
        %v4663 = vunpack.c.l.b16 %v4468
        %v4664 = vunpack.c.h.b16 %v4468
        %v4665 = vunpack.c.l.b16 %v4469
        %v4666 = vunpack.c.h.b16 %v4469
        %v4667 = vunpack.c.l.b16 %v4470
        %v4668 = vunpack.c.h.b16 %v4470
        %v4669 = vunpack.c.l.b16 %v4471
        %v4670 = vunpack.c.h.b16 %v4471
        %v4671 = vunpack.c.l.b16 %v4472
        %v4672 = vunpack.c.h.b16 %v4472
        %v4673 = vunpack.c.l.b16 %v4473
        %v4674 = vunpack.c.h.b16 %v4473
        %v4675 = vunpack.c.l.b16 %v4474
        %v4676 = vunpack.c.h.b16 %v4474
        %v4677 = vunpack.c.l.b16 %v4475
        %v4678 = vunpack.c.h.b16 %v4475
        %v4679 = vunpack.c.l.b16 %v4476
        %v4680 = vunpack.c.h.b16 %v4476
        %v4681 = vpack.c.b16 %v4555, %v4553
        %v4682 = vpack.c.b16 %v4556, %v4554
        %v4683 = vpack.c.b16 %v4559, %v4557
        %v4684 = vpack.c.b16 %v4560, %v4558
        %v4685 = vpack.c.b16 %v4563, %v4561
        %v4686 = vpack.c.b16 %v4564, %v4562
        %v4687 = vpack.c.b16 %v4567, %v4565
        %v4688 = vpack.c.b16 %v4568, %v4566
        %v4689 = vpack.c.b16 %v4571, %v4569
        %v4690 = vpack.c.b16 %v4572, %v4570
        %v4691 = vpack.c.b16 %v4575, %v4573
        %v4692 = vpack.c.b16 %v4576, %v4574
        %v4693 = vpack.c.b16 %v4579, %v4577
        %v4694 = vpack.c.b16 %v4580, %v4578
        %v4695 = vpack.c.b16 %v4583, %v4581
        %v4696 = vpack.c.b16 %v4584, %v4582
        %v4697 = vpack.c.b16 %v4587, %v4585
        %v4698 = vpack.c.b16 %v4588, %v4586
        %v4699 = vpack.c.b16 %v4591, %v4589
        %v4700 = vpack.c.b16 %v4592, %v4590
        %v4701 = vpack.c.b16 %v4595, %v4593
        %v4702 = vpack.c.b16 %v4596, %v4594
        %v4703 = vpack.c.b16 %v4599, %v4597
        %v4704 = vpack.c.b16 %v4600, %v4598
        %v4705 = vpack.c.b16 %v4603, %v4601
        %v4706 = vpack.c.b16 %v4604, %v4602
        %v4707 = vpack.c.b16 %v4607, %v4605
        %v4708 = vpack.c.b16 %v4608, %v4606
        %v4709 = vpack.c.b16 %v4611, %v4609
        %v4710 = vpack.c.b16 %v4612, %v4610
        %v4711 = vpack.c.b16 %v4615, %v4613
        %v4712 = vpack.c.b16 %v4616, %v4614
        %v4713 = vpack.c.b16 %v4619, %v4617
        %v4714 = vpack.c.b16 %v4620, %v4618
        %v4715 = vpack.c.b16 %v4623, %v4621
        %v4716 = vpack.c.b16 %v4624, %v4622
        %v4717 = vpack.c.b16 %v4627, %v4625
        %v4718 = vpack.c.b16 %v4628, %v4626
        %v4719 = vpack.c.b16 %v4631, %v4629
        %v4720 = vpack.c.b16 %v4632, %v4630
        %v4721 = vpack.c.b16 %v4635, %v4633
        %v4722 = vpack.c.b16 %v4636, %v4634
        %v4723 = vpack.c.b16 %v4639, %v4637
        %v4724 = vpack.c.b16 %v4640, %v4638
        %v4725 = vpack.c.b16 %v4643, %v4641
        %v4726 = vpack.c.b16 %v4644, %v4642
        %v4727 = vpack.c.b16 %v4647, %v4645
        %v4728 = vpack.c.b16 %v4648, %v4646
        %v4729 = vpack.c.b16 %v4651, %v4649
        %v4730 = vpack.c.b16 %v4652, %v4650
        %v4731 = vpack.c.b16 %v4655, %v4653
        %v4732 = vpack.c.b16 %v4656, %v4654
        %v4733 = vpack.c.b16 %v4659, %v4657
        %v4734 = vpack.c.b16 %v4660, %v4658
        %v4735 = vpack.c.b16 %v4663, %v4661
        %v4736 = vpack.c.b16 %v4664, %v4662
        %v4737 = vpack.c.b16 %v4667, %v4665
        %v4738 = vpack.c.b16 %v4668, %v4666
        %v4739 = vpack.c.b16 %v4671, %v4669
        %v4740 = vpack.c.b16 %v4672, %v4670
        %v4741 = vpack.c.b16 %v4675, %v4673
        %v4742 = vpack.c.b16 %v4676, %v4674
        %v4743 = vpack.c.b16 %v4679, %v4677
        %v4744 = vpack.c.b16 %v4680, %v4678
        %4809 = vmatprep.subr.bf16.mxu0 %v4696
        %4810 = vmatpush1.bf16.msra.mxu0 %v4695
        %4811 = vmatprep.subr.bf16.mxu0 %v4694
        %4812 = vmatpush1.bf16.msra.mxu0 %v4693
        %4813 = vmatprep.subr.bf16.mxu0 %v4692
        %4814 = vmatpush1.bf16.msra.mxu0 %v4691
        %4815 = vmatprep.subr.bf16.mxu0 %v4690
        %4816 = vmatpush1.bf16.msra.mxu0 %v4689
        %4817 = vmatprep.subr.bf16.mxu0 %v4688
        %4818 = vmatpush1.bf16.msra.mxu0 %v4687
        %4819 = vmatprep.subr.bf16.mxu0 %v4686
        %4820 = vmatpush1.bf16.msra.mxu0 %v4685
        %4821 = vmatprep.subr.bf16.mxu0 %v4684
        %4822 = vmatpush1.bf16.msra.mxu0 %v4683
        %4823 = vmatprep.subr.bf16.mxu0 %v4682
        %4824 = vmatpush1.bf16.msra.mxu0 %v4681
        %4825 = vmatprep.subr.bf16.mxu0 %v4712
        %4826 = vmatpush2.bf16.msra.mxu0 %v4711
        %4827 = vmatprep.subr.bf16.mxu0 %v4710
        %4828 = vmatpush2.bf16.msra.mxu0 %v4709
        %4829 = vmatprep.subr.bf16.mxu0 %v4708
        %4830 = vmatpush2.bf16.msra.mxu0 %v4707
        %4831 = vmatprep.subr.bf16.mxu0 %v4706
        %4832 = vmatpush2.bf16.msra.mxu0 %v4705
        %4833 = vmatprep.subr.bf16.mxu0 %v4704
        %4834 = vmatpush2.bf16.msra.mxu0 %v4703
        %4835 = vmatprep.subr.bf16.mxu0 %v4702
        %4836 = vmatpush2.bf16.msra.mxu0 %v4701
        %4837 = vmatprep.subr.bf16.mxu0 %v4700
        %4838 = vmatpush2.bf16.msra.mxu0 %v4699
        %4839 = vmatprep.subr.bf16.mxu0 %v4698
        %4840 = vmatpush2.bf16.msra.mxu0 %v4697
        %4841 = vmatprep.mubr.bf16.mxu0 %v4410
        %4842 = vmatmul.mubr.bf16.gmra.mxu0 %v4409
        %v4843 = vpop.f32.mrf.mxu0
        %v4844 = vadd.f32 %v4482, %v4843
        %v4845 = vpop.f32.mrf.mxu0
        %v4846 = vadd.f32 %v4486, %v4845
        %v4847 = vpop.f32.mrf.mxu0
        %v4848 = vpop.f32.mrf.mxu0
        %4849 = vdwg.mxu0
        %4850 = vmatprep.subr.bf16.mxu0 %v4728
        %4851 = vmatpush1.bf16.msra.mxu0 %v4727
        %4852 = vmatprep.subr.bf16.mxu0 %v4726
        %4853 = vmatpush1.bf16.msra.mxu0 %v4725
        %4854 = vmatprep.subr.bf16.mxu0 %v4724
        %4855 = vmatpush1.bf16.msra.mxu0 %v4723
        %4856 = vmatprep.subr.bf16.mxu0 %v4722
        %4857 = vmatpush1.bf16.msra.mxu0 %v4721
        %4858 = vmatprep.subr.bf16.mxu0 %v4720
        %4859 = vmatpush1.bf16.msra.mxu0 %v4719
        %4860 = vmatprep.subr.bf16.mxu0 %v4718
        %4861 = vmatpush1.bf16.msra.mxu0 %v4717
        %4862 = vmatprep.subr.bf16.mxu0 %v4716
        %4863 = vmatpush1.bf16.msra.mxu0 %v4715
        %4864 = vmatprep.subr.bf16.mxu0 %v4714
        %4865 = vmatpush1.bf16.msra.mxu0 %v4713
        %4866 = vmatprep.subr.bf16.mxu0 %v4744
        %4867 = vmatpush2.bf16.msra.mxu0 %v4743
        %4868 = vmatprep.subr.bf16.mxu0 %v4742
        %4869 = vmatpush2.bf16.msra.mxu0 %v4741
        %4870 = vmatprep.subr.bf16.mxu0 %v4740
        %4871 = vmatpush2.bf16.msra.mxu0 %v4739
        %4872 = vmatprep.subr.bf16.mxu0 %v4738
        %4873 = vmatpush2.bf16.msra.mxu0 %v4737
        %4874 = vmatprep.subr.bf16.mxu0 %v4736
        %4875 = vmatpush2.bf16.msra.mxu0 %v4735
        %4876 = vmatprep.subr.bf16.mxu0 %v4734
        %4877 = vmatpush2.bf16.msra.mxu0 %v4733
        %4878 = vmatprep.subr.bf16.mxu0 %v4732
        %4879 = vmatpush2.bf16.msra.mxu0 %v4731
        %4880 = vmatprep.subr.bf16.mxu0 %v4730
        %4881 = vmatpush2.bf16.msra.mxu0 %v4729
        %4882 = vmatprep.mubr.bf16.mxu0 %v4412
        %4883 = vmatmul.mubr.bf16.gmra.mxu0 %v4411
        %v4884 = vpop.f32.mrf.mxu0
        %v4885 = vadd.f32 %v4844, %v4884
        %v4886 = vpop.f32.mrf.mxu0
        %v4887 = vadd.f32 %v4846, %v4886
        %v4888 = vpop.f32.mrf.mxu0
        %v4889 = vpop.f32.mrf.mxu0
        %4890 = vdwg.mxu0
        %v4891 = vadd.f32 %v3761, %v4885
        %v4892 = vadd.f32 %v3762, %v4887
        %4893 = vst [vmem:[#allocation2] sm:$0x1f] %v4891
        %4894 = vst [vmem:[#allocation2 + $0x8] sm:$0x1f] %v4892
        %p4895 = scmp.eq.s32.totalorder %s42, 7
        // Predicated region
        $region173: #{vit_forward.1} parent=95 // pred_check
          %p4896 = pneg %p4895
        $region174: #{vit_forward.1} parent=95 // pred_check_branch
          %4898 = sbr.rel (%p4896) target = $region176
        $region175: #{vit_forward.1} parent=95 // pred_region
          %v4899 = vld [vmem:[#allocation21] sm:$0x3]
          %v4900 = vld [vmem:[#allocation22] sm:$0x3]
          %v4901 = vsel %vm1370, %v4891, 0.0
          %v4902 = vsel %vm1370, %v4892, 0.0
          %v4903 = vadd.f32 %v4901, %v4902
          %4904 = vadd.xlane.f32.xlu0 %v4903
          %v4905 = vpop.xlane.xlu0 %4904
          %v4906 = vmul.f32 %v4905, %v1376
          %v4907 = vsub.f32 %v4891, %v4906
          %v4908 = vsub.f32 %v4892, %v4906
          %v4909 = vmul.f32 %v4907, %v4907
          %v4910 = vmul.f32 %v4908, %v4908
          %v4911 = vsel %vm1370, %v4909, 0.0
          %v4912 = vsel %vm1370, %v4910, 0.0
          %v4913 = vadd.f32 %v4911, %v4912
          %4914 = vadd.xlane.f32.xlu0 %v4913
          %v4915 = vpop.xlane.xlu0 %4914
          %v4916 = vmul.f32 %v4915, %v1376
          %v4917 = vadd.f32 %v4916, 1e-12
          %v4918 = vrsqrt.pop %v4917
          %v4919 = vmul.f32 %v4907, %v4918
          %v4920 = vmul.f32 %v4908, %v4918
          %v4922 = vlaneseq
          %v4923 = vshrl.u32 %v4922, 7
          %v4924 = vsub.s32 0, %v4923
          %v4925 = vrot.slane %v4899, %v4924
          %v4926 = vlaneseq
          %v4927 = vshrl.u32 %v4926, 7
          %v4928 = vsub.s32 1, %v4927
          %v4929 = vrot.slane %v4899, %v4928
          %v4932 = vmul.f32 %v4919, %v4925
          %v4933 = vmul.f32 %v4920, %v4929
          %v4935 = vlaneseq
          %v4936 = vshrl.u32 %v4935, 7
          %v4937 = vsub.s32 0, %v4936
          %v4938 = vrot.slane %v4900, %v4937
          %v4939 = vlaneseq
          %v4940 = vshrl.u32 %v4939, 7
          %v4941 = vsub.s32 1, %v4940
          %v4942 = vrot.slane %v4900, %v4941
          %v4945 = vadd.f32 %v4932, %v4938
          %v4946 = vadd.f32 %v4933, %v4942
          %v4947 = vpack.c.bf16 %v4945, %v4945
          %v4948 = vpack.c.bf16 %v4946, %v4946
          %v4949 = vld [vmem:[#allocation24] sm:$0xf]
          %v4950 = vld [vmem:[#allocation24 + $0x4] sm:$0xf]
          %v4951 = vld [vmem:[#allocation24 + $0x8] sm:$0xf]
          %v4952 = vld [vmem:[#allocation24 + $0xc] sm:$0xf]
          %v4953 = vld [vmem:[#allocation24 + $0x10] sm:$0xf]
          %v4954 = vld [vmem:[#allocation24 + $0x14] sm:$0xf]
          %v4955 = vld [vmem:[#allocation24 + $0x18] sm:$0xf]
          %v4956 = vld [vmem:[#allocation24 + $0x1c] sm:$0xf]
          %v4957 = vld [vmem:[#allocation24 + $0x20] sm:$0xf]
          %v4958 = vld [vmem:[#allocation24 + $0x24] sm:$0xf]
          %v4959 = vld [vmem:[#allocation24 + $0x28] sm:$0xf]
          %v4960 = vld [vmem:[#allocation24 + $0x2c] sm:$0xf]
          %v4961 = vld [vmem:[#allocation24 + $0x30] sm:$0xf]
          %v4962 = vld [vmem:[#allocation24 + $0x34] sm:$0xf]
          %v4963 = vld [vmem:[#allocation24 + $0x38] sm:$0xf]
          %v4964 = vld [vmem:[#allocation24 + $0x3c] sm:$0xf]
          %v4965 = vld [vmem:[#allocation24 + $0x40] sm:$0xf]
          %v4966 = vld [vmem:[#allocation24 + $0x44] sm:$0xf]
          %v4967 = vld [vmem:[#allocation24 + $0x48] sm:$0xf]
          %v4968 = vld [vmem:[#allocation24 + $0x4c] sm:$0xf]
          %v4969 = vld [vmem:[#allocation24 + $0x50] sm:$0xf]
          %v4970 = vld [vmem:[#allocation24 + $0x54] sm:$0xf]
          %v4971 = vld [vmem:[#allocation24 + $0x58] sm:$0xf]
          %v4972 = vld [vmem:[#allocation24 + $0x5c] sm:$0xf]
          %v4973 = vld [vmem:[#allocation24 + $0x60] sm:$0xf]
          %v4974 = vld [vmem:[#allocation24 + $0x64] sm:$0xf]
          %v4975 = vld [vmem:[#allocation24 + $0x68] sm:$0xf]
          %v4976 = vld [vmem:[#allocation24 + $0x6c] sm:$0xf]
          %v4977 = vld [vmem:[#allocation24 + $0x70] sm:$0xf]
          %v4978 = vld [vmem:[#allocation24 + $0x74] sm:$0xf]
          %v4979 = vld [vmem:[#allocation24 + $0x78] sm:$0xf]
          %v4980 = vld [vmem:[#allocation24 + $0x7c] sm:$0xf]
          %v4981 = vld [vmem:[#allocation25] sm:$0x1]
          %v5014 = vunpack.c.l.b16 %v4949
          %v5015 = vunpack.c.l.b16 %v4950
          %v5016 = vunpack.c.l.b16 %v4951
          %v5017 = vunpack.c.l.b16 %v4952
          %v5018 = vunpack.c.l.b16 %v4953
          %v5019 = vunpack.c.l.b16 %v4954
          %v5020 = vunpack.c.l.b16 %v4955
          %v5021 = vunpack.c.l.b16 %v4956
          %v5022 = vunpack.c.l.b16 %v4957
          %v5023 = vunpack.c.l.b16 %v4958
          %v5024 = vunpack.c.l.b16 %v4959
          %v5025 = vunpack.c.l.b16 %v4960
          %v5026 = vunpack.c.l.b16 %v4961
          %v5027 = vunpack.c.l.b16 %v4962
          %v5028 = vunpack.c.l.b16 %v4963
          %v5029 = vunpack.c.l.b16 %v4964
          %v5030 = vunpack.c.l.b16 %v4965
          %v5031 = vunpack.c.l.b16 %v4966
          %v5032 = vunpack.c.l.b16 %v4967
          %v5033 = vunpack.c.l.b16 %v4968
          %v5034 = vunpack.c.l.b16 %v4969
          %v5035 = vunpack.c.l.b16 %v4970
          %v5036 = vunpack.c.l.b16 %v4971
          %v5037 = vunpack.c.l.b16 %v4972
          %v5038 = vunpack.c.l.b16 %v4973
          %v5039 = vunpack.c.l.b16 %v4974
          %v5040 = vunpack.c.l.b16 %v4975
          %v5041 = vunpack.c.l.b16 %v4976
          %v5042 = vunpack.c.l.b16 %v4977
          %v5043 = vunpack.c.l.b16 %v4978
          %v5044 = vunpack.c.l.b16 %v4979
          %v5045 = vunpack.c.l.b16 %v4980
          %v5046 = vpack.c.b16 %v5015, %v5014
          %v5047 = vpack.c.b16 %v5017, %v5016
          %v5048 = vpack.c.b16 %v5019, %v5018
          %v5049 = vpack.c.b16 %v5021, %v5020
          %v5050 = vpack.c.b16 %v5023, %v5022
          %v5051 = vpack.c.b16 %v5025, %v5024
          %v5052 = vpack.c.b16 %v5027, %v5026
          %v5053 = vpack.c.b16 %v5029, %v5028
          %v5054 = vpack.c.b16 %v5031, %v5030
          %v5055 = vpack.c.b16 %v5033, %v5032
          %v5056 = vpack.c.b16 %v5035, %v5034
          %v5057 = vpack.c.b16 %v5037, %v5036
          %v5058 = vpack.c.b16 %v5039, %v5038
          %v5059 = vpack.c.b16 %v5041, %v5040
          %v5060 = vpack.c.b16 %v5043, %v5042
          %v5061 = vpack.c.b16 %v5045, %v5044
          %5078 = vmatprep.subr.bf16.mxu0 0
          %5079 = vmatpush1.bf16.msra.mxu0 %v5053
          %5080 = vmatprep.subr.bf16.mxu0 0
          %5081 = vmatpush1.bf16.msra.mxu0 %v5052
          %5082 = vmatprep.subr.bf16.mxu0 0
          %5083 = vmatpush1.bf16.msra.mxu0 %v5051
          %5084 = vmatprep.subr.bf16.mxu0 0
          %5085 = vmatpush1.bf16.msra.mxu0 %v5050
          %5086 = vmatprep.subr.bf16.mxu0 0
          %5087 = vmatpush1.bf16.msra.mxu0 %v5049
          %5088 = vmatprep.subr.bf16.mxu0 0
          %5089 = vmatpush1.bf16.msra.mxu0 %v5048
          %5090 = vmatprep.subr.bf16.mxu0 0
          %5091 = vmatpush1.bf16.msra.mxu0 %v5047
          %5092 = vmatprep.subr.bf16.mxu0 0
          %5093 = vmatpush1.bf16.msra.mxu0 %v5046
          %5094 = vmatprep.subr.bf16.mxu0 0
          %5095 = vmatpush2.bf16.msra.mxu0 %v5061
          %5096 = vmatprep.subr.bf16.mxu0 0
          %5097 = vmatpush2.bf16.msra.mxu0 %v5060
          %5098 = vmatprep.subr.bf16.mxu0 0
          %5099 = vmatpush2.bf16.msra.mxu0 %v5059
          %5100 = vmatprep.subr.bf16.mxu0 0
          %5101 = vmatpush2.bf16.msra.mxu0 %v5058
          %5102 = vmatprep.subr.bf16.mxu0 0
          %5103 = vmatpush2.bf16.msra.mxu0 %v5057
          %5104 = vmatprep.subr.bf16.mxu0 0
          %5105 = vmatpush2.bf16.msra.mxu0 %v5056
          %5106 = vmatprep.subr.bf16.mxu0 0
          %5107 = vmatpush2.bf16.msra.mxu0 %v5055
          %5108 = vmatprep.subr.bf16.mxu0 0
          %5109 = vmatpush2.bf16.msra.mxu0 %v5054
          %5110 = vmatprep.mubr.bf16.mxu0 %v4948
          %5111 = vmatmul.mubr.bf16.gmra.mxu0 %v4947
          %v5112 = vpop.f32.mrf.mxu0
          %v5113 = vadd.f32 %v4981, %v5112
          %v5114 = vpop.f32.mrf.mxu0
          %v5115 = vpop.f32.mrf.mxu0
          %v5116 = vpop.f32.mrf.mxu0
          %5117 = vdwg.mxu0
          %5118 = vst [vmem:[%s1114] sm:$0x1] %v5113
        $region176: #{vit_forward.1} parent=95 // pred_fallthru
          _
        %s5119 = sand.u32 %s521, 1
        %s5120 = scalar_lea.sflag [#allocation6], %s5119
        %s5121 = sand.u32 %s521, 1
        %s5122 = scalar_lea.vmem [#allocation27], %s5121
        // Predicated region
        $region177: #{vit_forward.1} parent=95 // pred_check
          %p5123 = pneg %p531
        $region178: #{vit_forward.1} parent=95 // pred_check_branch
          %5125 = sbr.rel (%p5123) target = $region180
        $region179: #{vit_forward.1} parent=95 // pred_region
          %s5127 = ssub.s32 16, 16
          %5128 = vsyncadd %s5120, %s5127
          %s5129 = smul.addr %s41, 16
          %s5130 = scalar_lea.hbm %s19, %s5129
          %s5132 = sshll.u32 %s5122, 4
          %s5133 = int_to_ptr.vmem [resolvable:$true] %s5132
          %5135 = dma.vmem_to_hbm [thread:$0]  %s5133, 16, %s5130, %s5120
        $region180: #{vit_forward.1} parent=95 // pred_fallthru
          _
      $region96: #{vit_forward.1} parent=5 // pred_fallthru
        _
      %p5136 = scmp.le.s32.totalorder 2, %s32
      // Predicated region
      $region181: #{vit_forward.1} parent=5 // pred_check
        %p5137 = pneg %p5136
      $region182: #{vit_forward.1} parent=5 // pred_check_branch
        %5139 = sbr.rel (%p5137) target = $region184
      $region183: #{vit_forward.1} parent=5 // pred_region
        %s5140 = ssub.s32 %s32, 2
        // Predicated region
        $region185: #{vit_forward.1} parent=183 // pred_check
          %p5141 = pneg %p537
        $region186: #{vit_forward.1} parent=183 // pred_check_branch
          %5143 = sbr.rel (%p5141) target = $region188
        $region187: #{vit_forward.1} parent=183 // pred_region
          %s5144 = sand.u32 %s522, 1
          %s5145 = scalar_lea.sflag [#allocation6], %s5144
          %s5146 = sand.u32 %s522, 1
          %s5147 = scalar_lea.vmem [#allocation27], %s5146
          %5148 = dma.done %s5145, 16
        $region188: #{vit_forward.1} parent=183 // pred_fallthru
          _
      $region184: #{vit_forward.1} parent=5 // pred_fallthru
        _
    $region6: #{vit_forward.1} parent=1 // loop_footer
      %s36 = sadd.s32 1, %s32
    $region7: #{vit_forward.1} parent=1 // loop_footer_branch
      %31 = sbr.rel target = $region3
    $region8: #{vit_forward.1} parent=1 // loop_exit
      _
    %5149 = vsyncpa [#allocation5], 1
    %s5150 = scalar_lea.sflag [#allocation5], 1
    %5151 = vsyncpa %s5150, 1
    %5152 = vsyncpa [#allocation8], 1
    %5153 = vsyncpa [#allocation23], 1
    %5154 = vsyncpa [#allocation26], 1
    %5155 = vsyncpa [#allocation6], 1
    %s5156 = scalar_lea.sflag [#allocation6], 1
    %5157 = vsyncpa %s5156, 1

</llo_original>
